<compile_context>
chip_gen: v6e
topology: v6e:2x2x1
jax: 0.10.0
libtpu: 0.0.40
codegen_flags: <defaults>
</compile_context>

<pallas_src>
import math
from functools import partial

import numpy as np
import jax
import jax.numpy as jnp
from jax.experimental import pallas as pl
from jax.experimental.pallas import tpu as pltpu

D_MODEL = 128
NHEAD = 4
HEAD_DIM = D_MODEL // NHEAD
DIM_FF = 256
NUM_LAYERS = 2
VOCAB = 64
VOCAB_PAD = 128            # lane-dense output width
LN_EPS = 1e-5
N_LAYER_SLABS = 3          # packed arrays per encoder layer


# ---------------------------------------------------------------- helpers ----

def _layernorm(x, g, b):
    mean = jnp.mean(x, axis=-1, keepdims=True)
    var = jnp.mean(jnp.square(x - mean), axis=-1, keepdims=True)
    return (x - mean) * jax.lax.rsqrt(var + LN_EPS) * g + b


# ---------------------------------------------------------------- kernel -----

def _fused_forward_kernel(tok_ref,                 # (R, 1)  int32 token ids
                          mask_ref,                # (R, R)  f32 additive mask
                          emb_ref, pe_ref,         # (VOCAB, D) bf16, (R, D) f32
                          *args,
                          nhead, head_dim, dim_ff, num_layers, vocab, scale):
    # args = [w_in_slab, w2, bias_slab] * num_layers, fc_w, fc_b, out_ref
    layer_refs = args[:num_layers * N_LAYER_SLABS]
    fcw_ref, fcb_ref, o_ref = args[num_layers * N_LAYER_SLABS:]

    R, D = pe_ref.shape
    d = nhead * head_dim
    inv_sqrt = 1.0 / math.sqrt(head_dim)

    # ---- embedding gather: one broadcast compare + one one-hot matmul -------
    col = jax.lax.broadcasted_iota(jnp.int32, (R, vocab), 1)      # lane = vocab id
    onehot = (col == tok_ref[...]).astype(jnp.float32).astype(jnp.bfloat16)
    x = jnp.dot(onehot, emb_ref[...],
                preferred_element_type=jnp.float32) * scale + pe_ref[...]

    mask = mask_ref[...]                                          # block-diag mask

    # ---- encoder layers (static unroll) -------------------------------------
    for l in range(num_layers):
        w_ref, w2_ref, b_ref = layer_refs[l * N_LAYER_SLABS:(l + 1) * N_LAYER_SLABS]

        wqkv = w_ref[:, 0:3 * d]                  # (D, 3D)  bf16
        wo = w_ref[:, 3 * d:4 * d]                # (D, D)   bf16
        w1 = w_ref[:, 4 * d:4 * d + dim_ff]       # (D, FF)  bf16

        bqkv = b_ref[0:1, :3 * d]                 # f32 biases / LN params
        b1 = b_ref[1:2, :dim_ff]
        bo = b_ref[2:3, :d]
        ln1g = b_ref[3:4, :d]
        ln1b = b_ref[4:5, :d]
        b2 = b_ref[5:6, :d]
        ln2g = b_ref[6:7, :d]
        ln2b = b_ref[7:8, :d]

        qkv = jnp.dot(x.astype(jnp.bfloat16), wqkv,
                      preferred_element_type=jnp.float32) + bqkv
        q, k, v = qkv[:, :d], qkv[:, d:2 * d], qkv[:, 2 * d:]

        attn = jnp.zeros((R, d), jnp.float32)
        for h in range(nhead):                                    # static unroll
            lo, hi = h * head_dim, (h + 1) * head_dim
            qh, kh, vh = q[:, lo:hi], k[:, lo:hi], v[:, lo:hi]
            # scores kept in f32 (activation x activation) for softmax accuracy
            s_mat = jax.lax.dot_general(qh, kh, (((1,), (1,)), ((), ())),
                                        preferred_element_type=jnp.float32)
            s_mat = s_mat * inv_sqrt + mask
            s_mat = s_mat - jnp.max(s_mat, axis=-1, keepdims=True)
            p = jnp.exp(s_mat)
            p = p * pl.reciprocal(jnp.sum(p, axis=-1, keepdims=True), approx=True)
            head_out = jnp.dot(p.astype(jnp.bfloat16), vh.astype(jnp.bfloat16),
                               preferred_element_type=jnp.float32)
            # fold Wo into the head loop: no VMEM scratch, no lane concat
            attn = attn + jnp.dot(head_out.astype(jnp.bfloat16), wo[lo:hi, :],
                                  preferred_element_type=jnp.float32)

        # post-norm encoder layer; dropout is identity in eval mode
        y = _layernorm(x + attn + bo, ln1g, ln1b)
        h1 = jnp.maximum(jnp.dot(y.astype(jnp.bfloat16), w1,
                                 preferred_element_type=jnp.float32) + b1, 0.0)
        h2 = jnp.dot(h1.astype(jnp.bfloat16), w2_ref[...],
                     preferred_element_type=jnp.float32) + b2
        x = _layernorm(y + h2, ln2g, ln2b)

    # ---- fc_out (vocab padded to 128 lanes -> dense stores) -----------------
    logits = jnp.dot(x.astype(jnp.bfloat16), fcw_ref[...],
                     preferred_element_type=jnp.float32) + fcb_ref[...]
    o_ref[...] = logits.astype(o_ref.dtype)


# --------------------------------------------------------------- wrapper -----

def _const_spec(shape):
    nd = len(shape)
    return pl.BlockSpec(shape, lambda i, _nd=nd: (0,) * _nd)


def prepare_inputs(params, pe, seq_len, b_blk):
    """One-time packing: bf16 weight slabs, f32 bias slabs, padded fc, tiled pe,
    block-diagonal attention mask.  Hoisted out of the per-call forward path."""
    R = b_blk * seq_len
    pe_blk = jnp.tile(pe[:seq_len], (b_blk, 1)).astype(jnp.float32)        # (R, D)
    sample = jnp.arange(R, dtype=jnp.int32) // seq_len
    mask = jnp.where(sample[:, None] == sample[None, :], 0.0, -1e9).astype(jnp.float32)

    emb = params["emb"].astype(jnp.bfloat16)
    fc_w = jnp.pad(params["fc_w"], ((0, 0), (0, VOCAB_PAD - VOCAB))).astype(jnp.bfloat16)
    fc_b = jnp.pad(params["fc_b"], ((0, 0), (0, VOCAB_PAD - VOCAB))).astype(jnp.float32)

    def pad_row(v):
        return jnp.pad(v, ((0, 0), (0, 3 * D_MODEL - v.shape[1])))

    layer_slabs = []
    for (wqkv, bqkv, wo, bo, ln1g, ln1b, w1, b1, w2, b2, ln2g, ln2b) in params["layers"]:
        w_in = jnp.concatenate([wqkv, wo, w1], axis=1).astype(jnp.bfloat16)  # (D, 768)
        bias = jnp.concatenate([pad_row(bqkv), pad_row(b1), pad_row(bo),
                                pad_row(ln1g), pad_row(ln1b), pad_row(b2),
                                pad_row(ln2g), pad_row(ln2b)],
                               axis=0).astype(jnp.float32)                   # (8, 384)
        layer_slabs += [w_in, w2.astype(jnp.bfloat16), bias]

    return {"mask": mask, "emb": emb, "pe_blk": pe_blk,
            "layer_slabs": layer_slabs, "fc_w": fc_w, "fc_b": fc_b,
            "b_blk": b_blk, "seq_len": seq_len}


def transformer_lm_forward(src, prep):
    B, S = src.shape
    b_blk = prep["b_blk"]
    assert S == prep["seq_len"] and B % b_blk == 0
    R = b_blk * S
    grid_len = B // b_blk

    tok = src.reshape(B * S, 1).astype(jnp.int32)
    const_inputs = [prep["mask"], prep["emb"], prep["pe_blk"],
                    *prep["layer_slabs"], prep["fc_w"], prep["fc_b"]]
    in_specs = ([pl.BlockSpec((R, 1), lambda i: (i, 0))]
                + [_const_spec(a.shape) for a in const_inputs])

    kernel = partial(_fused_forward_kernel,
                     nhead=NHEAD, head_dim=HEAD_DIM, dim_ff=DIM_FF,
                     num_layers=NUM_LAYERS, vocab=VOCAB, scale=math.sqrt(D_MODEL))

    out = pl.pallas_call(
        kernel,
        out_shape=jax.ShapeDtypeStruct((B * S, VOCAB_PAD), jnp.float32),
        grid=(grid_len,),
        in_specs=in_specs,
        out_specs=pl.BlockSpec((R, VOCAB_PAD), lambda i: (i, 0)),
        compiler_params=pltpu.CompilerParams(dimension_semantics=("parallel",)),
    )(tok, *const_inputs)

    return out[:, :VOCAB].reshape(B, S, VOCAB)


# -------------------------------------------------------- params / reference --

def make_pe(max_len, d_model):
    position = jnp.arange(max_len, dtype=jnp.float32)[:, None]
    div_term = jnp.exp(jnp.arange(0, d_model, 2, dtype=jnp.float32)
                       * (-math.log(10000.0) / d_model))
    pe = jnp.zeros((max_len, d_model), jnp.float32)
    pe = pe.at[:, 0::2].set(jnp.sin(position * div_term))
    pe = pe.at[:, 1::2].set(jnp.cos(position * div_term))
    return pe


def init_params(key):
    ks = jax.random.split(key, 32)
    it = iter(range(32))

    def dense(fan_in, shape):
        return jax.random.normal(ks[next(it)], shape, jnp.float32) / math.sqrt(fan_in)

    # modest embedding scale keeps the post-*sqrt(d) activations O(1) and the
    # softmax well-conditioned at these tiny test shapes
    params = {"emb": jax.random.normal(ks[next(it)], (VOCAB, D_MODEL), jnp.float32) * 0.125}
    layers = []
    for _ in range(NUM_LAYERS):
        wqkv = dense(D_MODEL, (D_MODEL, 3 * D_MODEL))
        bqkv = dense(D_MODEL, (1, 3 * D_MODEL)) * 0.1
        wo = dense(D_MODEL, (D_MODEL, D_MODEL))
        bo = dense(D_MODEL, (1, D_MODEL)) * 0.1
        ln1g = jnp.ones((1, D_MODEL), jnp.float32)
        ln1b = jnp.zeros((1, D_MODEL), jnp.float32)
        w1 = dense(D_MODEL, (D_MODEL, DIM_FF))
        b1 = dense(D_MODEL, (1, DIM_FF)) * 0.1
        w2 = dense(DIM_FF, (DIM_FF, D_MODEL))
        b2 = dense(DIM_FF, (1, D_MODEL)) * 0.1
        ln2g = jnp.ones((1, D_MODEL), jnp.float32)
        ln2b = jnp.zeros((1, D_MODEL), jnp.float32)
        layers.append((wqkv, bqkv, wo, bo, ln1g, ln1b, w1, b1, w2, b2, ln2g, ln2b))
    params["layers"] = layers
    params["fc_w"] = dense(D_MODEL, (D_MODEL, VOCAB))
    params["fc_b"] = dense(D_MODEL, (1, VOCAB)) * 0.1
    return params


def quantize_weights(params):
    """bf16-round the weight matrices exactly as the kernel stores them (biases,
    LN params stay f32) so the reference check isolates kernel logic from the
    deliberate bf16 weight-storage choice."""
    def q(w):
        return w.astype(jnp.bfloat16).astype(jnp.float32)
    qp = {"emb": q(params["emb"]), "fc_w": q(params["fc_w"]), "fc_b": params["fc_b"]}
    layers = []
    for (wqkv, bqkv, wo, bo, ln1g, ln1b, w1, b1, w2, b2, ln2g, ln2b) in params["layers"]:
        layers.append((q(wqkv), bqkv, q(wo), bo, ln1g, ln1b,
                       q(w1), b1, q(w2), b2, ln2g, ln2b))
    qp["layers"] = layers
    return qp


def reference_forward(src, params, pe):
    B, S = src.shape
    x = jnp.take(params["emb"], src, axis=0) * math.sqrt(D_MODEL) + pe[:S]
    for (wqkv, bqkv, wo, bo, ln1g, ln1b, w1, b1, w2, b2, ln2g, ln2b) in params["layers"]:
        qkv = x @ wqkv + bqkv
        q, k, v = jnp.split(qkv, 3, axis=-1)
        qh = q.reshape(B, S, NHEAD, HEAD_DIM).transpose(0, 2, 1, 3)
        kh = k.reshape(B, S, NHEAD, HEAD_DIM).transpose(0, 2, 1, 3)
        vh = v.reshape(B, S, NHEAD, HEAD_DIM).transpose(0, 2, 1, 3)
        s = jnp.einsum("bhqd,bhkd->bhqk", qh, kh) / math.sqrt(HEAD_DIM)
        p = jax.nn.softmax(s, axis=-1)
        a = jnp.einsum("bhqk,bhkd->bhqd", p, vh).transpose(0, 2, 1, 3).reshape(B, S, D_MODEL)
        a = a @ wo + bo
        x = _layernorm(x + a, ln1g, ln1b)
        h = jnp.maximum(x @ w1 + b1, 0.0)
        h = h @ w2 + b2
        x = _layernorm(x + h, ln2g, ln2b)
    return x @ params["fc_w"] + params["fc_b"]


# ------------------------------------------------------------------- main -----

if __name__ == "__main__":
    key = jax.random.PRNGKey(0)
    k_params, k_src = jax.random.split(key)

    params = init_params(k_params)
    pe = make_pe(max_len=64, d_model=D_MODEL)

    B, S = 2, 8
    src = jax.random.randint(k_src, (B, S), 0, VOCAB, dtype=jnp.int32)

    # One-time packing (padding / pe-tiling / bf16 casts hoisted off the forward
    # path).  b_blk=B collapses the grid to one fat (B*S, D) step — best on
    # v5e/v6e; on v7x with larger batches use b_blk = B // 2 to feed both TCs.
    prep = prepare_inputs(params, pe, seq_len=S, b_blk=B)

    out = transformer_lm_forward(src, prep)
    out = jax.block_until_ready(out)
    assert out.shape == (B, S, VOCAB), out.shape

    # Reference runs f32 math with the same bf16-rounded weights the kernel DMAs.
    ref = jax.block_until_ready(reference_forward(src, quantize_weights(params), pe))
    np.testing.assert_allclose(np.asarray(out), np.asarray(ref), rtol=5e-2, atol=5e-2)

    print("KERNEL_OK")
</pallas_src>

<mosaic_0001>
module attributes {stable_mosaic.version = 11 : i64} {
  func.func @_fused_forward_kernel(%arg0: i32, %arg1: memref<16x1xi32, #tpu.memory_space<vmem>>, %arg2: memref<16x16xf32, #tpu.memory_space<vmem>>, %arg3: memref<64x128xbf16, #tpu.memory_space<vmem>>, %arg4: memref<16x128xf32, #tpu.memory_space<vmem>>, %arg5: memref<128x768xbf16, #tpu.memory_space<vmem>>, %arg6: memref<256x128xbf16, #tpu.memory_space<vmem>>, %arg7: memref<8x384xf32, #tpu.memory_space<vmem>>, %arg8: memref<128x768xbf16, #tpu.memory_space<vmem>>, %arg9: memref<256x128xbf16, #tpu.memory_space<vmem>>, %arg10: memref<8x384xf32, #tpu.memory_space<vmem>>, %arg11: memref<128x128xbf16, #tpu.memory_space<vmem>>, %arg12: memref<1x128xf32, #tpu.memory_space<vmem>>, %arg13: memref<16x128xf32, #tpu.memory_space<vmem>>) attributes {dimension_semantics = [#tpu.dimension_semantics<parallel>], iteration_bounds = array<i64: 1>, scalar_prefetch = 0 : i64, scratch_operands = 0 : i64, tpu.core_type = #tpu.core_type<tc>, window_params = [{transform_indices = @transform_0, window_bounds = array<i64: 16, 1>}, {pipeline_mode = #tpu.pipeline_mode<synchronous>, transform_indices = @transform_1, window_bounds = array<i64: 16, 16>}, {pipeline_mode = #tpu.pipeline_mode<synchronous>, transform_indices = @transform_2, window_bounds = array<i64: 64, 128>}, {pipeline_mode = #tpu.pipeline_mode<synchronous>, transform_indices = @transform_3, window_bounds = array<i64: 16, 128>}, {pipeline_mode = #tpu.pipeline_mode<synchronous>, transform_indices = @transform_4, window_bounds = array<i64: 128, 768>}, {pipeline_mode = #tpu.pipeline_mode<synchronous>, transform_indices = @transform_5, window_bounds = array<i64: 256, 128>}, {pipeline_mode = #tpu.pipeline_mode<synchronous>, transform_indices = @transform_6, window_bounds = array<i64: 8, 384>}, {pipeline_mode = #tpu.pipeline_mode<synchronous>, transform_indices = @transform_7, window_bounds = array<i64: 128, 768>}, {pipeline_mode = #tpu.pipeline_mode<synchronous>, transform_indices = @transform_8, window_bounds = array<i64: 256, 128>}, {pipeline_mode = #tpu.pipeline_mode<synchronous>, transform_indices = @transform_9, window_bounds = array<i64: 8, 384>}, {pipeline_mode = #tpu.pipeline_mode<synchronous>, transform_indices = @transform_10, window_bounds = array<i64: 128, 128>}, {pipeline_mode = #tpu.pipeline_mode<synchronous>, transform_indices = @transform_11, window_bounds = array<i64: 1, 128>}, {transform_indices = @transform_12, window_bounds = array<i64: 16, 128>}]} {
    %0 = tpu.iota {dimensions = array<i32: 1>} : vector<16x64xi32>
    %c0 = arith.constant 0 : index
    %c0_0 = arith.constant 0 : index
    %1 = vector.load %arg1[%c0, %c0_0] : memref<16x1xi32, #tpu.memory_space<vmem>>, vector<16x1xi32>
    %2 = vector.broadcast %1 : vector<16x1xi32> to vector<16x64xi32>
    %3 = arith.cmpi eq, %0, %2 : vector<16x64xi32>
    %4 = arith.extui %3 : vector<16x64xi1> to vector<16x64xi32>
    %5 = arith.sitofp %4 : vector<16x64xi32> to vector<16x64xf32>
    %6 = arith.truncf %5 : vector<16x64xf32> to vector<16x64xbf16>
    %c0_1 = arith.constant 0 : index
    %c0_2 = arith.constant 0 : index
    %7 = vector.load %arg3[%c0_1, %c0_2] : memref<64x128xbf16, #tpu.memory_space<vmem>>, vector<64x128xbf16>
    %cst = arith.constant dense<0.000000e+00> : vector<16x128xf32>
    %8 = tpu.matmul %6, %7, %cst {dimension_numbers = #tpu.dot_dimension_numbers<[1], [0], [0], [1], [0, 0, 1, 1], [], []>} : vector<16x64xbf16>, vector<64x128xbf16>, vector<16x128xf32> -> vector<16x128xf32>
    %cst_3 = arith.constant 11.3137083 : f32
    %9 = vector.broadcast %cst_3 : f32 to vector<16x128xf32>
    %10 = arith.mulf %8, %9 : vector<16x128xf32>
    %c0_4 = arith.constant 0 : index
    %c0_5 = arith.constant 0 : index
    %11 = vector.load %arg4[%c0_4, %c0_5] : memref<16x128xf32, #tpu.memory_space<vmem>>, vector<16x128xf32>
    %12 = arith.addf %10, %11 : vector<16x128xf32>
    %c0_6 = arith.constant 0 : index
    %c0_7 = arith.constant 0 : index
    %13 = vector.load %arg2[%c0_6, %c0_7] : memref<16x16xf32, #tpu.memory_space<vmem>>, vector<16x16xf32>
    %c0_8 = arith.constant 0 : index
    %c0_9 = arith.constant 0 : index
    %14 = vector.load %arg5[%c0_8, %c0_9] : memref<128x768xbf16, #tpu.memory_space<vmem>>, vector<128x384xbf16>
    %c0_10 = arith.constant 0 : index
    %c384 = arith.constant 384 : index
    %15 = vector.load %arg5[%c0_10, %c384] : memref<128x768xbf16, #tpu.memory_space<vmem>>, vector<128x128xbf16>
    %c0_11 = arith.constant 0 : index
    %c512 = arith.constant 512 : index
    %16 = vector.load %arg5[%c0_11, %c512] : memref<128x768xbf16, #tpu.memory_space<vmem>>, vector<128x256xbf16>
    %c0_12 = arith.constant 0 : index
    %c0_13 = arith.constant 0 : index
    %17 = vector.load %arg7[%c0_12, %c0_13] : memref<8x384xf32, #tpu.memory_space<vmem>>, vector<1x384xf32>
    %c1 = arith.constant 1 : index
    %c0_14 = arith.constant 0 : index
    %18 = vector.load %arg7[%c1, %c0_14] : memref<8x384xf32, #tpu.memory_space<vmem>>, vector<1x256xf32>
    %c2 = arith.constant 2 : index
    %c0_15 = arith.constant 0 : index
    %19 = vector.load %arg7[%c2, %c0_15] : memref<8x384xf32, #tpu.memory_space<vmem>>, vector<1x128xf32>
    %c3 = arith.constant 3 : index
    %c0_16 = arith.constant 0 : index
    %20 = vector.load %arg7[%c3, %c0_16] : memref<8x384xf32, #tpu.memory_space<vmem>>, vector<1x128xf32>
    %c4 = arith.constant 4 : index
    %c0_17 = arith.constant 0 : index
    %21 = vector.load %arg7[%c4, %c0_17] : memref<8x384xf32, #tpu.memory_space<vmem>>, vector<1x128xf32>
    %c5 = arith.constant 5 : index
    %c0_18 = arith.constant 0 : index
    %22 = vector.load %arg7[%c5, %c0_18] : memref<8x384xf32, #tpu.memory_space<vmem>>, vector<1x128xf32>
    %c6 = arith.constant 6 : index
    %c0_19 = arith.constant 0 : index
    %23 = vector.load %arg7[%c6, %c0_19] : memref<8x384xf32, #tpu.memory_space<vmem>>, vector<1x128xf32>
    %c7 = arith.constant 7 : index
    %c0_20 = arith.constant 0 : index
    %24 = vector.load %arg7[%c7, %c0_20] : memref<8x384xf32, #tpu.memory_space<vmem>>, vector<1x128xf32>
    %25 = arith.truncf %12 : vector<16x128xf32> to vector<16x128xbf16>
    %cst_21 = arith.constant dense<0.000000e+00> : vector<16x384xf32>
    %26 = tpu.matmul %25, %14, %cst_21 {dimension_numbers = #tpu.dot_dimension_numbers<[1], [0], [0], [1], [0, 0, 1, 1], [], []>} : vector<16x128xbf16>, vector<128x384xbf16>, vector<16x384xf32> -> vector<16x384xf32>
    %27 = vector.broadcast %17 : vector<1x384xf32> to vector<16x384xf32>
    %28 = arith.addf %26, %27 : vector<16x384xf32>
    %29 = vector.extract_strided_slice %28 {offsets = [0, 0], sizes = [16, 128], strides = [1, 1]} : vector<16x384xf32> to vector<16x128xf32>
    %30 = vector.extract_strided_slice %28 {offsets = [0, 128], sizes = [16, 128], strides = [1, 1]} : vector<16x384xf32> to vector<16x128xf32>
    %31 = vector.extract_strided_slice %28 {offsets = [0, 256], sizes = [16, 128], strides = [1, 1]} : vector<16x384xf32> to vector<16x128xf32>
    %cst_22 = arith.constant 0.000000e+00 : f32
    %32 = vector.broadcast %cst_22 : f32 to vector<16x128xf32>
    %33 = vector.extract_strided_slice %29 {offsets = [0, 0], sizes = [16, 32], strides = [1, 1]} : vector<16x128xf32> to vector<16x32xf32>
    %34 = vector.extract_strided_slice %30 {offsets = [0, 0], sizes = [16, 32], strides = [1, 1]} : vector<16x128xf32> to vector<16x32xf32>
    %35 = vector.extract_strided_slice %31 {offsets = [0, 0], sizes = [16, 32], strides = [1, 1]} : vector<16x128xf32> to vector<16x32xf32>
    %cst_23 = arith.constant dense<0.000000e+00> : vector<16x16xf32>
    %36 = tpu.matmul %33, %34, %cst_23 {dimension_numbers = #tpu.dot_dimension_numbers<[1], [1], [0], [0], [0, 0, 1, 0], [], []>} : vector<16x32xf32>, vector<16x32xf32>, vector<16x16xf32> -> vector<16x16xf32>
    %cst_24 = arith.constant 0.176776692 : f32
    %37 = vector.broadcast %cst_24 : f32 to vector<16x16xf32>
    %38 = arith.mulf %36, %37 : vector<16x16xf32>
    %39 = arith.addf %38, %13 : vector<16x16xf32>
    %cst_25 = arith.constant dense<0xFF800000> : vector<16xf32>
    %40 = vector.multi_reduction <maximumf>, %39, %cst_25 [1] : vector<16x16xf32> to vector<16xf32>
    %41 = vector.shape_cast %40 : vector<16xf32> to vector<16x1xf32>
    %42 = vector.broadcast %41 : vector<16x1xf32> to vector<16x16xf32>
    %43 = arith.subf %39, %42 : vector<16x16xf32>
    %44 = math.exp %43 : vector<16x16xf32>
    %cst_26 = arith.constant dense<0.000000e+00> : vector<16xf32>
    %45 = vector.multi_reduction <add>, %44, %cst_26 [1] : vector<16x16xf32> to vector<16xf32>
    %46 = vector.shape_cast %45 : vector<16xf32> to vector<16x1xf32>
    %47 = tpu.reciprocal %46 {approx = true} : vector<16x1xf32> -> vector<16x1xf32>
    %48 = vector.broadcast %47 : vector<16x1xf32> to vector<16x16xf32>
    %49 = arith.mulf %44, %48 : vector<16x16xf32>
    %50 = arith.truncf %49 : vector<16x16xf32> to vector<16x16xbf16>
    %51 = arith.truncf %35 : vector<16x32xf32> to vector<16x32xbf16>
    %cst_27 = arith.constant dense<0.000000e+00> : vector<16x32xf32>
    %52 = tpu.matmul %50, %51, %cst_27 {dimension_numbers = #tpu.dot_dimension_numbers<[1], [0], [0], [1], [0, 0, 1, 1], [], []>} : vector<16x16xbf16>, vector<16x32xbf16>, vector<16x32xf32> -> vector<16x32xf32>
    %53 = arith.truncf %52 : vector<16x32xf32> to vector<16x32xbf16>
    %54 = vector.extract_strided_slice %15 {offsets = [0, 0], sizes = [32, 128], strides = [1, 1]} : vector<128x128xbf16> to vector<32x128xbf16>
    %cst_28 = arith.constant dense<0.000000e+00> : vector<16x128xf32>
    %55 = tpu.matmul %53, %54, %cst_28 {dimension_numbers = #tpu.dot_dimension_numbers<[1], [0], [0], [1], [0, 0, 1, 1], [], []>} : vector<16x32xbf16>, vector<32x128xbf16>, vector<16x128xf32> -> vector<16x128xf32>
    %56 = arith.addf %32, %55 : vector<16x128xf32>
    %57 = vector.extract_strided_slice %29 {offsets = [0, 32], sizes = [16, 32], strides = [1, 1]} : vector<16x128xf32> to vector<16x32xf32>
    %58 = vector.extract_strided_slice %30 {offsets = [0, 32], sizes = [16, 32], strides = [1, 1]} : vector<16x128xf32> to vector<16x32xf32>
    %59 = vector.extract_strided_slice %31 {offsets = [0, 32], sizes = [16, 32], strides = [1, 1]} : vector<16x128xf32> to vector<16x32xf32>
    %cst_29 = arith.constant dense<0.000000e+00> : vector<16x16xf32>
    %60 = tpu.matmul %57, %58, %cst_29 {dimension_numbers = #tpu.dot_dimension_numbers<[1], [1], [0], [0], [0, 0, 1, 0], [], []>} : vector<16x32xf32>, vector<16x32xf32>, vector<16x16xf32> -> vector<16x16xf32>
    %cst_30 = arith.constant 0.176776692 : f32
    %61 = vector.broadcast %cst_30 : f32 to vector<16x16xf32>
    %62 = arith.mulf %60, %61 : vector<16x16xf32>
    %63 = arith.addf %62, %13 : vector<16x16xf32>
    %cst_31 = arith.constant dense<0xFF800000> : vector<16xf32>
    %64 = vector.multi_reduction <maximumf>, %63, %cst_31 [1] : vector<16x16xf32> to vector<16xf32>
    %65 = vector.shape_cast %64 : vector<16xf32> to vector<16x1xf32>
    %66 = vector.broadcast %65 : vector<16x1xf32> to vector<16x16xf32>
    %67 = arith.subf %63, %66 : vector<16x16xf32>
    %68 = math.exp %67 : vector<16x16xf32>
    %cst_32 = arith.constant dense<0.000000e+00> : vector<16xf32>
    %69 = vector.multi_reduction <add>, %68, %cst_32 [1] : vector<16x16xf32> to vector<16xf32>
    %70 = vector.shape_cast %69 : vector<16xf32> to vector<16x1xf32>
    %71 = tpu.reciprocal %70 {approx = true} : vector<16x1xf32> -> vector<16x1xf32>
    %72 = vector.broadcast %71 : vector<16x1xf32> to vector<16x16xf32>
    %73 = arith.mulf %68, %72 : vector<16x16xf32>
    %74 = arith.truncf %73 : vector<16x16xf32> to vector<16x16xbf16>
    %75 = arith.truncf %59 : vector<16x32xf32> to vector<16x32xbf16>
    %cst_33 = arith.constant dense<0.000000e+00> : vector<16x32xf32>
    %76 = tpu.matmul %74, %75, %cst_33 {dimension_numbers = #tpu.dot_dimension_numbers<[1], [0], [0], [1], [0, 0, 1, 1], [], []>} : vector<16x16xbf16>, vector<16x32xbf16>, vector<16x32xf32> -> vector<16x32xf32>
    %77 = arith.truncf %76 : vector<16x32xf32> to vector<16x32xbf16>
    %78 = vector.extract_strided_slice %15 {offsets = [32, 0], sizes = [32, 128], strides = [1, 1]} : vector<128x128xbf16> to vector<32x128xbf16>
    %cst_34 = arith.constant dense<0.000000e+00> : vector<16x128xf32>
    %79 = tpu.matmul %77, %78, %cst_34 {dimension_numbers = #tpu.dot_dimension_numbers<[1], [0], [0], [1], [0, 0, 1, 1], [], []>} : vector<16x32xbf16>, vector<32x128xbf16>, vector<16x128xf32> -> vector<16x128xf32>
    %80 = arith.addf %56, %79 : vector<16x128xf32>
    %81 = vector.extract_strided_slice %29 {offsets = [0, 64], sizes = [16, 32], strides = [1, 1]} : vector<16x128xf32> to vector<16x32xf32>
    %82 = vector.extract_strided_slice %30 {offsets = [0, 64], sizes = [16, 32], strides = [1, 1]} : vector<16x128xf32> to vector<16x32xf32>
    %83 = vector.extract_strided_slice %31 {offsets = [0, 64], sizes = [16, 32], strides = [1, 1]} : vector<16x128xf32> to vector<16x32xf32>
    %cst_35 = arith.constant dense<0.000000e+00> : vector<16x16xf32>
    %84 = tpu.matmul %81, %82, %cst_35 {dimension_numbers = #tpu.dot_dimension_numbers<[1], [1], [0], [0], [0, 0, 1, 0], [], []>} : vector<16x32xf32>, vector<16x32xf32>, vector<16x16xf32> -> vector<16x16xf32>
    %cst_36 = arith.constant 0.176776692 : f32
    %85 = vector.broadcast %cst_36 : f32 to vector<16x16xf32>
    %86 = arith.mulf %84, %85 : vector<16x16xf32>
    %87 = arith.addf %86, %13 : vector<16x16xf32>
    %cst_37 = arith.constant dense<0xFF800000> : vector<16xf32>
    %88 = vector.multi_reduction <maximumf>, %87, %cst_37 [1] : vector<16x16xf32> to vector<16xf32>
    %89 = vector.shape_cast %88 : vector<16xf32> to vector<16x1xf32>
    %90 = vector.broadcast %89 : vector<16x1xf32> to vector<16x16xf32>
    %91 = arith.subf %87, %90 : vector<16x16xf32>
    %92 = math.exp %91 : vector<16x16xf32>
    %cst_38 = arith.constant dense<0.000000e+00> : vector<16xf32>
    %93 = vector.multi_reduction <add>, %92, %cst_38 [1] : vector<16x16xf32> to vector<16xf32>
    %94 = vector.shape_cast %93 : vector<16xf32> to vector<16x1xf32>
    %95 = tpu.reciprocal %94 {approx = true} : vector<16x1xf32> -> vector<16x1xf32>
    %96 = vector.broadcast %95 : vector<16x1xf32> to vector<16x16xf32>
    %97 = arith.mulf %92, %96 : vector<16x16xf32>
    %98 = arith.truncf %97 : vector<16x16xf32> to vector<16x16xbf16>
    %99 = arith.truncf %83 : vector<16x32xf32> to vector<16x32xbf16>
    %cst_39 = arith.constant dense<0.000000e+00> : vector<16x32xf32>
    %100 = tpu.matmul %98, %99, %cst_39 {dimension_numbers = #tpu.dot_dimension_numbers<[1], [0], [0], [1], [0, 0, 1, 1], [], []>} : vector<16x16xbf16>, vector<16x32xbf16>, vector<16x32xf32> -> vector<16x32xf32>
    %101 = arith.truncf %100 : vector<16x32xf32> to vector<16x32xbf16>
    %102 = vector.extract_strided_slice %15 {offsets = [64, 0], sizes = [32, 128], strides = [1, 1]} : vector<128x128xbf16> to vector<32x128xbf16>
    %cst_40 = arith.constant dense<0.000000e+00> : vector<16x128xf32>
    %103 = tpu.matmul %101, %102, %cst_40 {dimension_numbers = #tpu.dot_dimension_numbers<[1], [0], [0], [1], [0, 0, 1, 1], [], []>} : vector<16x32xbf16>, vector<32x128xbf16>, vector<16x128xf32> -> vector<16x128xf32>
    %104 = arith.addf %80, %103 : vector<16x128xf32>
    %105 = vector.extract_strided_slice %29 {offsets = [0, 96], sizes = [16, 32], strides = [1, 1]} : vector<16x128xf32> to vector<16x32xf32>
    %106 = vector.extract_strided_slice %30 {offsets = [0, 96], sizes = [16, 32], strides = [1, 1]} : vector<16x128xf32> to vector<16x32xf32>
    %107 = vector.extract_strided_slice %31 {offsets = [0, 96], sizes = [16, 32], strides = [1, 1]} : vector<16x128xf32> to vector<16x32xf32>
    %cst_41 = arith.constant dense<0.000000e+00> : vector<16x16xf32>
    %108 = tpu.matmul %105, %106, %cst_41 {dimension_numbers = #tpu.dot_dimension_numbers<[1], [1], [0], [0], [0, 0, 1, 0], [], []>} : vector<16x32xf32>, vector<16x32xf32>, vector<16x16xf32> -> vector<16x16xf32>
    %cst_42 = arith.constant 0.176776692 : f32
    %109 = vector.broadcast %cst_42 : f32 to vector<16x16xf32>
    %110 = arith.mulf %108, %109 : vector<16x16xf32>
    %111 = arith.addf %110, %13 : vector<16x16xf32>
    %cst_43 = arith.constant dense<0xFF800000> : vector<16xf32>
    %112 = vector.multi_reduction <maximumf>, %111, %cst_43 [1] : vector<16x16xf32> to vector<16xf32>
    %113 = vector.shape_cast %112 : vector<16xf32> to vector<16x1xf32>
    %114 = vector.broadcast %113 : vector<16x1xf32> to vector<16x16xf32>
    %115 = arith.subf %111, %114 : vector<16x16xf32>
    %116 = math.exp %115 : vector<16x16xf32>
    %cst_44 = arith.constant dense<0.000000e+00> : vector<16xf32>
    %117 = vector.multi_reduction <add>, %116, %cst_44 [1] : vector<16x16xf32> to vector<16xf32>
    %118 = vector.shape_cast %117 : vector<16xf32> to vector<16x1xf32>
    %119 = tpu.reciprocal %118 {approx = true} : vector<16x1xf32> -> vector<16x1xf32>
    %120 = vector.broadcast %119 : vector<16x1xf32> to vector<16x16xf32>
    %121 = arith.mulf %116, %120 : vector<16x16xf32>
    %122 = arith.truncf %121 : vector<16x16xf32> to vector<16x16xbf16>
    %123 = arith.truncf %107 : vector<16x32xf32> to vector<16x32xbf16>
    %cst_45 = arith.constant dense<0.000000e+00> : vector<16x32xf32>
    %124 = tpu.matmul %122, %123, %cst_45 {dimension_numbers = #tpu.dot_dimension_numbers<[1], [0], [0], [1], [0, 0, 1, 1], [], []>} : vector<16x16xbf16>, vector<16x32xbf16>, vector<16x32xf32> -> vector<16x32xf32>
    %125 = arith.truncf %124 : vector<16x32xf32> to vector<16x32xbf16>
    %126 = vector.extract_strided_slice %15 {offsets = [96, 0], sizes = [32, 128], strides = [1, 1]} : vector<128x128xbf16> to vector<32x128xbf16>
    %cst_46 = arith.constant dense<0.000000e+00> : vector<16x128xf32>
    %127 = tpu.matmul %125, %126, %cst_46 {dimension_numbers = #tpu.dot_dimension_numbers<[1], [0], [0], [1], [0, 0, 1, 1], [], []>} : vector<16x32xbf16>, vector<32x128xbf16>, vector<16x128xf32> -> vector<16x128xf32>
    %128 = arith.addf %104, %127 : vector<16x128xf32>
    %129 = arith.addf %12, %128 : vector<16x128xf32>
    %130 = vector.broadcast %19 : vector<1x128xf32> to vector<16x128xf32>
    %131 = arith.addf %129, %130 : vector<16x128xf32>
    %cst_47 = arith.constant dense<0.000000e+00> : vector<16xf32>
    %132 = vector.multi_reduction <add>, %131, %cst_47 [1] : vector<16x128xf32> to vector<16xf32>
    %133 = vector.shape_cast %132 : vector<16xf32> to vector<16x1xf32>
    %cst_48 = arith.constant 1.280000e+02 : f32
    %134 = vector.broadcast %cst_48 : f32 to vector<16x1xf32>
    %135 = arith.divf %133, %134 : vector<16x1xf32>
    %136 = vector.broadcast %135 : vector<16x1xf32> to vector<16x128xf32>
    %137 = arith.subf %131, %136 : vector<16x128xf32>
    %138 = arith.mulf %137, %137 : vector<16x128xf32>
    %cst_49 = arith.constant dense<0.000000e+00> : vector<16xf32>
    %139 = vector.multi_reduction <add>, %138, %cst_49 [1] : vector<16x128xf32> to vector<16xf32>
    %140 = vector.shape_cast %139 : vector<16xf32> to vector<16x1xf32>
    %cst_50 = arith.constant 1.280000e+02 : f32
    %141 = vector.broadcast %cst_50 : f32 to vector<16x1xf32>
    %142 = arith.divf %140, %141 : vector<16x1xf32>
    %143 = vector.broadcast %135 : vector<16x1xf32> to vector<16x128xf32>
    %144 = arith.subf %131, %143 : vector<16x128xf32>
    %cst_51 = arith.constant 9.99999974E-6 : f32
    %145 = vector.broadcast %cst_51 : f32 to vector<16x1xf32>
    %146 = arith.addf %142, %145 : vector<16x1xf32>
    %147 = math.rsqrt %146 : vector<16x1xf32>
    %148 = vector.broadcast %147 : vector<16x1xf32> to vector<16x128xf32>
    %149 = arith.mulf %144, %148 : vector<16x128xf32>
    %150 = vector.broadcast %20 : vector<1x128xf32> to vector<16x128xf32>
    %151 = arith.mulf %149, %150 : vector<16x128xf32>
    %152 = vector.broadcast %21 : vector<1x128xf32> to vector<16x128xf32>
    %153 = arith.addf %151, %152 : vector<16x128xf32>
    %154 = arith.truncf %153 : vector<16x128xf32> to vector<16x128xbf16>
    %cst_52 = arith.constant dense<0.000000e+00> : vector<16x256xf32>
    %155 = tpu.matmul %154, %16, %cst_52 {dimension_numbers = #tpu.dot_dimension_numbers<[1], [0], [0], [1], [0, 0, 1, 1], [], []>} : vector<16x128xbf16>, vector<128x256xbf16>, vector<16x256xf32> -> vector<16x256xf32>
    %156 = vector.broadcast %18 : vector<1x256xf32> to vector<16x256xf32>
    %157 = arith.addf %155, %156 : vector<16x256xf32>
    %cst_53 = arith.constant 0.000000e+00 : f32
    %158 = vector.broadcast %cst_53 : f32 to vector<16x256xf32>
    %159 = arith.maximumf %157, %158 : vector<16x256xf32>
    %160 = arith.truncf %159 : vector<16x256xf32> to vector<16x256xbf16>
    %c0_54 = arith.constant 0 : index
    %c0_55 = arith.constant 0 : index
    %161 = vector.load %arg6[%c0_54, %c0_55] : memref<256x128xbf16, #tpu.memory_space<vmem>>, vector<256x128xbf16>
    %cst_56 = arith.constant dense<0.000000e+00> : vector<16x128xf32>
    %162 = tpu.matmul %160, %161, %cst_56 {dimension_numbers = #tpu.dot_dimension_numbers<[1], [0], [0], [1], [0, 0, 1, 1], [], []>} : vector<16x256xbf16>, vector<256x128xbf16>, vector<16x128xf32> -> vector<16x128xf32>
    %163 = vector.broadcast %22 : vector<1x128xf32> to vector<16x128xf32>
    %164 = arith.addf %162, %163 : vector<16x128xf32>
    %165 = arith.addf %153, %164 : vector<16x128xf32>
    %cst_57 = arith.constant dense<0.000000e+00> : vector<16xf32>
    %166 = vector.multi_reduction <add>, %165, %cst_57 [1] : vector<16x128xf32> to vector<16xf32>
    %167 = vector.shape_cast %166 : vector<16xf32> to vector<16x1xf32>
    %cst_58 = arith.constant 1.280000e+02 : f32
    %168 = vector.broadcast %cst_58 : f32 to vector<16x1xf32>
    %169 = arith.divf %167, %168 : vector<16x1xf32>
    %170 = vector.broadcast %169 : vector<16x1xf32> to vector<16x128xf32>
    %171 = arith.subf %165, %170 : vector<16x128xf32>
    %172 = arith.mulf %171, %171 : vector<16x128xf32>
    %cst_59 = arith.constant dense<0.000000e+00> : vector<16xf32>
    %173 = vector.multi_reduction <add>, %172, %cst_59 [1] : vector<16x128xf32> to vector<16xf32>
    %174 = vector.shape_cast %173 : vector<16xf32> to vector<16x1xf32>
    %cst_60 = arith.constant 1.280000e+02 : f32
    %175 = vector.broadcast %cst_60 : f32 to vector<16x1xf32>
    %176 = arith.divf %174, %175 : vector<16x1xf32>
    %177 = vector.broadcast %169 : vector<16x1xf32> to vector<16x128xf32>
    %178 = arith.subf %165, %177 : vector<16x128xf32>
    %cst_61 = arith.constant 9.99999974E-6 : f32
    %179 = vector.broadcast %cst_61 : f32 to vector<16x1xf32>
    %180 = arith.addf %176, %179 : vector<16x1xf32>
    %181 = math.rsqrt %180 : vector<16x1xf32>
    %182 = vector.broadcast %181 : vector<16x1xf32> to vector<16x128xf32>
    %183 = arith.mulf %178, %182 : vector<16x128xf32>
    %184 = vector.broadcast %23 : vector<1x128xf32> to vector<16x128xf32>
    %185 = arith.mulf %183, %184 : vector<16x128xf32>
    %186 = vector.broadcast %24 : vector<1x128xf32> to vector<16x128xf32>
    %187 = arith.addf %185, %186 : vector<16x128xf32>
    %c0_62 = arith.constant 0 : index
    %c0_63 = arith.constant 0 : index
    %188 = vector.load %arg8[%c0_62, %c0_63] : memref<128x768xbf16, #tpu.memory_space<vmem>>, vector<128x384xbf16>
    %c0_64 = arith.constant 0 : index
    %c384_65 = arith.constant 384 : index
    %189 = vector.load %arg8[%c0_64, %c384_65] : memref<128x768xbf16, #tpu.memory_space<vmem>>, vector<128x128xbf16>
    %c0_66 = arith.constant 0 : index
    %c512_67 = arith.constant 512 : index
    %190 = vector.load %arg8[%c0_66, %c512_67] : memref<128x768xbf16, #tpu.memory_space<vmem>>, vector<128x256xbf16>
    %c0_68 = arith.constant 0 : index
    %c0_69 = arith.constant 0 : index
    %191 = vector.load %arg10[%c0_68, %c0_69] : memref<8x384xf32, #tpu.memory_space<vmem>>, vector<1x384xf32>
    %c1_70 = arith.constant 1 : index
    %c0_71 = arith.constant 0 : index
    %192 = vector.load %arg10[%c1_70, %c0_71] : memref<8x384xf32, #tpu.memory_space<vmem>>, vector<1x256xf32>
    %c2_72 = arith.constant 2 : index
    %c0_73 = arith.constant 0 : index
    %193 = vector.load %arg10[%c2_72, %c0_73] : memref<8x384xf32, #tpu.memory_space<vmem>>, vector<1x128xf32>
    %c3_74 = arith.constant 3 : index
    %c0_75 = arith.constant 0 : index
    %194 = vector.load %arg10[%c3_74, %c0_75] : memref<8x384xf32, #tpu.memory_space<vmem>>, vector<1x128xf32>
    %c4_76 = arith.constant 4 : index
    %c0_77 = arith.constant 0 : index
    %195 = vector.load %arg10[%c4_76, %c0_77] : memref<8x384xf32, #tpu.memory_space<vmem>>, vector<1x128xf32>
    %c5_78 = arith.constant 5 : index
    %c0_79 = arith.constant 0 : index
    %196 = vector.load %arg10[%c5_78, %c0_79] : memref<8x384xf32, #tpu.memory_space<vmem>>, vector<1x128xf32>
    %c6_80 = arith.constant 6 : index
    %c0_81 = arith.constant 0 : index
    %197 = vector.load %arg10[%c6_80, %c0_81] : memref<8x384xf32, #tpu.memory_space<vmem>>, vector<1x128xf32>
    %c7_82 = arith.constant 7 : index
    %c0_83 = arith.constant 0 : index
    %198 = vector.load %arg10[%c7_82, %c0_83] : memref<8x384xf32, #tpu.memory_space<vmem>>, vector<1x128xf32>
    %199 = arith.truncf %187 : vector<16x128xf32> to vector<16x128xbf16>
    %cst_84 = arith.constant dense<0.000000e+00> : vector<16x384xf32>
    %200 = tpu.matmul %199, %188, %cst_84 {dimension_numbers = #tpu.dot_dimension_numbers<[1], [0], [0], [1], [0, 0, 1, 1], [], []>} : vector<16x128xbf16>, vector<128x384xbf16>, vector<16x384xf32> -> vector<16x384xf32>
    %201 = vector.broadcast %191 : vector<1x384xf32> to vector<16x384xf32>
    %202 = arith.addf %200, %201 : vector<16x384xf32>
    %203 = vector.extract_strided_slice %202 {offsets = [0, 0], sizes = [16, 128], strides = [1, 1]} : vector<16x384xf32> to vector<16x128xf32>
    %204 = vector.extract_strided_slice %202 {offsets = [0, 128], sizes = [16, 128], strides = [1, 1]} : vector<16x384xf32> to vector<16x128xf32>
    %205 = vector.extract_strided_slice %202 {offsets = [0, 256], sizes = [16, 128], strides = [1, 1]} : vector<16x384xf32> to vector<16x128xf32>
    %cst_85 = arith.constant 0.000000e+00 : f32
    %206 = vector.broadcast %cst_85 : f32 to vector<16x128xf32>
    %207 = vector.extract_strided_slice %203 {offsets = [0, 0], sizes = [16, 32], strides = [1, 1]} : vector<16x128xf32> to vector<16x32xf32>
    %208 = vector.extract_strided_slice %204 {offsets = [0, 0], sizes = [16, 32], strides = [1, 1]} : vector<16x128xf32> to vector<16x32xf32>
    %209 = vector.extract_strided_slice %205 {offsets = [0, 0], sizes = [16, 32], strides = [1, 1]} : vector<16x128xf32> to vector<16x32xf32>
    %cst_86 = arith.constant dense<0.000000e+00> : vector<16x16xf32>
    %210 = tpu.matmul %207, %208, %cst_86 {dimension_numbers = #tpu.dot_dimension_numbers<[1], [1], [0], [0], [0, 0, 1, 0], [], []>} : vector<16x32xf32>, vector<16x32xf32>, vector<16x16xf32> -> vector<16x16xf32>
    %cst_87 = arith.constant 0.176776692 : f32
    %211 = vector.broadcast %cst_87 : f32 to vector<16x16xf32>
    %212 = arith.mulf %210, %211 : vector<16x16xf32>
    %213 = arith.addf %212, %13 : vector<16x16xf32>
    %cst_88 = arith.constant dense<0xFF800000> : vector<16xf32>
    %214 = vector.multi_reduction <maximumf>, %213, %cst_88 [1] : vector<16x16xf32> to vector<16xf32>
    %215 = vector.shape_cast %214 : vector<16xf32> to vector<16x1xf32>
    %216 = vector.broadcast %215 : vector<16x1xf32> to vector<16x16xf32>
    %217 = arith.subf %213, %216 : vector<16x16xf32>
    %218 = math.exp %217 : vector<16x16xf32>
    %cst_89 = arith.constant dense<0.000000e+00> : vector<16xf32>
    %219 = vector.multi_reduction <add>, %218, %cst_89 [1] : vector<16x16xf32> to vector<16xf32>
    %220 = vector.shape_cast %219 : vector<16xf32> to vector<16x1xf32>
    %221 = tpu.reciprocal %220 {approx = true} : vector<16x1xf32> -> vector<16x1xf32>
    %222 = vector.broadcast %221 : vector<16x1xf32> to vector<16x16xf32>
    %223 = arith.mulf %218, %222 : vector<16x16xf32>
    %224 = arith.truncf %223 : vector<16x16xf32> to vector<16x16xbf16>
    %225 = arith.truncf %209 : vector<16x32xf32> to vector<16x32xbf16>
    %cst_90 = arith.constant dense<0.000000e+00> : vector<16x32xf32>
    %226 = tpu.matmul %224, %225, %cst_90 {dimension_numbers = #tpu.dot_dimension_numbers<[1], [0], [0], [1], [0, 0, 1, 1], [], []>} : vector<16x16xbf16>, vector<16x32xbf16>, vector<16x32xf32> -> vector<16x32xf32>
    %227 = arith.truncf %226 : vector<16x32xf32> to vector<16x32xbf16>
    %228 = vector.extract_strided_slice %189 {offsets = [0, 0], sizes = [32, 128], strides = [1, 1]} : vector<128x128xbf16> to vector<32x128xbf16>
    %cst_91 = arith.constant dense<0.000000e+00> : vector<16x128xf32>
    %229 = tpu.matmul %227, %228, %cst_91 {dimension_numbers = #tpu.dot_dimension_numbers<[1], [0], [0], [1], [0, 0, 1, 1], [], []>} : vector<16x32xbf16>, vector<32x128xbf16>, vector<16x128xf32> -> vector<16x128xf32>
    %230 = arith.addf %206, %229 : vector<16x128xf32>
    %231 = vector.extract_strided_slice %203 {offsets = [0, 32], sizes = [16, 32], strides = [1, 1]} : vector<16x128xf32> to vector<16x32xf32>
    %232 = vector.extract_strided_slice %204 {offsets = [0, 32], sizes = [16, 32], strides = [1, 1]} : vector<16x128xf32> to vector<16x32xf32>
    %233 = vector.extract_strided_slice %205 {offsets = [0, 32], sizes = [16, 32], strides = [1, 1]} : vector<16x128xf32> to vector<16x32xf32>
    %cst_92 = arith.constant dense<0.000000e+00> : vector<16x16xf32>
    %234 = tpu.matmul %231, %232, %cst_92 {dimension_numbers = #tpu.dot_dimension_numbers<[1], [1], [0], [0], [0, 0, 1, 0], [], []>} : vector<16x32xf32>, vector<16x32xf32>, vector<16x16xf32> -> vector<16x16xf32>
    %cst_93 = arith.constant 0.176776692 : f32
    %235 = vector.broadcast %cst_93 : f32 to vector<16x16xf32>
    %236 = arith.mulf %234, %235 : vector<16x16xf32>
    %237 = arith.addf %236, %13 : vector<16x16xf32>
    %cst_94 = arith.constant dense<0xFF800000> : vector<16xf32>
    %238 = vector.multi_reduction <maximumf>, %237, %cst_94 [1] : vector<16x16xf32> to vector<16xf32>
    %239 = vector.shape_cast %238 : vector<16xf32> to vector<16x1xf32>
    %240 = vector.broadcast %239 : vector<16x1xf32> to vector<16x16xf32>
    %241 = arith.subf %237, %240 : vector<16x16xf32>
    %242 = math.exp %241 : vector<16x16xf32>
    %cst_95 = arith.constant dense<0.000000e+00> : vector<16xf32>
    %243 = vector.multi_reduction <add>, %242, %cst_95 [1] : vector<16x16xf32> to vector<16xf32>
    %244 = vector.shape_cast %243 : vector<16xf32> to vector<16x1xf32>
    %245 = tpu.reciprocal %244 {approx = true} : vector<16x1xf32> -> vector<16x1xf32>
    %246 = vector.broadcast %245 : vector<16x1xf32> to vector<16x16xf32>
    %247 = arith.mulf %242, %246 : vector<16x16xf32>
    %248 = arith.truncf %247 : vector<16x16xf32> to vector<16x16xbf16>
    %249 = arith.truncf %233 : vector<16x32xf32> to vector<16x32xbf16>
    %cst_96 = arith.constant dense<0.000000e+00> : vector<16x32xf32>
    %250 = tpu.matmul %248, %249, %cst_96 {dimension_numbers = #tpu.dot_dimension_numbers<[1], [0], [0], [1], [0, 0, 1, 1], [], []>} : vector<16x16xbf16>, vector<16x32xbf16>, vector<16x32xf32> -> vector<16x32xf32>
    %251 = arith.truncf %250 : vector<16x32xf32> to vector<16x32xbf16>
    %252 = vector.extract_strided_slice %189 {offsets = [32, 0], sizes = [32, 128], strides = [1, 1]} : vector<128x128xbf16> to vector<32x128xbf16>
    %cst_97 = arith.constant dense<0.000000e+00> : vector<16x128xf32>
    %253 = tpu.matmul %251, %252, %cst_97 {dimension_numbers = #tpu.dot_dimension_numbers<[1], [0], [0], [1], [0, 0, 1, 1], [], []>} : vector<16x32xbf16>, vector<32x128xbf16>, vector<16x128xf32> -> vector<16x128xf32>
    %254 = arith.addf %230, %253 : vector<16x128xf32>
    %255 = vector.extract_strided_slice %203 {offsets = [0, 64], sizes = [16, 32], strides = [1, 1]} : vector<16x128xf32> to vector<16x32xf32>
    %256 = vector.extract_strided_slice %204 {offsets = [0, 64], sizes = [16, 32], strides = [1, 1]} : vector<16x128xf32> to vector<16x32xf32>
    %257 = vector.extract_strided_slice %205 {offsets = [0, 64], sizes = [16, 32], strides = [1, 1]} : vector<16x128xf32> to vector<16x32xf32>
    %cst_98 = arith.constant dense<0.000000e+00> : vector<16x16xf32>
    %258 = tpu.matmul %255, %256, %cst_98 {dimension_numbers = #tpu.dot_dimension_numbers<[1], [1], [0], [0], [0, 0, 1, 0], [], []>} : vector<16x32xf32>, vector<16x32xf32>, vector<16x16xf32> -> vector<16x16xf32>
    %cst_99 = arith.constant 0.176776692 : f32
    %259 = vector.broadcast %cst_99 : f32 to vector<16x16xf32>
    %260 = arith.mulf %258, %259 : vector<16x16xf32>
    %261 = arith.addf %260, %13 : vector<16x16xf32>
    %cst_100 = arith.constant dense<0xFF800000> : vector<16xf32>
    %262 = vector.multi_reduction <maximumf>, %261, %cst_100 [1] : vector<16x16xf32> to vector<16xf32>
    %263 = vector.shape_cast %262 : vector<16xf32> to vector<16x1xf32>
    %264 = vector.broadcast %263 : vector<16x1xf32> to vector<16x16xf32>
    %265 = arith.subf %261, %264 : vector<16x16xf32>
    %266 = math.exp %265 : vector<16x16xf32>
    %cst_101 = arith.constant dense<0.000000e+00> : vector<16xf32>
    %267 = vector.multi_reduction <add>, %266, %cst_101 [1] : vector<16x16xf32> to vector<16xf32>
    %268 = vector.shape_cast %267 : vector<16xf32> to vector<16x1xf32>
    %269 = tpu.reciprocal %268 {approx = true} : vector<16x1xf32> -> vector<16x1xf32>
    %270 = vector.broadcast %269 : vector<16x1xf32> to vector<16x16xf32>
    %271 = arith.mulf %266, %270 : vector<16x16xf32>
    %272 = arith.truncf %271 : vector<16x16xf32> to vector<16x16xbf16>
    %273 = arith.truncf %257 : vector<16x32xf32> to vector<16x32xbf16>
    %cst_102 = arith.constant dense<0.000000e+00> : vector<16x32xf32>
    %274 = tpu.matmul %272, %273, %cst_102 {dimension_numbers = #tpu.dot_dimension_numbers<[1], [0], [0], [1], [0, 0, 1, 1], [], []>} : vector<16x16xbf16>, vector<16x32xbf16>, vector<16x32xf32> -> vector<16x32xf32>
    %275 = arith.truncf %274 : vector<16x32xf32> to vector<16x32xbf16>
    %276 = vector.extract_strided_slice %189 {offsets = [64, 0], sizes = [32, 128], strides = [1, 1]} : vector<128x128xbf16> to vector<32x128xbf16>
    %cst_103 = arith.constant dense<0.000000e+00> : vector<16x128xf32>
    %277 = tpu.matmul %275, %276, %cst_103 {dimension_numbers = #tpu.dot_dimension_numbers<[1], [0], [0], [1], [0, 0, 1, 1], [], []>} : vector<16x32xbf16>, vector<32x128xbf16>, vector<16x128xf32> -> vector<16x128xf32>
    %278 = arith.addf %254, %277 : vector<16x128xf32>
    %279 = vector.extract_strided_slice %203 {offsets = [0, 96], sizes = [16, 32], strides = [1, 1]} : vector<16x128xf32> to vector<16x32xf32>
    %280 = vector.extract_strided_slice %204 {offsets = [0, 96], sizes = [16, 32], strides = [1, 1]} : vector<16x128xf32> to vector<16x32xf32>
    %281 = vector.extract_strided_slice %205 {offsets = [0, 96], sizes = [16, 32], strides = [1, 1]} : vector<16x128xf32> to vector<16x32xf32>
    %cst_104 = arith.constant dense<0.000000e+00> : vector<16x16xf32>
    %282 = tpu.matmul %279, %280, %cst_104 {dimension_numbers = #tpu.dot_dimension_numbers<[1], [1], [0], [0], [0, 0, 1, 0], [], []>} : vector<16x32xf32>, vector<16x32xf32>, vector<16x16xf32> -> vector<16x16xf32>
    %cst_105 = arith.constant 0.176776692 : f32
    %283 = vector.broadcast %cst_105 : f32 to vector<16x16xf32>
    %284 = arith.mulf %282, %283 : vector<16x16xf32>
    %285 = arith.addf %284, %13 : vector<16x16xf32>
    %cst_106 = arith.constant dense<0xFF800000> : vector<16xf32>
    %286 = vector.multi_reduction <maximumf>, %285, %cst_106 [1] : vector<16x16xf32> to vector<16xf32>
    %287 = vector.shape_cast %286 : vector<16xf32> to vector<16x1xf32>
    %288 = vector.broadcast %287 : vector<16x1xf32> to vector<16x16xf32>
    %289 = arith.subf %285, %288 : vector<16x16xf32>
    %290 = math.exp %289 : vector<16x16xf32>
    %cst_107 = arith.constant dense<0.000000e+00> : vector<16xf32>
    %291 = vector.multi_reduction <add>, %290, %cst_107 [1] : vector<16x16xf32> to vector<16xf32>
    %292 = vector.shape_cast %291 : vector<16xf32> to vector<16x1xf32>
    %293 = tpu.reciprocal %292 {approx = true} : vector<16x1xf32> -> vector<16x1xf32>
    %294 = vector.broadcast %293 : vector<16x1xf32> to vector<16x16xf32>
    %295 = arith.mulf %290, %294 : vector<16x16xf32>
    %296 = arith.truncf %295 : vector<16x16xf32> to vector<16x16xbf16>
    %297 = arith.truncf %281 : vector<16x32xf32> to vector<16x32xbf16>
    %cst_108 = arith.constant dense<0.000000e+00> : vector<16x32xf32>
    %298 = tpu.matmul %296, %297, %cst_108 {dimension_numbers = #tpu.dot_dimension_numbers<[1], [0], [0], [1], [0, 0, 1, 1], [], []>} : vector<16x16xbf16>, vector<16x32xbf16>, vector<16x32xf32> -> vector<16x32xf32>
    %299 = arith.truncf %298 : vector<16x32xf32> to vector<16x32xbf16>
    %300 = vector.extract_strided_slice %189 {offsets = [96, 0], sizes = [32, 128], strides = [1, 1]} : vector<128x128xbf16> to vector<32x128xbf16>
    %cst_109 = arith.constant dense<0.000000e+00> : vector<16x128xf32>
    %301 = tpu.matmul %299, %300, %cst_109 {dimension_numbers = #tpu.dot_dimension_numbers<[1], [0], [0], [1], [0, 0, 1, 1], [], []>} : vector<16x32xbf16>, vector<32x128xbf16>, vector<16x128xf32> -> vector<16x128xf32>
    %302 = arith.addf %278, %301 : vector<16x128xf32>
    %303 = arith.addf %187, %302 : vector<16x128xf32>
    %304 = vector.broadcast %193 : vector<1x128xf32> to vector<16x128xf32>
    %305 = arith.addf %303, %304 : vector<16x128xf32>
    %cst_110 = arith.constant dense<0.000000e+00> : vector<16xf32>
    %306 = vector.multi_reduction <add>, %305, %cst_110 [1] : vector<16x128xf32> to vector<16xf32>
    %307 = vector.shape_cast %306 : vector<16xf32> to vector<16x1xf32>
    %cst_111 = arith.constant 1.280000e+02 : f32
    %308 = vector.broadcast %cst_111 : f32 to vector<16x1xf32>
    %309 = arith.divf %307, %308 : vector<16x1xf32>
    %310 = vector.broadcast %309 : vector<16x1xf32> to vector<16x128xf32>
    %311 = arith.subf %305, %310 : vector<16x128xf32>
    %312 = arith.mulf %311, %311 : vector<16x128xf32>
    %cst_112 = arith.constant dense<0.000000e+00> : vector<16xf32>
    %313 = vector.multi_reduction <add>, %312, %cst_112 [1] : vector<16x128xf32> to vector<16xf32>
    %314 = vector.shape_cast %313 : vector<16xf32> to vector<16x1xf32>
    %cst_113 = arith.constant 1.280000e+02 : f32
    %315 = vector.broadcast %cst_113 : f32 to vector<16x1xf32>
    %316 = arith.divf %314, %315 : vector<16x1xf32>
    %317 = vector.broadcast %309 : vector<16x1xf32> to vector<16x128xf32>
    %318 = arith.subf %305, %317 : vector<16x128xf32>
    %cst_114 = arith.constant 9.99999974E-6 : f32
    %319 = vector.broadcast %cst_114 : f32 to vector<16x1xf32>
    %320 = arith.addf %316, %319 : vector<16x1xf32>
    %321 = math.rsqrt %320 : vector<16x1xf32>
    %322 = vector.broadcast %321 : vector<16x1xf32> to vector<16x128xf32>
    %323 = arith.mulf %318, %322 : vector<16x128xf32>
    %324 = vector.broadcast %194 : vector<1x128xf32> to vector<16x128xf32>
    %325 = arith.mulf %323, %324 : vector<16x128xf32>
    %326 = vector.broadcast %195 : vector<1x128xf32> to vector<16x128xf32>
    %327 = arith.addf %325, %326 : vector<16x128xf32>
    %328 = arith.truncf %327 : vector<16x128xf32> to vector<16x128xbf16>
    %cst_115 = arith.constant dense<0.000000e+00> : vector<16x256xf32>
    %329 = tpu.matmul %328, %190, %cst_115 {dimension_numbers = #tpu.dot_dimension_numbers<[1], [0], [0], [1], [0, 0, 1, 1], [], []>} : vector<16x128xbf16>, vector<128x256xbf16>, vector<16x256xf32> -> vector<16x256xf32>
    %330 = vector.broadcast %192 : vector<1x256xf32> to vector<16x256xf32>
    %331 = arith.addf %329, %330 : vector<16x256xf32>
    %cst_116 = arith.constant 0.000000e+00 : f32
    %332 = vector.broadcast %cst_116 : f32 to vector<16x256xf32>
    %333 = arith.maximumf %331, %332 : vector<16x256xf32>
    %334 = arith.truncf %333 : vector<16x256xf32> to vector<16x256xbf16>
    %c0_117 = arith.constant 0 : index
    %c0_118 = arith.constant 0 : index
    %335 = vector.load %arg9[%c0_117, %c0_118] : memref<256x128xbf16, #tpu.memory_space<vmem>>, vector<256x128xbf16>
    %cst_119 = arith.constant dense<0.000000e+00> : vector<16x128xf32>
    %336 = tpu.matmul %334, %335, %cst_119 {dimension_numbers = #tpu.dot_dimension_numbers<[1], [0], [0], [1], [0, 0, 1, 1], [], []>} : vector<16x256xbf16>, vector<256x128xbf16>, vector<16x128xf32> -> vector<16x128xf32>
    %337 = vector.broadcast %196 : vector<1x128xf32> to vector<16x128xf32>
    %338 = arith.addf %336, %337 : vector<16x128xf32>
    %339 = arith.addf %327, %338 : vector<16x128xf32>
    %cst_120 = arith.constant dense<0.000000e+00> : vector<16xf32>
    %340 = vector.multi_reduction <add>, %339, %cst_120 [1] : vector<16x128xf32> to vector<16xf32>
    %341 = vector.shape_cast %340 : vector<16xf32> to vector<16x1xf32>
    %cst_121 = arith.constant 1.280000e+02 : f32
    %342 = vector.broadcast %cst_121 : f32 to vector<16x1xf32>
    %343 = arith.divf %341, %342 : vector<16x1xf32>
    %344 = vector.broadcast %343 : vector<16x1xf32> to vector<16x128xf32>
    %345 = arith.subf %339, %344 : vector<16x128xf32>
    %346 = arith.mulf %345, %345 : vector<16x128xf32>
    %cst_122 = arith.constant dense<0.000000e+00> : vector<16xf32>
    %347 = vector.multi_reduction <add>, %346, %cst_122 [1] : vector<16x128xf32> to vector<16xf32>
    %348 = vector.shape_cast %347 : vector<16xf32> to vector<16x1xf32>
    %cst_123 = arith.constant 1.280000e+02 : f32
    %349 = vector.broadcast %cst_123 : f32 to vector<16x1xf32>
    %350 = arith.divf %348, %349 : vector<16x1xf32>
    %351 = vector.broadcast %343 : vector<16x1xf32> to vector<16x128xf32>
    %352 = arith.subf %339, %351 : vector<16x128xf32>
    %cst_124 = arith.constant 9.99999974E-6 : f32
    %353 = vector.broadcast %cst_124 : f32 to vector<16x1xf32>
    %354 = arith.addf %350, %353 : vector<16x1xf32>
    %355 = math.rsqrt %354 : vector<16x1xf32>
    %356 = vector.broadcast %355 : vector<16x1xf32> to vector<16x128xf32>
    %357 = arith.mulf %352, %356 : vector<16x128xf32>
    %358 = vector.broadcast %197 : vector<1x128xf32> to vector<16x128xf32>
    %359 = arith.mulf %357, %358 : vector<16x128xf32>
    %360 = vector.broadcast %198 : vector<1x128xf32> to vector<16x128xf32>
    %361 = arith.addf %359, %360 : vector<16x128xf32>
    %362 = arith.truncf %361 : vector<16x128xf32> to vector<16x128xbf16>
    %c0_125 = arith.constant 0 : index
    %c0_126 = arith.constant 0 : index
    %363 = vector.load %arg11[%c0_125, %c0_126] : memref<128x128xbf16, #tpu.memory_space<vmem>>, vector<128x128xbf16>
    %cst_127 = arith.constant dense<0.000000e+00> : vector<16x128xf32>
    %364 = tpu.matmul %362, %363, %cst_127 {dimension_numbers = #tpu.dot_dimension_numbers<[1], [0], [0], [1], [0, 0, 1, 1], [], []>} : vector<16x128xbf16>, vector<128x128xbf16>, vector<16x128xf32> -> vector<16x128xf32>
    %c0_128 = arith.constant 0 : index
    %c0_129 = arith.constant 0 : index
    %365 = vector.load %arg12[%c0_128, %c0_129] : memref<1x128xf32, #tpu.memory_space<vmem>>, vector<1x128xf32>
    %366 = vector.broadcast %365 : vector<1x128xf32> to vector<16x128xf32>
    %367 = arith.addf %364, %366 : vector<16x128xf32>
    %c0_130 = arith.constant 0 : index
    %c0_131 = arith.constant 0 : index
    %368 = vector.load %arg13[%c0_130, %c0_131] : memref<16x128xf32, #tpu.memory_space<vmem>>, vector<16x128xf32>
    tpu.vector_store %arg13[%c0_130, %c0_131], %367 {strides = array<i32>} : memref<16x128xf32, #tpu.memory_space<vmem>>, vector<16x128xf32>,
    return
  }
  func.func @transform_0(%arg0: i32) -> (i32, i32) {
    %c0_i32 = arith.constant 0 : i32
    %c0_i32_0 = arith.constant 0 : i32
    return %arg0, %c0_i32 : i32, i32
  }
  func.func @transform_1(%arg0: i32) -> (i32, i32) {
    %c0_i32 = arith.constant 0 : i32
    %c0_i32_0 = arith.constant 0 : i32
    %c0_i32_1 = arith.constant 0 : i32
    return %c0_i32, %c0_i32_0 : i32, i32
  }
  func.func @transform_2(%arg0: i32) -> (i32, i32) {
    %c0_i32 = arith.constant 0 : i32
    %c0_i32_0 = arith.constant 0 : i32
    %c0_i32_1 = arith.constant 0 : i32
    return %c0_i32, %c0_i32_0 : i32, i32
  }
  func.func @transform_3(%arg0: i32) -> (i32, i32) {
    %c0_i32 = arith.constant 0 : i32
    %c0_i32_0 = arith.constant 0 : i32
    %c0_i32_1 = arith.constant 0 : i32
    return %c0_i32, %c0_i32_0 : i32, i32
  }
  func.func @transform_4(%arg0: i32) -> (i32, i32) {
    %c0_i32 = arith.constant 0 : i32
    %c0_i32_0 = arith.constant 0 : i32
    %c0_i32_1 = arith.constant 0 : i32
    return %c0_i32, %c0_i32_0 : i32, i32
  }
  func.func @transform_5(%arg0: i32) -> (i32, i32) {
    %c0_i32 = arith.constant 0 : i32
    %c0_i32_0 = arith.constant 0 : i32
    %c0_i32_1 = arith.constant 0 : i32
    return %c0_i32, %c0_i32_0 : i32, i32
  }
  func.func @transform_6(%arg0: i32) -> (i32, i32) {
    %c0_i32 = arith.constant 0 : i32
    %c0_i32_0 = arith.constant 0 : i32
    %c0_i32_1 = arith.constant 0 : i32
    return %c0_i32, %c0_i32_0 : i32, i32
  }
  func.func @transform_7(%arg0: i32) -> (i32, i32) {
    %c0_i32 = arith.constant 0 : i32
    %c0_i32_0 = arith.constant 0 : i32
    %c0_i32_1 = arith.constant 0 : i32
    return %c0_i32, %c0_i32_0 : i32, i32
  }
  func.func @transform_8(%arg0: i32) -> (i32, i32) {
    %c0_i32 = arith.constant 0 : i32
    %c0_i32_0 = arith.constant 0 : i32
    %c0_i32_1 = arith.constant 0 : i32
    return %c0_i32, %c0_i32_0 : i32, i32
  }
  func.func @transform_9(%arg0: i32) -> (i32, i32) {
    %c0_i32 = arith.constant 0 : i32
    %c0_i32_0 = arith.constant 0 : i32
    %c0_i32_1 = arith.constant 0 : i32
    return %c0_i32, %c0_i32_0 : i32, i32
  }
  func.func @transform_10(%arg0: i32) -> (i32, i32) {
    %c0_i32 = arith.constant 0 : i32
    %c0_i32_0 = arith.constant 0 : i32
    %c0_i32_1 = arith.constant 0 : i32
    return %c0_i32, %c0_i32_0 : i32, i32
  }
  func.func @transform_11(%arg0: i32) -> (i32, i32) {
    %c0_i32 = arith.constant 0 : i32
    %c0_i32_0 = arith.constant 0 : i32
    %c0_i32_1 = arith.constant 0 : i32
    return %c0_i32, %c0_i32_0 : i32, i32
  }
  func.func @transform_12(%arg0: i32) -> (i32, i32) {
    %c0_i32 = arith.constant 0 : i32
    %c0_i32_0 = arith.constant 0 : i32
    return %arg0, %c0_i32 : i32, i32
  }
}

</mosaic_0001>

<llo_original>
// kernel: tpu_custom_call.1
$region0: #{tpu_custom_call.1}
  #allocation0 [shape = 'u32[]', space=smem, size = 0x4, offset = 0x4, fixed_abs, tag = 'smem constant byte address 0x4 - core index']
  #allocation1 [shape = 'u32[144,128]{1,0:T(1,128)}', space=vmem, size = 0x12000, scoped, tag = 'internal scratch']
  %s0 = inlined_call_operand.vmem [shape: s32[16,1], index: 0, kind: input, shape index: {}]
  %s1 = inlined_call_operand.hbm [shape: f32[16,16], index: 1, kind: input, shape index: {}]
  %s2 = inlined_call_operand.hbm [shape: bf16[64,128], index: 2, kind: input, shape index: {}]
  %s3 = inlined_call_operand.hbm [shape: f32[16,128], index: 3, kind: input, shape index: {}]
  %s4 = inlined_call_operand.hbm [shape: bf16[128,768], index: 4, kind: input, shape index: {}]
  %s5 = inlined_call_operand.hbm [shape: bf16[256,128], index: 5, kind: input, shape index: {}]
  %s6 = inlined_call_operand.vmem [shape: f32[8,384], index: 6, kind: input, shape index: {}]
  %s7 = inlined_call_operand.hbm [shape: bf16[128,768], index: 7, kind: input, shape index: {}]
  %s8 = inlined_call_operand.hbm [shape: bf16[256,128], index: 8, kind: input, shape index: {}]
  %s9 = inlined_call_operand.hbm [shape: f32[8,384], index: 9, kind: input, shape index: {}]
  %s10 = inlined_call_operand.hbm [shape: bf16[128,128], index: 10, kind: input, shape index: {}]
  %s11 = inlined_call_operand.vmem [shape: f32[1,128], index: 11, kind: input, shape index: {}]
  %s12 = inlined_call_operand.hbm [shape: f32[16,128], index: 12, kind: output, shape index: {}]
  %s13 = sld [smem:[#allocation0]]
  $region94: #{tpu_custom_call.1} parent=0
    _
  %s15 = ssub.s32 1, %s13
  %s16 = scalar_select 0, %s15, %s13
  $region1: #{tpu_custom_call.1} parent=0
    #allocation2 [shape = 'u8[8192]{0}', space=vmem, size = 0x2000, scoped, tag = 'input window, operand 1, single buffered']
    #allocation3 [shape = 's32[1]{0}', space=sflag, size = 0x4, scoped, tag = 'scoped memory for tpu_custom_call.1']
    #allocation4 [shape = 's32[1]{0}', space=sflag, size = 0x4, scoped, tag = 'scoped memory for tpu_custom_call.1']
    #allocation5 [shape = 'u8[16384]{0}', space=vmem, size = 0x4000, scoped, tag = 'input window, operand 2, single buffered']
    #allocation6 [shape = 's32[1]{0}', space=sflag, size = 0x4, scoped, tag = 'scoped memory for tpu_custom_call.1']
    #allocation7 [shape = 'u8[8192]{0}', space=vmem, size = 0x2000, scoped, tag = 'input window, operand 3, single buffered']
    #allocation8 [shape = 'u8[196608]{0}', space=vmem, size = 0x30000, scoped, tag = 'input window, operand 4, single buffered']
    #allocation9 [shape = 's32[1]{0}', space=sflag, size = 0x4, scoped, tag = 'scoped memory for tpu_custom_call.1']
    #allocation10 [shape = 'u8[65536]{0}', space=vmem, size = 0x10000, scoped, tag = 'input window, operand 5, single buffered']
    #allocation11 [shape = 'u8[196608]{0}', space=vmem, size = 0x30000, scoped, tag = 'input window, operand 7, single buffered']
    #allocation12 [shape = 's32[1]{0}', space=sflag, size = 0x4, scoped, tag = 'scoped memory for tpu_custom_call.1']
    #allocation13 [shape = 'u8[65536]{0}', space=vmem, size = 0x10000, scoped, tag = 'input window, operand 8, single buffered']
    #allocation14 [shape = 'u8[12288]{0}', space=vmem, size = 0x3000, scoped, tag = 'input window, operand 9, single buffered']
    #allocation15 [shape = 's32[1]{0}', space=sflag, size = 0x4, scoped, tag = 'scoped memory for tpu_custom_call.1']
    #allocation16 [shape = 'u8[32768]{0}', space=vmem, size = 0x8000, scoped, tag = 'input window, operand 10, single buffered']
    #allocation17 [shape = 'u8[8192]{0}', space=vmem, size = 0x2000, scoped, tag = 'output window, operand 0, single buffered']
    %17 = vsyncpa [#allocation3], 0
    %18 = vsyncpa [#allocation6], 0
    %19 = vsyncpa [#allocation9], 0
    %20 = vsyncpa [#allocation12], 0
    %21 = vsyncpa [#allocation15], 0
    %22 = vsyncpa [#allocation4], 0
    // Predicated region
    $region2: #{tpu_custom_call.1} parent=1 // pred_check
      _
    $region3: #{tpu_custom_call.1} parent=1 // pred_check_branch
      %24 = sbr.rel (0) target = $region5
    $region4: #{tpu_custom_call.1} parent=1 // pred_region
      _
    $region5: #{tpu_custom_call.1} parent=1 // pred_fallthru
      _
    // Predicated region
    $region6: #{tpu_custom_call.1} parent=1 // pred_check
      _
    $region7: #{tpu_custom_call.1} parent=1 // pred_check_branch
      %26 = sbr.rel (0) target = $region9
    $region8: #{tpu_custom_call.1} parent=1 // pred_region
      %s28 = ssub.s32 256, 256
      %29 = vsyncadd [#allocation3], %s28
      %s30 = sshll.u32 [#allocation2], 4
      %s31 = int_to_ptr.vmem [resolvable:$true] %s30
      %36 = dma.hbm_to_vmem [thread:$0]  %s1, 256, %s31, [#allocation3], 128, 128, 8
    $region9: #{tpu_custom_call.1} parent=1 // pred_fallthru
      _
    // Predicated region
    $region10: #{tpu_custom_call.1} parent=1 // pred_check
      _
    $region11: #{tpu_custom_call.1} parent=1 // pred_check_branch
      %38 = sbr.rel (0) target = $region13
    $region12: #{tpu_custom_call.1} parent=1 // pred_region
      %s40 = ssub.s32 512, 512
      %41 = vsyncadd [#allocation6], %s40
      %s42 = sshll.u32 [#allocation5], 4
      %s43 = int_to_ptr.vmem [resolvable:$true] %s42
      %48 = dma.hbm_to_vmem [thread:$0]  %s2, 512, %s43, [#allocation6], 64, 64, 4
    $region13: #{tpu_custom_call.1} parent=1 // pred_fallthru
      _
    // Predicated region
    $region14: #{tpu_custom_call.1} parent=1 // pred_check
      _
    $region15: #{tpu_custom_call.1} parent=1 // pred_check_branch
      %50 = sbr.rel (0) target = $region17
    $region16: #{tpu_custom_call.1} parent=1 // pred_region
      %s52 = ssub.s32 256, 256
      %53 = vsyncadd [#allocation6], %s52
      %s54 = sshll.u32 [#allocation7], 4
      %s55 = int_to_ptr.vmem [resolvable:$true] %s54
      %60 = dma.hbm_to_vmem [thread:$0]  %s3, 256, %s55, [#allocation6], 128, 128, 8
    $region17: #{tpu_custom_call.1} parent=1 // pred_fallthru
      _
    // Predicated region
    $region18: #{tpu_custom_call.1} parent=1 // pred_check
      _
    $region19: #{tpu_custom_call.1} parent=1 // pred_check_branch
      %62 = sbr.rel (0) target = $region21
    $region20: #{tpu_custom_call.1} parent=1 // pred_region
      %s64 = ssub.s32 6144, 6144
      %65 = vsyncadd [#allocation9], %s64
      %s66 = sshll.u32 [#allocation8], 4
      %s67 = int_to_ptr.vmem [resolvable:$true] %s66
      %72 = dma.hbm_to_vmem [thread:$0]  %s4, 6144, %s67, [#allocation9], 384, 384, 24
    $region21: #{tpu_custom_call.1} parent=1 // pred_fallthru
      _
    // Predicated region
    $region22: #{tpu_custom_call.1} parent=1 // pred_check
      _
    $region23: #{tpu_custom_call.1} parent=1 // pred_check_branch
      %74 = sbr.rel (0) target = $region25
    $region24: #{tpu_custom_call.1} parent=1 // pred_region
      %s76 = ssub.s32 2048, 2048
      %77 = vsyncadd [#allocation9], %s76
      %s78 = sshll.u32 [#allocation10], 4
      %s79 = int_to_ptr.vmem [resolvable:$true] %s78
      %84 = dma.hbm_to_vmem [thread:$0]  %s5, 2048, %s79, [#allocation9], 64, 64, 4
    $region25: #{tpu_custom_call.1} parent=1 // pred_fallthru
      _
    // Predicated region
    $region26: #{tpu_custom_call.1} parent=1 // pred_check
      _
    $region27: #{tpu_custom_call.1} parent=1 // pred_check_branch
      %86 = sbr.rel (0) target = $region29
    $region28: #{tpu_custom_call.1} parent=1 // pred_region
      _
    $region29: #{tpu_custom_call.1} parent=1 // pred_fallthru
      _
    // Predicated region
    $region30: #{tpu_custom_call.1} parent=1 // pred_check
      _
    $region31: #{tpu_custom_call.1} parent=1 // pred_check_branch
      %88 = sbr.rel (0) target = $region33
    $region32: #{tpu_custom_call.1} parent=1 // pred_region
      %s90 = ssub.s32 6144, 6144
      %91 = vsyncadd [#allocation12], %s90
      %s92 = sshll.u32 [#allocation11], 4
      %s93 = int_to_ptr.vmem [resolvable:$true] %s92
      %98 = dma.hbm_to_vmem [thread:$0]  %s7, 6144, %s93, [#allocation12], 384, 384, 24
    $region33: #{tpu_custom_call.1} parent=1 // pred_fallthru
      _
    // Predicated region
    $region34: #{tpu_custom_call.1} parent=1 // pred_check
      _
    $region35: #{tpu_custom_call.1} parent=1 // pred_check_branch
      %100 = sbr.rel (0) target = $region37
    $region36: #{tpu_custom_call.1} parent=1 // pred_region
      %s102 = ssub.s32 2048, 2048
      %103 = vsyncadd [#allocation12], %s102
      %s104 = sshll.u32 [#allocation13], 4
      %s105 = int_to_ptr.vmem [resolvable:$true] %s104
      %110 = dma.hbm_to_vmem [thread:$0]  %s8, 2048, %s105, [#allocation12], 64, 64, 4
    $region37: #{tpu_custom_call.1} parent=1 // pred_fallthru
      _
    // Predicated region
    $region38: #{tpu_custom_call.1} parent=1 // pred_check
      _
    $region39: #{tpu_custom_call.1} parent=1 // pred_check_branch
      %112 = sbr.rel (0) target = $region41
    $region40: #{tpu_custom_call.1} parent=1 // pred_region
      %s114 = ssub.s32 384, 384
      %115 = vsyncadd [#allocation15], %s114
      %s117 = sshll.u32 [#allocation14], 4
      %s118 = int_to_ptr.vmem [resolvable:$true] %s117
      %120 = dma.hbm_to_vmem [thread:$0]  %s9, 384, %s118, [#allocation15]
    $region41: #{tpu_custom_call.1} parent=1 // pred_fallthru
      _
    // Predicated region
    $region42: #{tpu_custom_call.1} parent=1 // pred_check
      _
    $region43: #{tpu_custom_call.1} parent=1 // pred_check_branch
      %122 = sbr.rel (0) target = $region45
    $region44: #{tpu_custom_call.1} parent=1 // pred_region
      %s124 = ssub.s32 1024, 1024
      %125 = vsyncadd [#allocation15], %s124
      %s126 = sshll.u32 [#allocation16], 4
      %s127 = int_to_ptr.vmem [resolvable:$true] %s126
      %132 = dma.hbm_to_vmem [thread:$0]  %s10, 1024, %s127, [#allocation15], 64, 64, 4
    $region45: #{tpu_custom_call.1} parent=1 // pred_fallthru
      _
    // Predicated region
    $region46: #{tpu_custom_call.1} parent=1 // pred_check
      _
    $region47: #{tpu_custom_call.1} parent=1 // pred_check_branch
      %134 = sbr.rel (0) target = $region49
    $region48: #{tpu_custom_call.1} parent=1 // pred_region
      _
    $region49: #{tpu_custom_call.1} parent=1 // pred_fallthru
      _
    // Predicated region
    $region50: #{tpu_custom_call.1} parent=1 // pred_check
      _
    $region51: #{tpu_custom_call.1} parent=1 // pred_check_branch
      %136 = sbr.rel (0) target = $region53
    $region52: #{tpu_custom_call.1} parent=1 // pred_region
      %137 = dma.done [#allocation3], 256
    $region53: #{tpu_custom_call.1} parent=1 // pred_fallthru
      _
    // Predicated region
    $region54: #{tpu_custom_call.1} parent=1 // pred_check
      _
    $region55: #{tpu_custom_call.1} parent=1 // pred_check_branch
      %139 = sbr.rel (0) target = $region57
    $region56: #{tpu_custom_call.1} parent=1 // pred_region
      %140 = dma.done [#allocation6], 512
    $region57: #{tpu_custom_call.1} parent=1 // pred_fallthru
      _
    // Predicated region
    $region58: #{tpu_custom_call.1} parent=1 // pred_check
      _
    $region59: #{tpu_custom_call.1} parent=1 // pred_check_branch
      %142 = sbr.rel (0) target = $region61
    $region60: #{tpu_custom_call.1} parent=1 // pred_region
      %143 = dma.done [#allocation6], 256
    $region61: #{tpu_custom_call.1} parent=1 // pred_fallthru
      _
    // Predicated region
    $region62: #{tpu_custom_call.1} parent=1 // pred_check
      _
    $region63: #{tpu_custom_call.1} parent=1 // pred_check_branch
      %145 = sbr.rel (0) target = $region65
    $region64: #{tpu_custom_call.1} parent=1 // pred_region
      %146 = dma.done [#allocation9], 6144
    $region65: #{tpu_custom_call.1} parent=1 // pred_fallthru
      _
    // Predicated region
    $region66: #{tpu_custom_call.1} parent=1 // pred_check
      _
    $region67: #{tpu_custom_call.1} parent=1 // pred_check_branch
      %148 = sbr.rel (0) target = $region69
    $region68: #{tpu_custom_call.1} parent=1 // pred_region
      %149 = dma.done [#allocation9], 2048
    $region69: #{tpu_custom_call.1} parent=1 // pred_fallthru
      _
    // Predicated region
    $region70: #{tpu_custom_call.1} parent=1 // pred_check
      _
    $region71: #{tpu_custom_call.1} parent=1 // pred_check_branch
      %151 = sbr.rel (0) target = $region73
    $region72: #{tpu_custom_call.1} parent=1 // pred_region
      %152 = dma.done [#allocation12], 6144
    $region73: #{tpu_custom_call.1} parent=1 // pred_fallthru
      _
    // Predicated region
    $region74: #{tpu_custom_call.1} parent=1 // pred_check
      _
    $region75: #{tpu_custom_call.1} parent=1 // pred_check_branch
      %154 = sbr.rel (0) target = $region77
    $region76: #{tpu_custom_call.1} parent=1 // pred_region
      %155 = dma.done [#allocation12], 2048
    $region77: #{tpu_custom_call.1} parent=1 // pred_fallthru
      _
    // Predicated region
    $region78: #{tpu_custom_call.1} parent=1 // pred_check
      _
    $region79: #{tpu_custom_call.1} parent=1 // pred_check_branch
      %157 = sbr.rel (0) target = $region81
    $region80: #{tpu_custom_call.1} parent=1 // pred_region
      %158 = dma.done [#allocation15], 384
    $region81: #{tpu_custom_call.1} parent=1 // pred_fallthru
      _
    // Predicated region
    $region82: #{tpu_custom_call.1} parent=1 // pred_check
      _
    $region83: #{tpu_custom_call.1} parent=1 // pred_check_branch
      %160 = sbr.rel (0) target = $region85
    $region84: #{tpu_custom_call.1} parent=1 // pred_region
      %161 = dma.done [#allocation15], 1024
    $region85: #{tpu_custom_call.1} parent=1 // pred_fallthru
      _
    %v163 = vlaneseq
    %v164 = vand.u32 %v163, 127
    %v165 = vld [vmem:[%s0] sm:$0xff]
    %v166 = vld [vmem:[%s0 + $0x8] sm:$0xff]
    %167 = vset.pattern.permute.xlu0 0
    %168 = vperm.xlu0 %167, %v165
    %v169 = vpop.permute.xlu0 %168
    %170 = vset.pattern.permute.xlu0 0
    %171 = vperm.xlu0 %170, %v166
    %v172 = vpop.permute.xlu0 %171
    %vm173 = vcmp.eq.s32.totalorder %v164, %v169
    %vm174 = vcmp.eq.s32.totalorder %v164, %v172
    %v175 = vsel %vm173, 1, 0
    %v176 = vsel %vm174, 1, 0
    %v177 = vcvt.s32.f32 %v175
    %v178 = vcvt.s32.f32 %v176
    %v179 = vpack.c.bf16 %v178, %v177
    %v180 = vld [vmem:[#allocation5] sm:$0xf]
    %v181 = vld [vmem:[#allocation5 + $0x4] sm:$0xf]
    %v182 = vld [vmem:[#allocation5 + $0x8] sm:$0xf]
    %v183 = vld [vmem:[#allocation5 + $0xc] sm:$0xf]
    %v184 = vld [vmem:[#allocation5 + $0x10] sm:$0xf]
    %v185 = vld [vmem:[#allocation5 + $0x14] sm:$0xf]
    %v186 = vld [vmem:[#allocation5 + $0x18] sm:$0xf]
    %v187 = vld [vmem:[#allocation5 + $0x1c] sm:$0xf]
    %v196 = vunpack.c.l.b16 %v180
    %v197 = vunpack.c.l.b16 %v181
    %v198 = vunpack.c.l.b16 %v182
    %v199 = vunpack.c.l.b16 %v183
    %v200 = vunpack.c.l.b16 %v184
    %v201 = vunpack.c.l.b16 %v185
    %v202 = vunpack.c.l.b16 %v186
    %v203 = vunpack.c.l.b16 %v187
    %v204 = vpack.c.b16 %v197, %v196
    %v205 = vpack.c.b16 %v199, %v198
    %v206 = vpack.c.b16 %v201, %v200
    %v207 = vpack.c.b16 %v203, %v202
    %vm212 = vcmask 523264
    %v214 = vsel %vm212, %v179, 0
    %216 = vmatprep.subr.bf16.mxu0 0
    %217 = vmatpush1.bf16.msra.mxu0 0
    %218 = vmatprep.subr.bf16.mxu0 0
    %219 = vmatpush1.bf16.msra.mxu0 0
    %220 = vmatprep.subr.bf16.mxu0 0
    %221 = vmatpush1.bf16.msra.mxu0 0
    %222 = vmatprep.subr.bf16.mxu0 0
    %223 = vmatpush1.bf16.msra.mxu0 0
    %224 = vmatprep.subr.bf16.mxu0 0
    %225 = vmatpush1.bf16.msra.mxu0 %v207
    %226 = vmatprep.subr.bf16.mxu0 0
    %227 = vmatpush1.bf16.msra.mxu0 %v206
    %228 = vmatprep.subr.bf16.mxu0 0
    %229 = vmatpush1.bf16.msra.mxu0 %v205
    %230 = vmatprep.subr.bf16.mxu0 0
    %231 = vmatpush1.bf16.msra.mxu0 %v204
    %232 = vmatprep.subr.bf16.mxu0 0
    %233 = vmatpush2.bf16.msra.mxu0 0
    %234 = vmatprep.subr.bf16.mxu0 0
    %235 = vmatpush2.bf16.msra.mxu0 0
    %236 = vmatprep.subr.bf16.mxu0 0
    %237 = vmatpush2.bf16.msra.mxu0 0
    %238 = vmatprep.subr.bf16.mxu0 0
    %239 = vmatpush2.bf16.msra.mxu0 0
    %240 = vmatprep.subr.bf16.mxu0 0
    %241 = vmatpush2.bf16.msra.mxu0 0
    %242 = vmatprep.subr.bf16.mxu0 0
    %243 = vmatpush2.bf16.msra.mxu0 0
    %244 = vmatprep.subr.bf16.mxu0 0
    %245 = vmatpush2.bf16.msra.mxu0 0
    %246 = vmatprep.subr.bf16.mxu0 0
    %247 = vmatpush2.bf16.msra.mxu0 0
    %248 = vmatprep.mubr.bf16.mxu0 0
    %249 = vmatmul.mubr.bf16.gmra.mxu0 %v214
    %v250 = vpop.f32.mrf.mxu0
    %v251 = vadd.f32 0.0, %v250
    %v252 = vpop.f32.mrf.mxu0
    %v253 = vpop.f32.mrf.mxu0
    %v254 = vadd.f32 0.0, %v253
    %v255 = vpop.f32.mrf.mxu0
    %256 = vdwg.mxu0
    %v257 = vmul.f32 %v251, 11.313708
    %v258 = vmul.f32 %v254, 11.313708
    %v259 = vld [vmem:[#allocation7] sm:$0xff]
    %v260 = vld [vmem:[#allocation7 + $0x8] sm:$0xff]
    %v261 = vadd.f32 %v257, %v259
    %v262 = vadd.f32 %v258, %v260
    %v263 = vld [vmem:[#allocation2] sm:$0xff]
    %v264 = vld [vmem:[#allocation2 + $0x8] sm:$0xff]
    %v265 = vld [vmem:[#allocation8] sm:$0xff]
    %v266 = vld [vmem:[#allocation8 + $0x8] sm:$0xf]
    %v267 = vld [vmem:[#allocation8 + $0x18] sm:$0xff]
    %v268 = vld [vmem:[#allocation8 + $0x20] sm:$0xf]
    %v269 = vld [vmem:[#allocation8 + $0x30] sm:$0xff]
    %v270 = vld [vmem:[#allocation8 + $0x38] sm:$0xf]
    %v271 = vld [vmem:[#allocation8 + $0x48] sm:$0xff]
    %v272 = vld [vmem:[#allocation8 + $0x50] sm:$0xf]
    %v273 = vld [vmem:[#allocation8 + $0x60] sm:$0xff]
    %v274 = vld [vmem:[#allocation8 + $0x68] sm:$0xf]
    %v275 = vld [vmem:[#allocation8 + $0x78] sm:$0xff]
    %v276 = vld [vmem:[#allocation8 + $0x80] sm:$0xf]
    %v277 = vld [vmem:[#allocation8 + $0x90] sm:$0xff]
    %v278 = vld [vmem:[#allocation8 + $0x98] sm:$0xf]
    %v279 = vld [vmem:[#allocation8 + $0xa8] sm:$0xff]
    %v280 = vld [vmem:[#allocation8 + $0xb0] sm:$0xf]
    %v281 = vld [vmem:[#allocation8 + $0xc0] sm:$0xff]
    %v282 = vld [vmem:[#allocation8 + $0xc8] sm:$0xf]
    %v283 = vld [vmem:[#allocation8 + $0xd8] sm:$0xff]
    %v284 = vld [vmem:[#allocation8 + $0xe0] sm:$0xf]
    %v285 = vld [vmem:[#allocation8 + $0xf0] sm:$0xff]
    %v286 = vld [vmem:[#allocation8 + $0xf8] sm:$0xf]
    %v287 = vld [vmem:[#allocation8 + $0x108] sm:$0xff]
    %v288 = vld [vmem:[#allocation8 + $0x110] sm:$0xf]
    %v289 = vld [vmem:[#allocation8 + $0x120] sm:$0xff]
    %v290 = vld [vmem:[#allocation8 + $0x128] sm:$0xf]
    %v291 = vld [vmem:[#allocation8 + $0x138] sm:$0xff]
    %v292 = vld [vmem:[#allocation8 + $0x140] sm:$0xf]
    %v293 = vld [vmem:[#allocation8 + $0x150] sm:$0xff]
    %v294 = vld [vmem:[#allocation8 + $0x158] sm:$0xf]
    %v295 = vld [vmem:[#allocation8 + $0x168] sm:$0xff]
    %v296 = vld [vmem:[#allocation8 + $0x170] sm:$0xf]
    %v297 = vld [vmem:[#allocation8 + $0xc] sm:$0xf]
    %v298 = vld [vmem:[#allocation8 + $0x24] sm:$0xf]
    %v299 = vld [vmem:[#allocation8 + $0x3c] sm:$0xf]
    %v300 = vld [vmem:[#allocation8 + $0x54] sm:$0xf]
    %v301 = vld [vmem:[#allocation8 + $0x6c] sm:$0xf]
    %v302 = vld [vmem:[#allocation8 + $0x84] sm:$0xf]
    %v303 = vld [vmem:[#allocation8 + $0x9c] sm:$0xf]
    %v304 = vld [vmem:[#allocation8 + $0xb4] sm:$0xf]
    %v305 = vld [vmem:[#allocation8 + $0xcc] sm:$0xf]
    %v306 = vld [vmem:[#allocation8 + $0xe4] sm:$0xf]
    %v307 = vld [vmem:[#allocation8 + $0xfc] sm:$0xf]
    %v308 = vld [vmem:[#allocation8 + $0x114] sm:$0xf]
    %v309 = vld [vmem:[#allocation8 + $0x12c] sm:$0xf]
    %v310 = vld [vmem:[#allocation8 + $0x144] sm:$0xf]
    %v311 = vld [vmem:[#allocation8 + $0x15c] sm:$0xf]
    %v312 = vld [vmem:[#allocation8 + $0x174] sm:$0xf]
    %v313 = vld [vmem:[#allocation8 + $0x10] sm:$0xff]
    %v314 = vld [vmem:[#allocation8 + $0x28] sm:$0xff]
    %v315 = vld [vmem:[#allocation8 + $0x40] sm:$0xff]
    %v316 = vld [vmem:[#allocation8 + $0x58] sm:$0xff]
    %v317 = vld [vmem:[#allocation8 + $0x70] sm:$0xff]
    %v318 = vld [vmem:[#allocation8 + $0x88] sm:$0xff]
    %v319 = vld [vmem:[#allocation8 + $0xa0] sm:$0xff]
    %v320 = vld [vmem:[#allocation8 + $0xb8] sm:$0xff]
    %v321 = vld [vmem:[#allocation8 + $0xd0] sm:$0xff]
    %v322 = vld [vmem:[#allocation8 + $0xe8] sm:$0xff]
    %v323 = vld [vmem:[#allocation8 + $0x100] sm:$0xff]
    %v324 = vld [vmem:[#allocation8 + $0x118] sm:$0xff]
    %v325 = vld [vmem:[#allocation8 + $0x130] sm:$0xff]
    %v326 = vld [vmem:[#allocation8 + $0x148] sm:$0xff]
    %v327 = vld [vmem:[#allocation8 + $0x160] sm:$0xff]
    %v328 = vld [vmem:[#allocation8 + $0x178] sm:$0xff]
    %v329 = vld [vmem:[%s6] ss:$8 sm:$0x7]
    %s330 = scalar_lea.vmem %s6, 1
    %v331 = vld [vmem:[%s330] ss:$8 sm:$0x3]
    %v332 = vld [vmem:[%s6 + $0x2] ss:$0 sm:$0xff]
    %v333 = vld [vmem:[%s6 + $0x3] ss:$0 sm:$0xff]
    %v334 = vld [vmem:[%s6 + $0x4] ss:$0 sm:$0xff]
    %v335 = vld [vmem:[%s6 + $0x5] ss:$0 sm:$0xff]
    %v336 = vld [vmem:[%s6 + $0x6] ss:$0 sm:$0xff]
    %v337 = vld [vmem:[%s6 + $0x7] ss:$0 sm:$0xff]
    %v338 = vpack.c.bf16 %v262, %v261
    %v340 = vlaneseq
    %v341 = vshrl.u32 %v340, 7
    %v342 = vsub.s32 0, %v341
    %v343 = vrot.slane %v329, %v342
    %v344 = vlaneseq
    %v345 = vshrl.u32 %v344, 7
    %v346 = vsub.s32 1, %v345
    %v347 = vrot.slane %v329, %v346
    %v348 = vlaneseq
    %v349 = vshrl.u32 %v348, 7
    %v350 = vsub.s32 2, %v349
    %v351 = vrot.slane %v329, %v350
    %v387 = vunpack.c.l.b16 %v265
    %v388 = vunpack.c.h.b16 %v265
    %v389 = vunpack.c.l.b16 %v266
    %v390 = vunpack.c.l.b16 %v267
    %v391 = vunpack.c.h.b16 %v267
    %v392 = vunpack.c.l.b16 %v268
    %v393 = vunpack.c.l.b16 %v269
    %v394 = vunpack.c.h.b16 %v269
    %v395 = vunpack.c.l.b16 %v270
    %v396 = vunpack.c.l.b16 %v271
    %v397 = vunpack.c.h.b16 %v271
    %v398 = vunpack.c.l.b16 %v272
    %v399 = vunpack.c.l.b16 %v273
    %v400 = vunpack.c.h.b16 %v273
    %v401 = vunpack.c.l.b16 %v274
    %v402 = vunpack.c.l.b16 %v275
    %v403 = vunpack.c.h.b16 %v275
    %v404 = vunpack.c.l.b16 %v276
    %v405 = vunpack.c.l.b16 %v277
    %v406 = vunpack.c.h.b16 %v277
    %v407 = vunpack.c.l.b16 %v278
    %v408 = vunpack.c.l.b16 %v279
    %v409 = vunpack.c.h.b16 %v279
    %v410 = vunpack.c.l.b16 %v280
    %v411 = vunpack.c.l.b16 %v281
    %v412 = vunpack.c.h.b16 %v281
    %v413 = vunpack.c.l.b16 %v282
    %v414 = vunpack.c.l.b16 %v283
    %v415 = vunpack.c.h.b16 %v283
    %v416 = vunpack.c.l.b16 %v284
    %v417 = vunpack.c.l.b16 %v285
    %v418 = vunpack.c.h.b16 %v285
    %v419 = vunpack.c.l.b16 %v286
    %v420 = vunpack.c.l.b16 %v287
    %v421 = vunpack.c.h.b16 %v287
    %v422 = vunpack.c.l.b16 %v288
    %v423 = vunpack.c.l.b16 %v289
    %v424 = vunpack.c.h.b16 %v289
    %v425 = vunpack.c.l.b16 %v290
    %v426 = vunpack.c.l.b16 %v291
    %v427 = vunpack.c.h.b16 %v291
    %v428 = vunpack.c.l.b16 %v292
    %v429 = vunpack.c.l.b16 %v293
    %v430 = vunpack.c.h.b16 %v293
    %v431 = vunpack.c.l.b16 %v294
    %v432 = vunpack.c.l.b16 %v295
    %v433 = vunpack.c.h.b16 %v295
    %v434 = vunpack.c.l.b16 %v296
    %v435 = vpack.c.b16 %v390, %v387
    %v436 = vpack.c.b16 %v391, %v388
    %v437 = vpack.c.b16 %v392, %v389
    %v438 = vpack.c.b16 %v396, %v393
    %v439 = vpack.c.b16 %v397, %v394
    %v440 = vpack.c.b16 %v398, %v395
    %v441 = vpack.c.b16 %v402, %v399
    %v442 = vpack.c.b16 %v403, %v400
    %v443 = vpack.c.b16 %v404, %v401
    %v444 = vpack.c.b16 %v408, %v405
    %v445 = vpack.c.b16 %v409, %v406
    %v446 = vpack.c.b16 %v410, %v407
    %v447 = vpack.c.b16 %v414, %v411
    %v448 = vpack.c.b16 %v415, %v412
    %v449 = vpack.c.b16 %v416, %v413
    %v450 = vpack.c.b16 %v420, %v417
    %v451 = vpack.c.b16 %v421, %v418
    %v452 = vpack.c.b16 %v422, %v419
    %v453 = vpack.c.b16 %v426, %v423
    %v454 = vpack.c.b16 %v427, %v424
    %v455 = vpack.c.b16 %v428, %v425
    %v456 = vpack.c.b16 %v432, %v429
    %v457 = vpack.c.b16 %v433, %v430
    %v458 = vpack.c.b16 %v434, %v431
    %483 = vmatprep.subr.bf16.mxu0 %v457
    %484 = vmatpush1.bf16.msra.mxu0 %v456
    %485 = vmatprep.subr.bf16.mxu0 %v454
    %486 = vmatpush1.bf16.msra.mxu0 %v453
    %487 = vmatprep.subr.bf16.mxu0 %v451
    %488 = vmatpush1.bf16.msra.mxu0 %v450
    %489 = vmatprep.subr.bf16.mxu0 %v448
    %490 = vmatpush1.bf16.msra.mxu0 %v447
    %491 = vmatprep.subr.bf16.mxu0 %v445
    %492 = vmatpush1.bf16.msra.mxu0 %v444
    %493 = vmatprep.subr.bf16.mxu0 %v442
    %494 = vmatpush1.bf16.msra.mxu0 %v441
    %495 = vmatprep.subr.bf16.mxu0 %v439
    %496 = vmatpush1.bf16.msra.mxu0 %v438
    %497 = vmatprep.subr.bf16.mxu0 %v436
    %498 = vmatpush1.bf16.msra.mxu0 %v435
    %499 = vmatprep.subr.bf16.mxu0 0
    %500 = vmatpush2.bf16.msra.mxu0 0
    %501 = vmatprep.subr.bf16.mxu0 0
    %502 = vmatpush2.bf16.msra.mxu0 0
    %503 = vmatprep.subr.bf16.mxu0 0
    %504 = vmatpush2.bf16.msra.mxu0 0
    %505 = vmatprep.subr.bf16.mxu0 0
    %506 = vmatpush2.bf16.msra.mxu0 0
    %507 = vmatprep.subr.bf16.mxu0 0
    %508 = vmatpush2.bf16.msra.mxu0 0
    %509 = vmatprep.subr.bf16.mxu0 0
    %510 = vmatpush2.bf16.msra.mxu0 0
    %511 = vmatprep.subr.bf16.mxu0 0
    %512 = vmatpush2.bf16.msra.mxu0 0
    %513 = vmatprep.subr.bf16.mxu0 0
    %514 = vmatpush2.bf16.msra.mxu0 0
    %515 = vmatprep.mubr.bf16.mxu0 0
    %516 = vmatmul.mubr.bf16.gmra.mxu0 %v338
    %v517 = vpop.f32.mrf.mxu0
    %v518 = vadd.f32 %v343, %v517
    %v519 = vpop.f32.mrf.mxu0
    %v520 = vadd.f32 %v347, %v519
    %v521 = vpop.f32.mrf.mxu0
    %v522 = vadd.f32 %v343, %v521
    %v523 = vpop.f32.mrf.mxu0
    %v524 = vadd.f32 %v347, %v523
    %525 = vdwg.mxu0
    %526 = vmatprep.subr.bf16.mxu0 0
    %527 = vmatpush1.bf16.msra.mxu0 %v458
    %528 = vmatprep.subr.bf16.mxu0 0
    %529 = vmatpush1.bf16.msra.mxu0 %v455
    %530 = vmatprep.subr.bf16.mxu0 0
    %531 = vmatpush1.bf16.msra.mxu0 %v452
    %532 = vmatprep.subr.bf16.mxu0 0
    %533 = vmatpush1.bf16.msra.mxu0 %v449
    %534 = vmatprep.subr.bf16.mxu0 0
    %535 = vmatpush1.bf16.msra.mxu0 %v446
    %536 = vmatprep.subr.bf16.mxu0 0
    %537 = vmatpush1.bf16.msra.mxu0 %v443
    %538 = vmatprep.subr.bf16.mxu0 0
    %539 = vmatpush1.bf16.msra.mxu0 %v440
    %540 = vmatprep.subr.bf16.mxu0 0
    %541 = vmatpush1.bf16.msra.mxu0 %v437
    %542 = vmatprep.subr.bf16.mxu0 0
    %543 = vmatpush2.bf16.msra.mxu0 0
    %544 = vmatprep.subr.bf16.mxu0 0
    %545 = vmatpush2.bf16.msra.mxu0 0
    %546 = vmatprep.subr.bf16.mxu0 0
    %547 = vmatpush2.bf16.msra.mxu0 0
    %548 = vmatprep.subr.bf16.mxu0 0
    %549 = vmatpush2.bf16.msra.mxu0 0
    %550 = vmatprep.subr.bf16.mxu0 0
    %551 = vmatpush2.bf16.msra.mxu0 0
    %552 = vmatprep.subr.bf16.mxu0 0
    %553 = vmatpush2.bf16.msra.mxu0 0
    %554 = vmatprep.subr.bf16.mxu0 0
    %555 = vmatpush2.bf16.msra.mxu0 0
    %556 = vmatprep.subr.bf16.mxu0 0
    %557 = vmatpush2.bf16.msra.mxu0 0
    %558 = vmatprep.mubr.bf16.mxu0 0
    %559 = vmatmul.mubr.bf16.gmra.mxu0 %v338
    %v560 = vpop.f32.mrf.mxu0
    %v561 = vadd.f32 %v351, %v560
    %v562 = vpop.f32.mrf.mxu0
    %v563 = vpop.f32.mrf.mxu0
    %v564 = vadd.f32 %v351, %v563
    %v565 = vpop.f32.mrf.mxu0
    %566 = vdwg.mxu0
    %vm567 = vcmask 261120
    %v569 = vsel %vm567, %v518, 0
    %v572 = vsel %vm567, %v522, 0
    %v575 = vsel %vm567, %v520, 0
    %v578 = vsel %vm567, %v524, 0
    %580 = vmatprep.subr.mxu0 0.0
    %581 = vmatpush1.xpose.msra.mxu0 0.0
    %582 = vmatprep.subr.mxu0 0.0
    %583 = vmatpush1.xpose.msra.mxu0 0.0
    %584 = vmatprep.subr.mxu0 0.0
    %585 = vmatpush1.xpose.msra.mxu0 0.0
    %586 = vmatprep.subr.mxu0 0.0
    %587 = vmatpush1.xpose.msra.mxu0 0.0
    %588 = vmatprep.subr.mxu0 0.0
    %589 = vmatpush1.xpose.msra.mxu0 0.0
    %590 = vmatprep.subr.mxu0 0.0
    %591 = vmatpush1.xpose.msra.mxu0 0.0
    %592 = vmatprep.subr.mxu0 0.0
    %593 = vmatpush1.xpose.msra.mxu0 0.0
    %594 = vmatprep.subr.mxu0 0.0
    %595 = vmatpush1.xpose.msra.mxu0 0.0
    %596 = vmatprep.subr.mxu0 0.0
    %597 = vmatpush1.xpose.msra.mxu0 0.0
    %598 = vmatprep.subr.mxu0 0.0
    %599 = vmatpush1.xpose.msra.mxu0 0.0
    %600 = vmatprep.subr.mxu0 0.0
    %601 = vmatpush1.xpose.msra.mxu0 0.0
    %602 = vmatprep.subr.mxu0 0.0
    %603 = vmatpush1.xpose.msra.mxu0 0.0
    %604 = vmatprep.subr.mxu0 0.0
    %605 = vmatpush1.xpose.msra.mxu0 0.0
    %606 = vmatprep.subr.mxu0 0.0
    %607 = vmatpush1.xpose.msra.mxu0 0.0
    %608 = vmatprep.subr.mxu0 0.0
    %609 = vmatpush1.xpose.msra.mxu0 %v578
    %610 = vmatprep.subr.mxu0 0.0
    %611 = vmatpush1.xpose.msra.mxu0 %v575
    %612 = vmatprep.subr.mxu0 0.0
    %613 = vmatpush2.xpose.msra.mxu0 0.0
    %614 = vmatprep.subr.mxu0 0.0
    %615 = vmatpush2.xpose.msra.mxu0 0.0
    %616 = vmatprep.subr.mxu0 0.0
    %617 = vmatpush2.xpose.msra.mxu0 0.0
    %618 = vmatprep.subr.mxu0 0.0
    %619 = vmatpush2.xpose.msra.mxu0 0.0
    %620 = vmatprep.subr.mxu0 0.0
    %621 = vmatpush2.xpose.msra.mxu0 0.0
    %622 = vmatprep.subr.mxu0 0.0
    %623 = vmatpush2.xpose.msra.mxu0 0.0
    %624 = vmatprep.subr.mxu0 0.0
    %625 = vmatpush2.xpose.msra.mxu0 0.0
    %626 = vmatprep.subr.mxu0 0.0
    %627 = vmatpush2.xpose.msra.mxu0 0.0
    %628 = vmatprep.subr.mxu0 0.0
    %629 = vmatpush2.xpose.msra.mxu0 0.0
    %630 = vmatprep.subr.mxu0 0.0
    %631 = vmatpush2.xpose.msra.mxu0 0.0
    %632 = vmatprep.subr.mxu0 0.0
    %633 = vmatpush2.xpose.msra.mxu0 0.0
    %634 = vmatprep.subr.mxu0 0.0
    %635 = vmatpush2.xpose.msra.mxu0 0.0
    %636 = vmatprep.subr.mxu0 0.0
    %637 = vmatpush2.xpose.msra.mxu0 0.0
    %638 = vmatprep.subr.mxu0 0.0
    %639 = vmatpush2.xpose.msra.mxu0 0.0
    %640 = vmatprep.subr.mxu0 0.0
    %641 = vmatpush2.xpose.msra.mxu0 0.0
    %642 = vmatprep.subr.mxu0 0.0
    %643 = vmatpush2.xpose.msra.mxu0 0.0
    %644 = vmatprep.mubr.f32.mxu0 0.0
    %645 = vmatmul.mubr.f32.gmra.mxu0 %v569
    %v646 = vpop.f32.mrf.mxu0
    %v647 = vadd.f32 0.0, %v646
    %v648 = vpop.f32.mrf.mxu0
    %649 = vmatprep.mubr.f32.mxu0 0.0
    %650 = vmatmul.mubr.f32.gmra.mxu0 %v572
    %v651 = vpop.f32.mrf.mxu0
    %v652 = vadd.f32 0.0, %v651
    %v653 = vpop.f32.mrf.mxu0
    %654 = vdwg.mxu0
    %v655 = vmul.f32 %v647, 0.17677669
    %v656 = vmul.f32 %v652, 0.17677669
    %v657 = vadd.f32 %v655, %v263
    %v658 = vadd.f32 %v656, %v264
    %vm659 = vcmask 130048
    %v660 = vsel %vm659, %v657, -inf
    %661 = vmax.xlane.f32.xlu0 %v660
    %v662 = vpop.xlane.xlu0 %661
    %v663 = vsel %vm659, %v658, -inf
    %664 = vmax.xlane.f32.xlu0 %v663
    %v665 = vpop.xlane.xlu0 %664
    %v666 = vsub.f32 %v657, %v662
    %v667 = vsub.f32 %v658, %v665
    %v668 = vmul.f32 %v666, 1.442695
    %v669 = vpow.pop %v668
    %v670 = vmul.f32 %v667, 1.442695
    %v671 = vpow.pop %v670
    %v672 = vsel %vm659, %v669, 0.0
    %673 = vadd.xlane.f32.xlu0 %v672
    %v674 = vpop.xlane.xlu0 %673
    %v675 = vsel %vm659, %v671, 0.0
    %676 = vadd.xlane.f32.xlu0 %v675
    %v677 = vpop.xlane.xlu0 %676
    %v678 = vrcp.pop %v674
    %v679 = vrcp.pop %v677
    %v680 = vmul.f32 %v669, %v678
    %v681 = vmul.f32 %v671, %v679
    %v682 = vpack.c.bf16 %v681, %v680
    %v683 = vpack.c.bf16 %v564, %v561
    %v685 = vsel %vm659, %v682, 0
    %687 = vmatprep.subr.bf16.mxu0 0
    %688 = vmatpush1.bf16.msra.mxu0 0
    %689 = vmatprep.subr.bf16.mxu0 0
    %690 = vmatpush1.bf16.msra.mxu0 0
    %691 = vmatprep.subr.bf16.mxu0 0
    %692 = vmatpush1.bf16.msra.mxu0 0
    %693 = vmatprep.subr.bf16.mxu0 0
    %694 = vmatpush1.bf16.msra.mxu0 0
    %695 = vmatprep.subr.bf16.mxu0 0
    %696 = vmatpush1.bf16.msra.mxu0 0
    %697 = vmatprep.subr.bf16.mxu0 0
    %698 = vmatpush1.bf16.msra.mxu0 0
    %699 = vmatprep.subr.bf16.mxu0 0
    %700 = vmatpush1.bf16.msra.mxu0 0
    %701 = vmatprep.subr.bf16.mxu0 0
    %702 = vmatpush1.bf16.msra.mxu0 %v683
    %703 = vmatprep.subr.bf16.mxu0 0
    %704 = vmatpush2.bf16.msra.mxu0 0
    %705 = vmatprep.subr.bf16.mxu0 0
    %706 = vmatpush2.bf16.msra.mxu0 0
    %707 = vmatprep.subr.bf16.mxu0 0
    %708 = vmatpush2.bf16.msra.mxu0 0
    %709 = vmatprep.subr.bf16.mxu0 0
    %710 = vmatpush2.bf16.msra.mxu0 0
    %711 = vmatprep.subr.bf16.mxu0 0
    %712 = vmatpush2.bf16.msra.mxu0 0
    %713 = vmatprep.subr.bf16.mxu0 0
    %714 = vmatpush2.bf16.msra.mxu0 0
    %715 = vmatprep.subr.bf16.mxu0 0
    %716 = vmatpush2.bf16.msra.mxu0 0
    %717 = vmatprep.subr.bf16.mxu0 0
    %718 = vmatpush2.bf16.msra.mxu0 0
    %719 = vmatprep.mubr.bf16.mxu0 0
    %720 = vmatmul.mubr.bf16.gmra.mxu0 %v685
    %v721 = vpop.f32.mrf.mxu0
    %v722 = vadd.f32 0.0, %v721
    %v723 = vpop.f32.mrf.mxu0
    %v724 = vpop.f32.mrf.mxu0
    %v725 = vadd.f32 0.0, %v724
    %v726 = vpop.f32.mrf.mxu0
    %727 = vdwg.mxu0
    %v728 = vpack.c.bf16 %v725, %v722
    %729 = vrot.lane.b32.xlu0 %v518, 96
    %v730 = vpop.permute.xlu0 %729
    %731 = vrot.lane.b32.xlu0 %v522, 96
    %v732 = vpop.permute.xlu0 %731
    %733 = vrot.lane.b32.xlu0 %v520, 96
    %v734 = vpop.permute.xlu0 %733
    %735 = vrot.lane.b32.xlu0 %v524, 96
    %v736 = vpop.permute.xlu0 %735
    %v737 = vsel %vm567, %v730, 0
    %v739 = vsel %vm567, %v732, 0
    %v741 = vsel %vm567, %v734, 0
    %v743 = vsel %vm567, %v736, 0
    %745 = vmatprep.subr.mxu0 0.0
    %746 = vmatpush1.xpose.msra.mxu0 0.0
    %747 = vmatprep.subr.mxu0 0.0
    %748 = vmatpush1.xpose.msra.mxu0 0.0
    %749 = vmatprep.subr.mxu0 0.0
    %750 = vmatpush1.xpose.msra.mxu0 0.0
    %751 = vmatprep.subr.mxu0 0.0
    %752 = vmatpush1.xpose.msra.mxu0 0.0
    %753 = vmatprep.subr.mxu0 0.0
    %754 = vmatpush1.xpose.msra.mxu0 0.0
    %755 = vmatprep.subr.mxu0 0.0
    %756 = vmatpush1.xpose.msra.mxu0 0.0
    %757 = vmatprep.subr.mxu0 0.0
    %758 = vmatpush1.xpose.msra.mxu0 0.0
    %759 = vmatprep.subr.mxu0 0.0
    %760 = vmatpush1.xpose.msra.mxu0 0.0
    %761 = vmatprep.subr.mxu0 0.0
    %762 = vmatpush1.xpose.msra.mxu0 0.0
    %763 = vmatprep.subr.mxu0 0.0
    %764 = vmatpush1.xpose.msra.mxu0 0.0
    %765 = vmatprep.subr.mxu0 0.0
    %766 = vmatpush1.xpose.msra.mxu0 0.0
    %767 = vmatprep.subr.mxu0 0.0
    %768 = vmatpush1.xpose.msra.mxu0 0.0
    %769 = vmatprep.subr.mxu0 0.0
    %770 = vmatpush1.xpose.msra.mxu0 0.0
    %771 = vmatprep.subr.mxu0 0.0
    %772 = vmatpush1.xpose.msra.mxu0 0.0
    %773 = vmatprep.subr.mxu0 0.0
    %774 = vmatpush1.xpose.msra.mxu0 %v743
    %775 = vmatprep.subr.mxu0 0.0
    %776 = vmatpush1.xpose.msra.mxu0 %v741
    %777 = vmatprep.subr.mxu0 0.0
    %778 = vmatpush2.xpose.msra.mxu0 0.0
    %779 = vmatprep.subr.mxu0 0.0
    %780 = vmatpush2.xpose.msra.mxu0 0.0
    %781 = vmatprep.subr.mxu0 0.0
    %782 = vmatpush2.xpose.msra.mxu0 0.0
    %783 = vmatprep.subr.mxu0 0.0
    %784 = vmatpush2.xpose.msra.mxu0 0.0
    %785 = vmatprep.subr.mxu0 0.0
    %786 = vmatpush2.xpose.msra.mxu0 0.0
    %787 = vmatprep.subr.mxu0 0.0
    %788 = vmatpush2.xpose.msra.mxu0 0.0
    %789 = vmatprep.subr.mxu0 0.0
    %790 = vmatpush2.xpose.msra.mxu0 0.0
    %791 = vmatprep.subr.mxu0 0.0
    %792 = vmatpush2.xpose.msra.mxu0 0.0
    %793 = vmatprep.subr.mxu0 0.0
    %794 = vmatpush2.xpose.msra.mxu0 0.0
    %795 = vmatprep.subr.mxu0 0.0
    %796 = vmatpush2.xpose.msra.mxu0 0.0
    %797 = vmatprep.subr.mxu0 0.0
    %798 = vmatpush2.xpose.msra.mxu0 0.0
    %799 = vmatprep.subr.mxu0 0.0
    %800 = vmatpush2.xpose.msra.mxu0 0.0
    %801 = vmatprep.subr.mxu0 0.0
    %802 = vmatpush2.xpose.msra.mxu0 0.0
    %803 = vmatprep.subr.mxu0 0.0
    %804 = vmatpush2.xpose.msra.mxu0 0.0
    %805 = vmatprep.subr.mxu0 0.0
    %806 = vmatpush2.xpose.msra.mxu0 0.0
    %807 = vmatprep.subr.mxu0 0.0
    %808 = vmatpush2.xpose.msra.mxu0 0.0
    %809 = vmatprep.mubr.f32.mxu0 0.0
    %810 = vmatmul.mubr.f32.gmra.mxu0 %v737
    %v811 = vpop.f32.mrf.mxu0
    %v812 = vadd.f32 0.0, %v811
    %v813 = vpop.f32.mrf.mxu0
    %814 = vmatprep.mubr.f32.mxu0 0.0
    %815 = vmatmul.mubr.f32.gmra.mxu0 %v739
    %v816 = vpop.f32.mrf.mxu0
    %v817 = vadd.f32 0.0, %v816
    %v818 = vpop.f32.mrf.mxu0
    %819 = vdwg.mxu0
    %v820 = vmul.f32 %v812, 0.17677669
    %v821 = vmul.f32 %v817, 0.17677669
    %v822 = vadd.f32 %v820, %v263
    %v823 = vadd.f32 %v821, %v264
    %v824 = vsel %vm659, %v822, -inf
    %825 = vmax.xlane.f32.xlu0 %v824
    %v826 = vpop.xlane.xlu0 %825
    %v827 = vsel %vm659, %v823, -inf
    %828 = vmax.xlane.f32.xlu0 %v827
    %v829 = vpop.xlane.xlu0 %828
    %v830 = vsub.f32 %v822, %v826
    %v831 = vsub.f32 %v823, %v829
    %v832 = vmul.f32 %v830, 1.442695
    %v833 = vpow.pop %v832
    %v834 = vmul.f32 %v831, 1.442695
    %v835 = vpow.pop %v834
    %v836 = vsel %vm659, %v833, 0.0
    %837 = vadd.xlane.f32.xlu0 %v836
    %v838 = vpop.xlane.xlu0 %837
    %v839 = vsel %vm659, %v835, 0.0
    %840 = vadd.xlane.f32.xlu0 %v839
    %v841 = vpop.xlane.xlu0 %840
    %v842 = vrcp.pop %v838
    %v843 = vrcp.pop %v841
    %v844 = vmul.f32 %v833, %v842
    %v845 = vmul.f32 %v835, %v843
    %v846 = vpack.c.bf16 %v845, %v844
    %848 = vrot.lane.b32.xlu0 %v683, 96
    %v849 = vpop.permute.xlu0 %848
    %v852 = vsel %vm659, %v846, 0
    %854 = vmatprep.subr.bf16.mxu0 0
    %855 = vmatpush1.bf16.msra.mxu0 0
    %856 = vmatprep.subr.bf16.mxu0 0
    %857 = vmatpush1.bf16.msra.mxu0 0
    %858 = vmatprep.subr.bf16.mxu0 0
    %859 = vmatpush1.bf16.msra.mxu0 0
    %860 = vmatprep.subr.bf16.mxu0 0
    %861 = vmatpush1.bf16.msra.mxu0 0
    %862 = vmatprep.subr.bf16.mxu0 0
    %863 = vmatpush1.bf16.msra.mxu0 0
    %864 = vmatprep.subr.bf16.mxu0 0
    %865 = vmatpush1.bf16.msra.mxu0 0
    %866 = vmatprep.subr.bf16.mxu0 0
    %867 = vmatpush1.bf16.msra.mxu0 0
    %868 = vmatprep.subr.bf16.mxu0 0
    %869 = vmatpush1.bf16.msra.mxu0 %v849
    %870 = vmatprep.subr.bf16.mxu0 0
    %871 = vmatpush2.bf16.msra.mxu0 0
    %872 = vmatprep.subr.bf16.mxu0 0
    %873 = vmatpush2.bf16.msra.mxu0 0
    %874 = vmatprep.subr.bf16.mxu0 0
    %875 = vmatpush2.bf16.msra.mxu0 0
    %876 = vmatprep.subr.bf16.mxu0 0
    %877 = vmatpush2.bf16.msra.mxu0 0
    %878 = vmatprep.subr.bf16.mxu0 0
    %879 = vmatpush2.bf16.msra.mxu0 0
    %880 = vmatprep.subr.bf16.mxu0 0
    %881 = vmatpush2.bf16.msra.mxu0 0
    %882 = vmatprep.subr.bf16.mxu0 0
    %883 = vmatpush2.bf16.msra.mxu0 0
    %884 = vmatprep.subr.bf16.mxu0 0
    %885 = vmatpush2.bf16.msra.mxu0 0
    %886 = vmatprep.mubr.bf16.mxu0 0
    %887 = vmatmul.mubr.bf16.gmra.mxu0 %v852
    %v888 = vpop.f32.mrf.mxu0
    %v889 = vadd.f32 0.0, %v888
    %v890 = vpop.f32.mrf.mxu0
    %v891 = vpop.f32.mrf.mxu0
    %v892 = vadd.f32 0.0, %v891
    %v893 = vpop.f32.mrf.mxu0
    %894 = vdwg.mxu0
    %v895 = vpack.c.bf16 %v892, %v889
    %v900 = vunpack.c.l.b16 %v301
    %v901 = vunpack.c.l.b16 %v302
    %v902 = vunpack.c.l.b16 %v303
    %v903 = vunpack.c.l.b16 %v304
    %v904 = vpack.c.b16 %v901, %v900
    %v905 = vpack.c.b16 %v903, %v902
    %v909 = vsel %vm567, %v895, 0
    %911 = vmatprep.subr.bf16.mxu0 0
    %912 = vmatpush1.bf16.msra.mxu0 0
    %913 = vmatprep.subr.bf16.mxu0 0
    %914 = vmatpush1.bf16.msra.mxu0 0
    %915 = vmatprep.subr.bf16.mxu0 0
    %916 = vmatpush1.bf16.msra.mxu0 0
    %917 = vmatprep.subr.bf16.mxu0 0
    %918 = vmatpush1.bf16.msra.mxu0 0
    %919 = vmatprep.subr.bf16.mxu0 0
    %920 = vmatpush1.bf16.msra.mxu0 0
    %921 = vmatprep.subr.bf16.mxu0 0
    %922 = vmatpush1.bf16.msra.mxu0 0
    %923 = vmatprep.subr.bf16.mxu0 0
    %924 = vmatpush1.bf16.msra.mxu0 %v905
    %925 = vmatprep.subr.bf16.mxu0 0
    %926 = vmatpush1.bf16.msra.mxu0 %v904
    %927 = vmatprep.subr.bf16.mxu0 0
    %928 = vmatpush2.bf16.msra.mxu0 0
    %929 = vmatprep.subr.bf16.mxu0 0
    %930 = vmatpush2.bf16.msra.mxu0 0
    %931 = vmatprep.subr.bf16.mxu0 0
    %932 = vmatpush2.bf16.msra.mxu0 0
    %933 = vmatprep.subr.bf16.mxu0 0
    %934 = vmatpush2.bf16.msra.mxu0 0
    %935 = vmatprep.subr.bf16.mxu0 0
    %936 = vmatpush2.bf16.msra.mxu0 0
    %937 = vmatprep.subr.bf16.mxu0 0
    %938 = vmatpush2.bf16.msra.mxu0 0
    %939 = vmatprep.subr.bf16.mxu0 0
    %940 = vmatpush2.bf16.msra.mxu0 0
    %941 = vmatprep.subr.bf16.mxu0 0
    %942 = vmatpush2.bf16.msra.mxu0 0
    %943 = vmatprep.mubr.bf16.mxu0 0
    %944 = vmatmul.mubr.bf16.gmra.mxu0 %v909
    %v945 = vpop.f32.mrf.mxu0
    %v946 = vadd.f32 0.0, %v945
    %v947 = vpop.f32.mrf.mxu0
    %v948 = vpop.f32.mrf.mxu0
    %v949 = vadd.f32 0.0, %v948
    %v950 = vpop.f32.mrf.mxu0
    %951 = vdwg.mxu0
    %v956 = vunpack.c.l.b16 %v297
    %v957 = vunpack.c.l.b16 %v298
    %v958 = vunpack.c.l.b16 %v299
    %v959 = vunpack.c.l.b16 %v300
    %v960 = vpack.c.b16 %v957, %v956
    %v961 = vpack.c.b16 %v959, %v958
    %v965 = vsel %vm567, %v728, 0
    %967 = vmatprep.subr.bf16.mxu0 0
    %968 = vmatpush1.bf16.msra.mxu0 0
    %969 = vmatprep.subr.bf16.mxu0 0
    %970 = vmatpush1.bf16.msra.mxu0 0
    %971 = vmatprep.subr.bf16.mxu0 0
    %972 = vmatpush1.bf16.msra.mxu0 0
    %973 = vmatprep.subr.bf16.mxu0 0
    %974 = vmatpush1.bf16.msra.mxu0 0
    %975 = vmatprep.subr.bf16.mxu0 0
    %976 = vmatpush1.bf16.msra.mxu0 0
    %977 = vmatprep.subr.bf16.mxu0 0
    %978 = vmatpush1.bf16.msra.mxu0 0
    %979 = vmatprep.subr.bf16.mxu0 0
    %980 = vmatpush1.bf16.msra.mxu0 %v961
    %981 = vmatprep.subr.bf16.mxu0 0
    %982 = vmatpush1.bf16.msra.mxu0 %v960
    %983 = vmatprep.subr.bf16.mxu0 0
    %984 = vmatpush2.bf16.msra.mxu0 0
    %985 = vmatprep.subr.bf16.mxu0 0
    %986 = vmatpush2.bf16.msra.mxu0 0
    %987 = vmatprep.subr.bf16.mxu0 0
    %988 = vmatpush2.bf16.msra.mxu0 0
    %989 = vmatprep.subr.bf16.mxu0 0
    %990 = vmatpush2.bf16.msra.mxu0 0
    %991 = vmatprep.subr.bf16.mxu0 0
    %992 = vmatpush2.bf16.msra.mxu0 0
    %993 = vmatprep.subr.bf16.mxu0 0
    %994 = vmatpush2.bf16.msra.mxu0 0
    %995 = vmatprep.subr.bf16.mxu0 0
    %996 = vmatpush2.bf16.msra.mxu0 0
    %997 = vmatprep.subr.bf16.mxu0 0
    %998 = vmatpush2.bf16.msra.mxu0 0
    %999 = vmatprep.mubr.bf16.mxu0 0
    %1000 = vmatmul.mubr.bf16.gmra.mxu0 %v965
    %v1001 = vpop.f32.mrf.mxu0
    %v1002 = vadd.f32 %v946, %v1001
    %v1003 = vpop.f32.mrf.mxu0
    %v1004 = vpop.f32.mrf.mxu0
    %v1005 = vadd.f32 %v949, %v1004
    %v1006 = vpop.f32.mrf.mxu0
    %1007 = vdwg.mxu0
    %1008 = vrot.lane.b32.xlu0 %v518, 64
    %v1009 = vpop.permute.xlu0 %1008
    %1010 = vrot.lane.b32.xlu0 %v522, 64
    %v1011 = vpop.permute.xlu0 %1010
    %1012 = vrot.lane.b32.xlu0 %v520, 64
    %v1013 = vpop.permute.xlu0 %1012
    %1014 = vrot.lane.b32.xlu0 %v524, 64
    %v1015 = vpop.permute.xlu0 %1014
    %v1016 = vsel %vm567, %v1009, 0
    %v1018 = vsel %vm567, %v1011, 0
    %v1020 = vsel %vm567, %v1013, 0
    %v1022 = vsel %vm567, %v1015, 0
    %1024 = vmatprep.subr.mxu0 0.0
    %1025 = vmatpush1.xpose.msra.mxu0 0.0
    %1026 = vmatprep.subr.mxu0 0.0
    %1027 = vmatpush1.xpose.msra.mxu0 0.0
    %1028 = vmatprep.subr.mxu0 0.0
    %1029 = vmatpush1.xpose.msra.mxu0 0.0
    %1030 = vmatprep.subr.mxu0 0.0
    %1031 = vmatpush1.xpose.msra.mxu0 0.0
    %1032 = vmatprep.subr.mxu0 0.0
    %1033 = vmatpush1.xpose.msra.mxu0 0.0
    %1034 = vmatprep.subr.mxu0 0.0
    %1035 = vmatpush1.xpose.msra.mxu0 0.0
    %1036 = vmatprep.subr.mxu0 0.0
    %1037 = vmatpush1.xpose.msra.mxu0 0.0
    %1038 = vmatprep.subr.mxu0 0.0
    %1039 = vmatpush1.xpose.msra.mxu0 0.0
    %1040 = vmatprep.subr.mxu0 0.0
    %1041 = vmatpush1.xpose.msra.mxu0 0.0
    %1042 = vmatprep.subr.mxu0 0.0
    %1043 = vmatpush1.xpose.msra.mxu0 0.0
    %1044 = vmatprep.subr.mxu0 0.0
    %1045 = vmatpush1.xpose.msra.mxu0 0.0
    %1046 = vmatprep.subr.mxu0 0.0
    %1047 = vmatpush1.xpose.msra.mxu0 0.0
    %1048 = vmatprep.subr.mxu0 0.0
    %1049 = vmatpush1.xpose.msra.mxu0 0.0
    %1050 = vmatprep.subr.mxu0 0.0
    %1051 = vmatpush1.xpose.msra.mxu0 0.0
    %1052 = vmatprep.subr.mxu0 0.0
    %1053 = vmatpush1.xpose.msra.mxu0 %v1022
    %1054 = vmatprep.subr.mxu0 0.0
    %1055 = vmatpush1.xpose.msra.mxu0 %v1020
    %1056 = vmatprep.subr.mxu0 0.0
    %1057 = vmatpush2.xpose.msra.mxu0 0.0
    %1058 = vmatprep.subr.mxu0 0.0
    %1059 = vmatpush2.xpose.msra.mxu0 0.0
    %1060 = vmatprep.subr.mxu0 0.0
    %1061 = vmatpush2.xpose.msra.mxu0 0.0
    %1062 = vmatprep.subr.mxu0 0.0
    %1063 = vmatpush2.xpose.msra.mxu0 0.0
    %1064 = vmatprep.subr.mxu0 0.0
    %1065 = vmatpush2.xpose.msra.mxu0 0.0
    %1066 = vmatprep.subr.mxu0 0.0
    %1067 = vmatpush2.xpose.msra.mxu0 0.0
    %1068 = vmatprep.subr.mxu0 0.0
    %1069 = vmatpush2.xpose.msra.mxu0 0.0
    %1070 = vmatprep.subr.mxu0 0.0
    %1071 = vmatpush2.xpose.msra.mxu0 0.0
    %1072 = vmatprep.subr.mxu0 0.0
    %1073 = vmatpush2.xpose.msra.mxu0 0.0
    %1074 = vmatprep.subr.mxu0 0.0
    %1075 = vmatpush2.xpose.msra.mxu0 0.0
    %1076 = vmatprep.subr.mxu0 0.0
    %1077 = vmatpush2.xpose.msra.mxu0 0.0
    %1078 = vmatprep.subr.mxu0 0.0
    %1079 = vmatpush2.xpose.msra.mxu0 0.0
    %1080 = vmatprep.subr.mxu0 0.0
    %1081 = vmatpush2.xpose.msra.mxu0 0.0
    %1082 = vmatprep.subr.mxu0 0.0
    %1083 = vmatpush2.xpose.msra.mxu0 0.0
    %1084 = vmatprep.subr.mxu0 0.0
    %1085 = vmatpush2.xpose.msra.mxu0 0.0
    %1086 = vmatprep.subr.mxu0 0.0
    %1087 = vmatpush2.xpose.msra.mxu0 0.0
    %1088 = vmatprep.mubr.f32.mxu0 0.0
    %1089 = vmatmul.mubr.f32.gmra.mxu0 %v1016
    %v1090 = vpop.f32.mrf.mxu0
    %v1091 = vadd.f32 0.0, %v1090
    %v1092 = vpop.f32.mrf.mxu0
    %1093 = vmatprep.mubr.f32.mxu0 0.0
    %1094 = vmatmul.mubr.f32.gmra.mxu0 %v1018
    %v1095 = vpop.f32.mrf.mxu0
    %v1096 = vadd.f32 0.0, %v1095
    %v1097 = vpop.f32.mrf.mxu0
    %1098 = vdwg.mxu0
    %v1099 = vmul.f32 %v1091, 0.17677669
    %v1100 = vmul.f32 %v1096, 0.17677669
    %v1101 = vadd.f32 %v1099, %v263
    %v1102 = vadd.f32 %v1100, %v264
    %v1103 = vsel %vm659, %v1101, -inf
    %1104 = vmax.xlane.f32.xlu0 %v1103
    %v1105 = vpop.xlane.xlu0 %1104
    %v1106 = vsel %vm659, %v1102, -inf
    %1107 = vmax.xlane.f32.xlu0 %v1106
    %v1108 = vpop.xlane.xlu0 %1107
    %v1109 = vsub.f32 %v1101, %v1105
    %v1110 = vsub.f32 %v1102, %v1108
    %v1111 = vmul.f32 %v1109, 1.442695
    %v1112 = vpow.pop %v1111
    %v1113 = vmul.f32 %v1110, 1.442695
    %v1114 = vpow.pop %v1113
    %v1115 = vsel %vm659, %v1112, 0.0
    %1116 = vadd.xlane.f32.xlu0 %v1115
    %v1117 = vpop.xlane.xlu0 %1116
    %v1118 = vsel %vm659, %v1114, 0.0
    %1119 = vadd.xlane.f32.xlu0 %v1118
    %v1120 = vpop.xlane.xlu0 %1119
    %v1121 = vrcp.pop %v1117
    %v1122 = vrcp.pop %v1120
    %v1123 = vmul.f32 %v1112, %v1121
    %v1124 = vmul.f32 %v1114, %v1122
    %v1125 = vpack.c.bf16 %v1124, %v1123
    %1126 = vrot.lane.b32.xlu0 %v683, 64
    %v1127 = vpop.permute.xlu0 %1126
    %v1130 = vsel %vm659, %v1125, 0
    %1132 = vmatprep.subr.bf16.mxu0 0
    %1133 = vmatpush1.bf16.msra.mxu0 0
    %1134 = vmatprep.subr.bf16.mxu0 0
    %1135 = vmatpush1.bf16.msra.mxu0 0
    %1136 = vmatprep.subr.bf16.mxu0 0
    %1137 = vmatpush1.bf16.msra.mxu0 0
    %1138 = vmatprep.subr.bf16.mxu0 0
    %1139 = vmatpush1.bf16.msra.mxu0 0
    %1140 = vmatprep.subr.bf16.mxu0 0
    %1141 = vmatpush1.bf16.msra.mxu0 0
    %1142 = vmatprep.subr.bf16.mxu0 0
    %1143 = vmatpush1.bf16.msra.mxu0 0
    %1144 = vmatprep.subr.bf16.mxu0 0
    %1145 = vmatpush1.bf16.msra.mxu0 0
    %1146 = vmatprep.subr.bf16.mxu0 0
    %1147 = vmatpush1.bf16.msra.mxu0 %v1127
    %1148 = vmatprep.subr.bf16.mxu0 0
    %1149 = vmatpush2.bf16.msra.mxu0 0
    %1150 = vmatprep.subr.bf16.mxu0 0
    %1151 = vmatpush2.bf16.msra.mxu0 0
    %1152 = vmatprep.subr.bf16.mxu0 0
    %1153 = vmatpush2.bf16.msra.mxu0 0
    %1154 = vmatprep.subr.bf16.mxu0 0
    %1155 = vmatpush2.bf16.msra.mxu0 0
    %1156 = vmatprep.subr.bf16.mxu0 0
    %1157 = vmatpush2.bf16.msra.mxu0 0
    %1158 = vmatprep.subr.bf16.mxu0 0
    %1159 = vmatpush2.bf16.msra.mxu0 0
    %1160 = vmatprep.subr.bf16.mxu0 0
    %1161 = vmatpush2.bf16.msra.mxu0 0
    %1162 = vmatprep.subr.bf16.mxu0 0
    %1163 = vmatpush2.bf16.msra.mxu0 0
    %1164 = vmatprep.mubr.bf16.mxu0 0
    %1165 = vmatmul.mubr.bf16.gmra.mxu0 %v1130
    %v1166 = vpop.f32.mrf.mxu0
    %v1167 = vadd.f32 0.0, %v1166
    %v1168 = vpop.f32.mrf.mxu0
    %v1169 = vpop.f32.mrf.mxu0
    %v1170 = vadd.f32 0.0, %v1169
    %v1171 = vpop.f32.mrf.mxu0
    %1172 = vdwg.mxu0
    %v1173 = vpack.c.bf16 %v1170, %v1167
    %v1178 = vunpack.c.l.b16 %v305
    %v1179 = vunpack.c.l.b16 %v306
    %v1180 = vunpack.c.l.b16 %v307
    %v1181 = vunpack.c.l.b16 %v308
    %v1182 = vpack.c.b16 %v1179, %v1178
    %v1183 = vpack.c.b16 %v1181, %v1180
    %v1187 = vsel %vm567, %v1173, 0
    %1189 = vmatprep.subr.bf16.mxu0 0
    %1190 = vmatpush1.bf16.msra.mxu0 0
    %1191 = vmatprep.subr.bf16.mxu0 0
    %1192 = vmatpush1.bf16.msra.mxu0 0
    %1193 = vmatprep.subr.bf16.mxu0 0
    %1194 = vmatpush1.bf16.msra.mxu0 0
    %1195 = vmatprep.subr.bf16.mxu0 0
    %1196 = vmatpush1.bf16.msra.mxu0 0
    %1197 = vmatprep.subr.bf16.mxu0 0
    %1198 = vmatpush1.bf16.msra.mxu0 0
    %1199 = vmatprep.subr.bf16.mxu0 0
    %1200 = vmatpush1.bf16.msra.mxu0 0
    %1201 = vmatprep.subr.bf16.mxu0 0
    %1202 = vmatpush1.bf16.msra.mxu0 %v1183
    %1203 = vmatprep.subr.bf16.mxu0 0
    %1204 = vmatpush1.bf16.msra.mxu0 %v1182
    %1205 = vmatprep.subr.bf16.mxu0 0
    %1206 = vmatpush2.bf16.msra.mxu0 0
    %1207 = vmatprep.subr.bf16.mxu0 0
    %1208 = vmatpush2.bf16.msra.mxu0 0
    %1209 = vmatprep.subr.bf16.mxu0 0
    %1210 = vmatpush2.bf16.msra.mxu0 0
    %1211 = vmatprep.subr.bf16.mxu0 0
    %1212 = vmatpush2.bf16.msra.mxu0 0
    %1213 = vmatprep.subr.bf16.mxu0 0
    %1214 = vmatpush2.bf16.msra.mxu0 0
    %1215 = vmatprep.subr.bf16.mxu0 0
    %1216 = vmatpush2.bf16.msra.mxu0 0
    %1217 = vmatprep.subr.bf16.mxu0 0
    %1218 = vmatpush2.bf16.msra.mxu0 0
    %1219 = vmatprep.subr.bf16.mxu0 0
    %1220 = vmatpush2.bf16.msra.mxu0 0
    %1221 = vmatprep.mubr.bf16.mxu0 0
    %1222 = vmatmul.mubr.bf16.gmra.mxu0 %v1187
    %v1223 = vpop.f32.mrf.mxu0
    %v1224 = vadd.f32 0.0, %v1223
    %v1225 = vpop.f32.mrf.mxu0
    %v1226 = vpop.f32.mrf.mxu0
    %v1227 = vadd.f32 0.0, %v1226
    %v1228 = vpop.f32.mrf.mxu0
    %1229 = vdwg.mxu0
    %v1230 = vadd.f32 %v1002, %v1224
    %v1231 = vadd.f32 %v1005, %v1227
    %1232 = vrot.lane.b32.xlu0 %v518, 32
    %v1233 = vpop.permute.xlu0 %1232
    %1234 = vrot.lane.b32.xlu0 %v522, 32
    %v1235 = vpop.permute.xlu0 %1234
    %1236 = vrot.lane.b32.xlu0 %v520, 32
    %v1237 = vpop.permute.xlu0 %1236
    %1238 = vrot.lane.b32.xlu0 %v524, 32
    %v1239 = vpop.permute.xlu0 %1238
    %v1240 = vsel %vm567, %v1233, 0
    %v1242 = vsel %vm567, %v1235, 0
    %v1244 = vsel %vm567, %v1237, 0
    %v1246 = vsel %vm567, %v1239, 0
    %1248 = vmatprep.subr.mxu0 0.0
    %1249 = vmatpush1.xpose.msra.mxu0 0.0
    %1250 = vmatprep.subr.mxu0 0.0
    %1251 = vmatpush1.xpose.msra.mxu0 0.0
    %1252 = vmatprep.subr.mxu0 0.0
    %1253 = vmatpush1.xpose.msra.mxu0 0.0
    %1254 = vmatprep.subr.mxu0 0.0
    %1255 = vmatpush1.xpose.msra.mxu0 0.0
    %1256 = vmatprep.subr.mxu0 0.0
    %1257 = vmatpush1.xpose.msra.mxu0 0.0
    %1258 = vmatprep.subr.mxu0 0.0
    %1259 = vmatpush1.xpose.msra.mxu0 0.0
    %1260 = vmatprep.subr.mxu0 0.0
    %1261 = vmatpush1.xpose.msra.mxu0 0.0
    %1262 = vmatprep.subr.mxu0 0.0
    %1263 = vmatpush1.xpose.msra.mxu0 0.0
    %1264 = vmatprep.subr.mxu0 0.0
    %1265 = vmatpush1.xpose.msra.mxu0 0.0
    %1266 = vmatprep.subr.mxu0 0.0
    %1267 = vmatpush1.xpose.msra.mxu0 0.0
    %1268 = vmatprep.subr.mxu0 0.0
    %1269 = vmatpush1.xpose.msra.mxu0 0.0
    %1270 = vmatprep.subr.mxu0 0.0
    %1271 = vmatpush1.xpose.msra.mxu0 0.0
    %1272 = vmatprep.subr.mxu0 0.0
    %1273 = vmatpush1.xpose.msra.mxu0 0.0
    %1274 = vmatprep.subr.mxu0 0.0
    %1275 = vmatpush1.xpose.msra.mxu0 0.0
    %1276 = vmatprep.subr.mxu0 0.0
    %1277 = vmatpush1.xpose.msra.mxu0 %v1246
    %1278 = vmatprep.subr.mxu0 0.0
    %1279 = vmatpush1.xpose.msra.mxu0 %v1244
    %1280 = vmatprep.subr.mxu0 0.0
    %1281 = vmatpush2.xpose.msra.mxu0 0.0
    %1282 = vmatprep.subr.mxu0 0.0
    %1283 = vmatpush2.xpose.msra.mxu0 0.0
    %1284 = vmatprep.subr.mxu0 0.0
    %1285 = vmatpush2.xpose.msra.mxu0 0.0
    %1286 = vmatprep.subr.mxu0 0.0
    %1287 = vmatpush2.xpose.msra.mxu0 0.0
    %1288 = vmatprep.subr.mxu0 0.0
    %1289 = vmatpush2.xpose.msra.mxu0 0.0
    %1290 = vmatprep.subr.mxu0 0.0
    %1291 = vmatpush2.xpose.msra.mxu0 0.0
    %1292 = vmatprep.subr.mxu0 0.0
    %1293 = vmatpush2.xpose.msra.mxu0 0.0
    %1294 = vmatprep.subr.mxu0 0.0
    %1295 = vmatpush2.xpose.msra.mxu0 0.0
    %1296 = vmatprep.subr.mxu0 0.0
    %1297 = vmatpush2.xpose.msra.mxu0 0.0
    %1298 = vmatprep.subr.mxu0 0.0
    %1299 = vmatpush2.xpose.msra.mxu0 0.0
    %1300 = vmatprep.subr.mxu0 0.0
    %1301 = vmatpush2.xpose.msra.mxu0 0.0
    %1302 = vmatprep.subr.mxu0 0.0
    %1303 = vmatpush2.xpose.msra.mxu0 0.0
    %1304 = vmatprep.subr.mxu0 0.0
    %1305 = vmatpush2.xpose.msra.mxu0 0.0
    %1306 = vmatprep.subr.mxu0 0.0
    %1307 = vmatpush2.xpose.msra.mxu0 0.0
    %1308 = vmatprep.subr.mxu0 0.0
    %1309 = vmatpush2.xpose.msra.mxu0 0.0
    %1310 = vmatprep.subr.mxu0 0.0
    %1311 = vmatpush2.xpose.msra.mxu0 0.0
    %1312 = vmatprep.mubr.f32.mxu0 0.0
    %1313 = vmatmul.mubr.f32.gmra.mxu0 %v1240
    %v1314 = vpop.f32.mrf.mxu0
    %v1315 = vadd.f32 0.0, %v1314
    %v1316 = vpop.f32.mrf.mxu0
    %1317 = vmatprep.mubr.f32.mxu0 0.0
    %1318 = vmatmul.mubr.f32.gmra.mxu0 %v1242
    %v1319 = vpop.f32.mrf.mxu0
    %v1320 = vadd.f32 0.0, %v1319
    %v1321 = vpop.f32.mrf.mxu0
    %1322 = vdwg.mxu0
    %v1323 = vmul.f32 %v1315, 0.17677669
    %v1324 = vmul.f32 %v1320, 0.17677669
    %v1325 = vadd.f32 %v1323, %v263
    %v1326 = vadd.f32 %v1324, %v264
    %v1327 = vsel %vm659, %v1325, -inf
    %1328 = vmax.xlane.f32.xlu0 %v1327
    %v1329 = vpop.xlane.xlu0 %1328
    %v1330 = vsel %vm659, %v1326, -inf
    %1331 = vmax.xlane.f32.xlu0 %v1330
    %v1332 = vpop.xlane.xlu0 %1331
    %v1333 = vsub.f32 %v1325, %v1329
    %v1334 = vsub.f32 %v1326, %v1332
    %v1335 = vmul.f32 %v1333, 1.442695
    %v1336 = vpow.pop %v1335
    %v1337 = vmul.f32 %v1334, 1.442695
    %v1338 = vpow.pop %v1337
    %v1339 = vsel %vm659, %v1336, 0.0
    %1340 = vadd.xlane.f32.xlu0 %v1339
    %v1341 = vpop.xlane.xlu0 %1340
    %v1342 = vsel %vm659, %v1338, 0.0
    %1343 = vadd.xlane.f32.xlu0 %v1342
    %v1344 = vpop.xlane.xlu0 %1343
    %v1345 = vrcp.pop %v1341
    %v1346 = vrcp.pop %v1344
    %v1347 = vmul.f32 %v1336, %v1345
    %v1348 = vmul.f32 %v1338, %v1346
    %v1349 = vpack.c.bf16 %v1348, %v1347
    %1350 = vrot.lane.b32.xlu0 %v683, 32
    %v1351 = vpop.permute.xlu0 %1350
    %v1354 = vsel %vm659, %v1349, 0
    %1356 = vmatprep.subr.bf16.mxu0 0
    %1357 = vmatpush1.bf16.msra.mxu0 0
    %1358 = vmatprep.subr.bf16.mxu0 0
    %1359 = vmatpush1.bf16.msra.mxu0 0
    %1360 = vmatprep.subr.bf16.mxu0 0
    %1361 = vmatpush1.bf16.msra.mxu0 0
    %1362 = vmatprep.subr.bf16.mxu0 0
    %1363 = vmatpush1.bf16.msra.mxu0 0
    %1364 = vmatprep.subr.bf16.mxu0 0
    %1365 = vmatpush1.bf16.msra.mxu0 0
    %1366 = vmatprep.subr.bf16.mxu0 0
    %1367 = vmatpush1.bf16.msra.mxu0 0
    %1368 = vmatprep.subr.bf16.mxu0 0
    %1369 = vmatpush1.bf16.msra.mxu0 0
    %1370 = vmatprep.subr.bf16.mxu0 0
    %1371 = vmatpush1.bf16.msra.mxu0 %v1351
    %1372 = vmatprep.subr.bf16.mxu0 0
    %1373 = vmatpush2.bf16.msra.mxu0 0
    %1374 = vmatprep.subr.bf16.mxu0 0
    %1375 = vmatpush2.bf16.msra.mxu0 0
    %1376 = vmatprep.subr.bf16.mxu0 0
    %1377 = vmatpush2.bf16.msra.mxu0 0
    %1378 = vmatprep.subr.bf16.mxu0 0
    %1379 = vmatpush2.bf16.msra.mxu0 0
    %1380 = vmatprep.subr.bf16.mxu0 0
    %1381 = vmatpush2.bf16.msra.mxu0 0
    %1382 = vmatprep.subr.bf16.mxu0 0
    %1383 = vmatpush2.bf16.msra.mxu0 0
    %1384 = vmatprep.subr.bf16.mxu0 0
    %1385 = vmatpush2.bf16.msra.mxu0 0
    %1386 = vmatprep.subr.bf16.mxu0 0
    %1387 = vmatpush2.bf16.msra.mxu0 0
    %1388 = vmatprep.mubr.bf16.mxu0 0
    %1389 = vmatmul.mubr.bf16.gmra.mxu0 %v1354
    %v1390 = vpop.f32.mrf.mxu0
    %v1391 = vadd.f32 0.0, %v1390
    %v1392 = vpop.f32.mrf.mxu0
    %v1393 = vpop.f32.mrf.mxu0
    %v1394 = vadd.f32 0.0, %v1393
    %v1395 = vpop.f32.mrf.mxu0
    %1396 = vdwg.mxu0
    %v1397 = vpack.c.bf16 %v1394, %v1391
    %v1402 = vunpack.c.l.b16 %v309
    %v1403 = vunpack.c.l.b16 %v310
    %v1404 = vunpack.c.l.b16 %v311
    %v1405 = vunpack.c.l.b16 %v312
    %v1406 = vpack.c.b16 %v1403, %v1402
    %v1407 = vpack.c.b16 %v1405, %v1404
    %v1411 = vsel %vm567, %v1397, 0
    %1413 = vmatprep.subr.bf16.mxu0 0
    %1414 = vmatpush1.bf16.msra.mxu0 0
    %1415 = vmatprep.subr.bf16.mxu0 0
    %1416 = vmatpush1.bf16.msra.mxu0 0
    %1417 = vmatprep.subr.bf16.mxu0 0
    %1418 = vmatpush1.bf16.msra.mxu0 0
    %1419 = vmatprep.subr.bf16.mxu0 0
    %1420 = vmatpush1.bf16.msra.mxu0 0
    %1421 = vmatprep.subr.bf16.mxu0 0
    %1422 = vmatpush1.bf16.msra.mxu0 0
    %1423 = vmatprep.subr.bf16.mxu0 0
    %1424 = vmatpush1.bf16.msra.mxu0 0
    %1425 = vmatprep.subr.bf16.mxu0 0
    %1426 = vmatpush1.bf16.msra.mxu0 %v1407
    %1427 = vmatprep.subr.bf16.mxu0 0
    %1428 = vmatpush1.bf16.msra.mxu0 %v1406
    %1429 = vmatprep.subr.bf16.mxu0 0
    %1430 = vmatpush2.bf16.msra.mxu0 0
    %1431 = vmatprep.subr.bf16.mxu0 0
    %1432 = vmatpush2.bf16.msra.mxu0 0
    %1433 = vmatprep.subr.bf16.mxu0 0
    %1434 = vmatpush2.bf16.msra.mxu0 0
    %1435 = vmatprep.subr.bf16.mxu0 0
    %1436 = vmatpush2.bf16.msra.mxu0 0
    %1437 = vmatprep.subr.bf16.mxu0 0
    %1438 = vmatpush2.bf16.msra.mxu0 0
    %1439 = vmatprep.subr.bf16.mxu0 0
    %1440 = vmatpush2.bf16.msra.mxu0 0
    %1441 = vmatprep.subr.bf16.mxu0 0
    %1442 = vmatpush2.bf16.msra.mxu0 0
    %1443 = vmatprep.subr.bf16.mxu0 0
    %1444 = vmatpush2.bf16.msra.mxu0 0
    %1445 = vmatprep.mubr.bf16.mxu0 0
    %1446 = vmatmul.mubr.bf16.gmra.mxu0 %v1411
    %v1447 = vpop.f32.mrf.mxu0
    %v1448 = vadd.f32 0.0, %v1447
    %v1449 = vpop.f32.mrf.mxu0
    %v1450 = vpop.f32.mrf.mxu0
    %v1451 = vadd.f32 0.0, %v1450
    %v1452 = vpop.f32.mrf.mxu0
    %1453 = vdwg.mxu0
    %v1454 = vadd.f32 %v1230, %v1448
    %v1455 = vadd.f32 %v1231, %v1451
    %v1456 = vadd.f32 %v261, %v1454
    %v1457 = vadd.f32 %v262, %v1455
    %v1458 = vadd.f32 %v1456, %v332
    %v1459 = vadd.f32 %v1457, %v332
    %1460 = vadd.xlane.f32.xlu0 %v1458
    %v1461 = vpop.xlane.xlu0 %1460
    %1462 = vadd.xlane.f32.xlu0 %v1459
    %v1463 = vpop.xlane.xlu0 %1462
    %v1464 = vrcp.pop 128.0
    %v1465 = vmul.f32 %v1461, %v1464
    %v1466 = vmul.f32 %v1463, %v1464
    %v1467 = vsub.f32 %v1458, %v1465
    %v1468 = vsub.f32 %v1459, %v1466
    %v1469 = vmul.f32 %v1467, %v1467
    %v1470 = vmul.f32 %v1468, %v1468
    %1471 = vadd.xlane.f32.xlu0 %v1469
    %v1472 = vpop.xlane.xlu0 %1471
    %1473 = vadd.xlane.f32.xlu0 %v1470
    %v1474 = vpop.xlane.xlu0 %1473
    %v1475 = vmul.f32 %v1472, %v1464
    %v1476 = vmul.f32 %v1474, %v1464
    %v1477 = vadd.f32 %v1475, 1e-05
    %v1478 = vadd.f32 %v1476, 1e-05
    %v1479 = vrsqrt.pop %v1477
    %v1480 = vrsqrt.pop %v1478
    %v1481 = vmul.f32 %v1467, %v1479
    %v1482 = vmul.f32 %v1468, %v1480
    %v1483 = vmul.f32 %v1481, %v333
    %v1484 = vmul.f32 %v1482, %v333
    %v1485 = vadd.f32 %v1483, %v334
    %v1486 = vadd.f32 %v1484, %v334
    %v1487 = vpack.c.bf16 %v1486, %v1485
    %v1489 = vlaneseq
    %v1490 = vshrl.u32 %v1489, 7
    %v1491 = vsub.s32 0, %v1490
    %v1492 = vrot.slane %v331, %v1491
    %v1493 = vlaneseq
    %v1494 = vshrl.u32 %v1493, 7
    %v1495 = vsub.s32 1, %v1494
    %v1496 = vrot.slane %v331, %v1495
    %v1515 = vunpack.c.l.b16 %v313
    %v1516 = vunpack.c.h.b16 %v313
    %v1517 = vunpack.c.l.b16 %v314
    %v1518 = vunpack.c.h.b16 %v314
    %v1519 = vunpack.c.l.b16 %v315
    %v1520 = vunpack.c.h.b16 %v315
    %v1521 = vunpack.c.l.b16 %v316
    %v1522 = vunpack.c.h.b16 %v316
    %v1523 = vunpack.c.l.b16 %v317
    %v1524 = vunpack.c.h.b16 %v317
    %v1525 = vunpack.c.l.b16 %v318
    %v1526 = vunpack.c.h.b16 %v318
    %v1527 = vunpack.c.l.b16 %v319
    %v1528 = vunpack.c.h.b16 %v319
    %v1529 = vunpack.c.l.b16 %v320
    %v1530 = vunpack.c.h.b16 %v320
    %v1531 = vunpack.c.l.b16 %v321
    %v1532 = vunpack.c.h.b16 %v321
    %v1533 = vunpack.c.l.b16 %v322
    %v1534 = vunpack.c.h.b16 %v322
    %v1535 = vunpack.c.l.b16 %v323
    %v1536 = vunpack.c.h.b16 %v323
    %v1537 = vunpack.c.l.b16 %v324
    %v1538 = vunpack.c.h.b16 %v324
    %v1539 = vunpack.c.l.b16 %v325
    %v1540 = vunpack.c.h.b16 %v325
    %v1541 = vunpack.c.l.b16 %v326
    %v1542 = vunpack.c.h.b16 %v326
    %v1543 = vunpack.c.l.b16 %v327
    %v1544 = vunpack.c.h.b16 %v327
    %v1545 = vunpack.c.l.b16 %v328
    %v1546 = vunpack.c.h.b16 %v328
    %v1547 = vpack.c.b16 %v1517, %v1515
    %v1548 = vpack.c.b16 %v1518, %v1516
    %v1549 = vpack.c.b16 %v1521, %v1519
    %v1550 = vpack.c.b16 %v1522, %v1520
    %v1551 = vpack.c.b16 %v1525, %v1523
    %v1552 = vpack.c.b16 %v1526, %v1524
    %v1553 = vpack.c.b16 %v1529, %v1527
    %v1554 = vpack.c.b16 %v1530, %v1528
    %v1555 = vpack.c.b16 %v1533, %v1531
    %v1556 = vpack.c.b16 %v1534, %v1532
    %v1557 = vpack.c.b16 %v1537, %v1535
    %v1558 = vpack.c.b16 %v1538, %v1536
    %v1559 = vpack.c.b16 %v1541, %v1539
    %v1560 = vpack.c.b16 %v1542, %v1540
    %v1561 = vpack.c.b16 %v1545, %v1543
    %v1562 = vpack.c.b16 %v1546, %v1544
    %1579 = vmatprep.subr.bf16.mxu0 %v1562
    %1580 = vmatpush1.bf16.msra.mxu0 %v1561
    %1581 = vmatprep.subr.bf16.mxu0 %v1560
    %1582 = vmatpush1.bf16.msra.mxu0 %v1559
    %1583 = vmatprep.subr.bf16.mxu0 %v1558
    %1584 = vmatpush1.bf16.msra.mxu0 %v1557
    %1585 = vmatprep.subr.bf16.mxu0 %v1556
    %1586 = vmatpush1.bf16.msra.mxu0 %v1555
    %1587 = vmatprep.subr.bf16.mxu0 %v1554
    %1588 = vmatpush1.bf16.msra.mxu0 %v1553
    %1589 = vmatprep.subr.bf16.mxu0 %v1552
    %1590 = vmatpush1.bf16.msra.mxu0 %v1551
    %1591 = vmatprep.subr.bf16.mxu0 %v1550
    %1592 = vmatpush1.bf16.msra.mxu0 %v1549
    %1593 = vmatprep.subr.bf16.mxu0 %v1548
    %1594 = vmatpush1.bf16.msra.mxu0 %v1547
    %1595 = vmatprep.subr.bf16.mxu0 0
    %1596 = vmatpush2.bf16.msra.mxu0 0
    %1597 = vmatprep.subr.bf16.mxu0 0
    %1598 = vmatpush2.bf16.msra.mxu0 0
    %1599 = vmatprep.subr.bf16.mxu0 0
    %1600 = vmatpush2.bf16.msra.mxu0 0
    %1601 = vmatprep.subr.bf16.mxu0 0
    %1602 = vmatpush2.bf16.msra.mxu0 0
    %1603 = vmatprep.subr.bf16.mxu0 0
    %1604 = vmatpush2.bf16.msra.mxu0 0
    %1605 = vmatprep.subr.bf16.mxu0 0
    %1606 = vmatpush2.bf16.msra.mxu0 0
    %1607 = vmatprep.subr.bf16.mxu0 0
    %1608 = vmatpush2.bf16.msra.mxu0 0
    %1609 = vmatprep.subr.bf16.mxu0 0
    %1610 = vmatpush2.bf16.msra.mxu0 0
    %1611 = vmatprep.mubr.bf16.mxu0 0
    %1612 = vmatmul.mubr.bf16.gmra.mxu0 %v1487
    %v1613 = vpop.f32.mrf.mxu0
    %v1614 = vadd.f32 %v1492, %v1613
    %v1615 = vpop.f32.mrf.mxu0
    %v1616 = vadd.f32 %v1496, %v1615
    %v1617 = vpop.f32.mrf.mxu0
    %v1618 = vadd.f32 %v1492, %v1617
    %v1619 = vpop.f32.mrf.mxu0
    %v1620 = vadd.f32 %v1496, %v1619
    %1621 = vdwg.mxu0
    %v1622 = vmax.f32 %v1614, 0.0
    %v1623 = vmax.f32 %v1616, 0.0
    %v1624 = vmax.f32 %v1618, 0.0
    %v1625 = vmax.f32 %v1620, 0.0
    %v1626 = vpack.c.bf16 %v1624, %v1622
    %v1627 = vpack.c.bf16 %v1625, %v1623
    %v1628 = vld [vmem:[#allocation10] sm:$0xf]
    %v1629 = vld [vmem:[#allocation10 + $0x4] sm:$0xf]
    %v1630 = vld [vmem:[#allocation10 + $0x8] sm:$0xf]
    %v1631 = vld [vmem:[#allocation10 + $0xc] sm:$0xf]
    %v1632 = vld [vmem:[#allocation10 + $0x10] sm:$0xf]
    %v1633 = vld [vmem:[#allocation10 + $0x14] sm:$0xf]
    %v1634 = vld [vmem:[#allocation10 + $0x18] sm:$0xf]
    %v1635 = vld [vmem:[#allocation10 + $0x1c] sm:$0xf]
    %v1636 = vld [vmem:[#allocation10 + $0x20] sm:$0xf]
    %v1637 = vld [vmem:[#allocation10 + $0x24] sm:$0xf]
    %v1638 = vld [vmem:[#allocation10 + $0x28] sm:$0xf]
    %v1639 = vld [vmem:[#allocation10 + $0x2c] sm:$0xf]
    %v1640 = vld [vmem:[#allocation10 + $0x30] sm:$0xf]
    %v1641 = vld [vmem:[#allocation10 + $0x34] sm:$0xf]
    %v1642 = vld [vmem:[#allocation10 + $0x38] sm:$0xf]
    %v1643 = vld [vmem:[#allocation10 + $0x3c] sm:$0xf]
    %v1644 = vld [vmem:[#allocation10 + $0x40] sm:$0xf]
    %v1645 = vld [vmem:[#allocation10 + $0x44] sm:$0xf]
    %v1646 = vld [vmem:[#allocation10 + $0x48] sm:$0xf]
    %v1647 = vld [vmem:[#allocation10 + $0x4c] sm:$0xf]
    %v1648 = vld [vmem:[#allocation10 + $0x50] sm:$0xf]
    %v1649 = vld [vmem:[#allocation10 + $0x54] sm:$0xf]
    %v1650 = vld [vmem:[#allocation10 + $0x58] sm:$0xf]
    %v1651 = vld [vmem:[#allocation10 + $0x5c] sm:$0xf]
    %v1652 = vld [vmem:[#allocation10 + $0x60] sm:$0xf]
    %v1653 = vld [vmem:[#allocation10 + $0x64] sm:$0xf]
    %v1654 = vld [vmem:[#allocation10 + $0x68] sm:$0xf]
    %v1655 = vld [vmem:[#allocation10 + $0x6c] sm:$0xf]
    %v1656 = vld [vmem:[#allocation10 + $0x70] sm:$0xf]
    %v1657 = vld [vmem:[#allocation10 + $0x74] sm:$0xf]
    %v1658 = vld [vmem:[#allocation10 + $0x78] sm:$0xf]
    %v1659 = vld [vmem:[#allocation10 + $0x7c] sm:$0xf]
    %v1692 = vunpack.c.l.b16 %v1628
    %v1693 = vunpack.c.l.b16 %v1629
    %v1694 = vunpack.c.l.b16 %v1630
    %v1695 = vunpack.c.l.b16 %v1631
    %v1696 = vunpack.c.l.b16 %v1632
    %v1697 = vunpack.c.l.b16 %v1633
    %v1698 = vunpack.c.l.b16 %v1634
    %v1699 = vunpack.c.l.b16 %v1635
    %v1700 = vunpack.c.l.b16 %v1636
    %v1701 = vunpack.c.l.b16 %v1637
    %v1702 = vunpack.c.l.b16 %v1638
    %v1703 = vunpack.c.l.b16 %v1639
    %v1704 = vunpack.c.l.b16 %v1640
    %v1705 = vunpack.c.l.b16 %v1641
    %v1706 = vunpack.c.l.b16 %v1642
    %v1707 = vunpack.c.l.b16 %v1643
    %v1708 = vunpack.c.l.b16 %v1644
    %v1709 = vunpack.c.l.b16 %v1645
    %v1710 = vunpack.c.l.b16 %v1646
    %v1711 = vunpack.c.l.b16 %v1647
    %v1712 = vunpack.c.l.b16 %v1648
    %v1713 = vunpack.c.l.b16 %v1649
    %v1714 = vunpack.c.l.b16 %v1650
    %v1715 = vunpack.c.l.b16 %v1651
    %v1716 = vunpack.c.l.b16 %v1652
    %v1717 = vunpack.c.l.b16 %v1653
    %v1718 = vunpack.c.l.b16 %v1654
    %v1719 = vunpack.c.l.b16 %v1655
    %v1720 = vunpack.c.l.b16 %v1656
    %v1721 = vunpack.c.l.b16 %v1657
    %v1722 = vunpack.c.l.b16 %v1658
    %v1723 = vunpack.c.l.b16 %v1659
    %v1724 = vpack.c.b16 %v1693, %v1692
    %v1725 = vpack.c.b16 %v1695, %v1694
    %v1726 = vpack.c.b16 %v1697, %v1696
    %v1727 = vpack.c.b16 %v1699, %v1698
    %v1728 = vpack.c.b16 %v1701, %v1700
    %v1729 = vpack.c.b16 %v1703, %v1702
    %v1730 = vpack.c.b16 %v1705, %v1704
    %v1731 = vpack.c.b16 %v1707, %v1706
    %v1732 = vpack.c.b16 %v1709, %v1708
    %v1733 = vpack.c.b16 %v1711, %v1710
    %v1734 = vpack.c.b16 %v1713, %v1712
    %v1735 = vpack.c.b16 %v1715, %v1714
    %v1736 = vpack.c.b16 %v1717, %v1716
    %v1737 = vpack.c.b16 %v1719, %v1718
    %v1738 = vpack.c.b16 %v1721, %v1720
    %v1739 = vpack.c.b16 %v1723, %v1722
    %1756 = vmatprep.subr.bf16.mxu0 0
    %1757 = vmatpush1.bf16.msra.mxu0 %v1731
    %1758 = vmatprep.subr.bf16.mxu0 0
    %1759 = vmatpush1.bf16.msra.mxu0 %v1730
    %1760 = vmatprep.subr.bf16.mxu0 0
    %1761 = vmatpush1.bf16.msra.mxu0 %v1729
    %1762 = vmatprep.subr.bf16.mxu0 0
    %1763 = vmatpush1.bf16.msra.mxu0 %v1728
    %1764 = vmatprep.subr.bf16.mxu0 0
    %1765 = vmatpush1.bf16.msra.mxu0 %v1727
    %1766 = vmatprep.subr.bf16.mxu0 0
    %1767 = vmatpush1.bf16.msra.mxu0 %v1726
    %1768 = vmatprep.subr.bf16.mxu0 0
    %1769 = vmatpush1.bf16.msra.mxu0 %v1725
    %1770 = vmatprep.subr.bf16.mxu0 0
    %1771 = vmatpush1.bf16.msra.mxu0 %v1724
    %1772 = vmatprep.subr.bf16.mxu0 0
    %1773 = vmatpush2.bf16.msra.mxu0 %v1739
    %1774 = vmatprep.subr.bf16.mxu0 0
    %1775 = vmatpush2.bf16.msra.mxu0 %v1738
    %1776 = vmatprep.subr.bf16.mxu0 0
    %1777 = vmatpush2.bf16.msra.mxu0 %v1737
    %1778 = vmatprep.subr.bf16.mxu0 0
    %1779 = vmatpush2.bf16.msra.mxu0 %v1736
    %1780 = vmatprep.subr.bf16.mxu0 0
    %1781 = vmatpush2.bf16.msra.mxu0 %v1735
    %1782 = vmatprep.subr.bf16.mxu0 0
    %1783 = vmatpush2.bf16.msra.mxu0 %v1734
    %1784 = vmatprep.subr.bf16.mxu0 0
    %1785 = vmatpush2.bf16.msra.mxu0 %v1733
    %1786 = vmatprep.subr.bf16.mxu0 0
    %1787 = vmatpush2.bf16.msra.mxu0 %v1732
    %1788 = vmatprep.mubr.bf16.mxu0 %v1627
    %1789 = vmatmul.mubr.bf16.gmra.mxu0 %v1626
    %v1790 = vpop.f32.mrf.mxu0
    %v1791 = vadd.f32 %v335, %v1790
    %v1792 = vpop.f32.mrf.mxu0
    %v1793 = vpop.f32.mrf.mxu0
    %v1794 = vadd.f32 %v335, %v1793
    %v1795 = vpop.f32.mrf.mxu0
    %1796 = vdwg.mxu0
    %v1797 = vadd.f32 %v1485, %v1791
    %v1798 = vadd.f32 %v1486, %v1794
    %1799 = vadd.xlane.f32.xlu0 %v1797
    %v1800 = vpop.xlane.xlu0 %1799
    %1801 = vadd.xlane.f32.xlu0 %v1798
    %v1802 = vpop.xlane.xlu0 %1801
    %v1803 = vmul.f32 %v1800, %v1464
    %v1804 = vmul.f32 %v1802, %v1464
    %v1805 = vsub.f32 %v1797, %v1803
    %v1806 = vsub.f32 %v1798, %v1804
    %v1807 = vmul.f32 %v1805, %v1805
    %v1808 = vmul.f32 %v1806, %v1806
    %1809 = vadd.xlane.f32.xlu0 %v1807
    %v1810 = vpop.xlane.xlu0 %1809
    %1811 = vadd.xlane.f32.xlu0 %v1808
    %v1812 = vpop.xlane.xlu0 %1811
    %v1813 = vmul.f32 %v1810, %v1464
    %v1814 = vmul.f32 %v1812, %v1464
    %v1815 = vadd.f32 %v1813, 1e-05
    %v1816 = vadd.f32 %v1814, 1e-05
    %v1817 = vrsqrt.pop %v1815
    %v1818 = vrsqrt.pop %v1816
    %v1819 = vmul.f32 %v1805, %v1817
    %v1820 = vmul.f32 %v1806, %v1818
    %v1821 = vmul.f32 %v1819, %v336
    %v1822 = vmul.f32 %v1820, %v336
    %v1823 = vadd.f32 %v1821, %v337
    %v1824 = vadd.f32 %v1822, %v337
    %v1825 = vld [vmem:[#allocation11] sm:$0xff]
    %v1826 = vld [vmem:[#allocation11 + $0x8] sm:$0xf]
    %v1827 = vld [vmem:[#allocation11 + $0x18] sm:$0xff]
    %v1828 = vld [vmem:[#allocation11 + $0x20] sm:$0xf]
    %v1829 = vld [vmem:[#allocation11 + $0x30] sm:$0xff]
    %v1830 = vld [vmem:[#allocation11 + $0x38] sm:$0xf]
    %v1831 = vld [vmem:[#allocation11 + $0x48] sm:$0xff]
    %v1832 = vld [vmem:[#allocation11 + $0x50] sm:$0xf]
    %v1833 = vld [vmem:[#allocation11 + $0x60] sm:$0xff]
    %v1834 = vld [vmem:[#allocation11 + $0x68] sm:$0xf]
    %v1835 = vld [vmem:[#allocation11 + $0x78] sm:$0xff]
    %v1836 = vld [vmem:[#allocation11 + $0x80] sm:$0xf]
    %v1837 = vld [vmem:[#allocation11 + $0x90] sm:$0xff]
    %v1838 = vld [vmem:[#allocation11 + $0x98] sm:$0xf]
    %v1839 = vld [vmem:[#allocation11 + $0xa8] sm:$0xff]
    %v1840 = vld [vmem:[#allocation11 + $0xb0] sm:$0xf]
    %v1841 = vld [vmem:[#allocation11 + $0xc0] sm:$0xff]
    %v1842 = vld [vmem:[#allocation11 + $0xc8] sm:$0xf]
    %v1843 = vld [vmem:[#allocation11 + $0xd8] sm:$0xff]
    %v1844 = vld [vmem:[#allocation11 + $0xe0] sm:$0xf]
    %v1845 = vld [vmem:[#allocation11 + $0xf0] sm:$0xff]
    %v1846 = vld [vmem:[#allocation11 + $0xf8] sm:$0xf]
    %v1847 = vld [vmem:[#allocation11 + $0x108] sm:$0xff]
    %v1848 = vld [vmem:[#allocation11 + $0x110] sm:$0xf]
    %v1849 = vld [vmem:[#allocation11 + $0x120] sm:$0xff]
    %v1850 = vld [vmem:[#allocation11 + $0x128] sm:$0xf]
    %v1851 = vld [vmem:[#allocation11 + $0x138] sm:$0xff]
    %v1852 = vld [vmem:[#allocation11 + $0x140] sm:$0xf]
    %v1853 = vld [vmem:[#allocation11 + $0x150] sm:$0xff]
    %v1854 = vld [vmem:[#allocation11 + $0x158] sm:$0xf]
    %v1855 = vld [vmem:[#allocation11 + $0x168] sm:$0xff]
    %v1856 = vld [vmem:[#allocation11 + $0x170] sm:$0xf]
    %v1857 = vld [vmem:[#allocation11 + $0xc] sm:$0xf]
    %v1858 = vld [vmem:[#allocation11 + $0x24] sm:$0xf]
    %v1859 = vld [vmem:[#allocation11 + $0x3c] sm:$0xf]
    %v1860 = vld [vmem:[#allocation11 + $0x54] sm:$0xf]
    %v1861 = vld [vmem:[#allocation11 + $0x6c] sm:$0xf]
    %v1862 = vld [vmem:[#allocation11 + $0x84] sm:$0xf]
    %v1863 = vld [vmem:[#allocation11 + $0x9c] sm:$0xf]
    %v1864 = vld [vmem:[#allocation11 + $0xb4] sm:$0xf]
    %v1865 = vld [vmem:[#allocation11 + $0xcc] sm:$0xf]
    %v1866 = vld [vmem:[#allocation11 + $0xe4] sm:$0xf]
    %v1867 = vld [vmem:[#allocation11 + $0xfc] sm:$0xf]
    %v1868 = vld [vmem:[#allocation11 + $0x114] sm:$0xf]
    %v1869 = vld [vmem:[#allocation11 + $0x12c] sm:$0xf]
    %v1870 = vld [vmem:[#allocation11 + $0x144] sm:$0xf]
    %v1871 = vld [vmem:[#allocation11 + $0x15c] sm:$0xf]
    %v1872 = vld [vmem:[#allocation11 + $0x174] sm:$0xf]
    %v1873 = vld [vmem:[#allocation11 + $0x10] sm:$0xff]
    %v1874 = vld [vmem:[#allocation11 + $0x28] sm:$0xff]
    %v1875 = vld [vmem:[#allocation11 + $0x40] sm:$0xff]
    %v1876 = vld [vmem:[#allocation11 + $0x58] sm:$0xff]
    %v1877 = vld [vmem:[#allocation11 + $0x70] sm:$0xff]
    %v1878 = vld [vmem:[#allocation11 + $0x88] sm:$0xff]
    %v1879 = vld [vmem:[#allocation11 + $0xa0] sm:$0xff]
    %v1880 = vld [vmem:[#allocation11 + $0xb8] sm:$0xff]
    %v1881 = vld [vmem:[#allocation11 + $0xd0] sm:$0xff]
    %v1882 = vld [vmem:[#allocation11 + $0xe8] sm:$0xff]
    %v1883 = vld [vmem:[#allocation11 + $0x100] sm:$0xff]
    %v1884 = vld [vmem:[#allocation11 + $0x118] sm:$0xff]
    %v1885 = vld [vmem:[#allocation11 + $0x130] sm:$0xff]
    %v1886 = vld [vmem:[#allocation11 + $0x148] sm:$0xff]
    %v1887 = vld [vmem:[#allocation11 + $0x160] sm:$0xff]
    %v1888 = vld [vmem:[#allocation11 + $0x178] sm:$0xff]
    %v1889 = vld [vmem:[#allocation14] ss:$8 sm:$0x7]
    %s1890 = scalar_lea.vmem [#allocation14], 1
    %v1891 = vld [vmem:[%s1890] ss:$8 sm:$0x3]
    %v1892 = vld [vmem:[#allocation14 + $0x2] ss:$0 sm:$0xff]
    %v1893 = vld [vmem:[#allocation14 + $0x3] ss:$0 sm:$0xff]
    %v1894 = vld [vmem:[#allocation14 + $0x4] ss:$0 sm:$0xff]
    %v1895 = vld [vmem:[#allocation14 + $0x5] ss:$0 sm:$0xff]
    %v1896 = vld [vmem:[#allocation14 + $0x6] ss:$0 sm:$0xff]
    %v1897 = vld [vmem:[#allocation14 + $0x7] ss:$0 sm:$0xff]
    %v1898 = vpack.c.bf16 %v1824, %v1823
    %v1900 = vlaneseq
    %v1901 = vshrl.u32 %v1900, 7
    %v1902 = vsub.s32 0, %v1901
    %v1903 = vrot.slane %v1889, %v1902
    %v1904 = vlaneseq
    %v1905 = vshrl.u32 %v1904, 7
    %v1906 = vsub.s32 1, %v1905
    %v1907 = vrot.slane %v1889, %v1906
    %v1908 = vlaneseq
    %v1909 = vshrl.u32 %v1908, 7
    %v1910 = vsub.s32 2, %v1909
    %v1911 = vrot.slane %v1889, %v1910
    %v1947 = vunpack.c.l.b16 %v1825
    %v1948 = vunpack.c.h.b16 %v1825
    %v1949 = vunpack.c.l.b16 %v1826
    %v1950 = vunpack.c.l.b16 %v1827
    %v1951 = vunpack.c.h.b16 %v1827
    %v1952 = vunpack.c.l.b16 %v1828
    %v1953 = vunpack.c.l.b16 %v1829
    %v1954 = vunpack.c.h.b16 %v1829
    %v1955 = vunpack.c.l.b16 %v1830
    %v1956 = vunpack.c.l.b16 %v1831
    %v1957 = vunpack.c.h.b16 %v1831
    %v1958 = vunpack.c.l.b16 %v1832
    %v1959 = vunpack.c.l.b16 %v1833
    %v1960 = vunpack.c.h.b16 %v1833
    %v1961 = vunpack.c.l.b16 %v1834
    %v1962 = vunpack.c.l.b16 %v1835
    %v1963 = vunpack.c.h.b16 %v1835
    %v1964 = vunpack.c.l.b16 %v1836
    %v1965 = vunpack.c.l.b16 %v1837
    %v1966 = vunpack.c.h.b16 %v1837
    %v1967 = vunpack.c.l.b16 %v1838
    %v1968 = vunpack.c.l.b16 %v1839
    %v1969 = vunpack.c.h.b16 %v1839
    %v1970 = vunpack.c.l.b16 %v1840
    %v1971 = vunpack.c.l.b16 %v1841
    %v1972 = vunpack.c.h.b16 %v1841
    %v1973 = vunpack.c.l.b16 %v1842
    %v1974 = vunpack.c.l.b16 %v1843
    %v1975 = vunpack.c.h.b16 %v1843
    %v1976 = vunpack.c.l.b16 %v1844
    %v1977 = vunpack.c.l.b16 %v1845
    %v1978 = vunpack.c.h.b16 %v1845
    %v1979 = vunpack.c.l.b16 %v1846
    %v1980 = vunpack.c.l.b16 %v1847
    %v1981 = vunpack.c.h.b16 %v1847
    %v1982 = vunpack.c.l.b16 %v1848
    %v1983 = vunpack.c.l.b16 %v1849
    %v1984 = vunpack.c.h.b16 %v1849
    %v1985 = vunpack.c.l.b16 %v1850
    %v1986 = vunpack.c.l.b16 %v1851
    %v1987 = vunpack.c.h.b16 %v1851
    %v1988 = vunpack.c.l.b16 %v1852
    %v1989 = vunpack.c.l.b16 %v1853
    %v1990 = vunpack.c.h.b16 %v1853
    %v1991 = vunpack.c.l.b16 %v1854
    %v1992 = vunpack.c.l.b16 %v1855
    %v1993 = vunpack.c.h.b16 %v1855
    %v1994 = vunpack.c.l.b16 %v1856
    %v1995 = vpack.c.b16 %v1950, %v1947
    %v1996 = vpack.c.b16 %v1951, %v1948
    %v1997 = vpack.c.b16 %v1952, %v1949
    %v1998 = vpack.c.b16 %v1956, %v1953
    %v1999 = vpack.c.b16 %v1957, %v1954
    %v2000 = vpack.c.b16 %v1958, %v1955
    %v2001 = vpack.c.b16 %v1962, %v1959
    %v2002 = vpack.c.b16 %v1963, %v1960
    %v2003 = vpack.c.b16 %v1964, %v1961
    %v2004 = vpack.c.b16 %v1968, %v1965
    %v2005 = vpack.c.b16 %v1969, %v1966
    %v2006 = vpack.c.b16 %v1970, %v1967
    %v2007 = vpack.c.b16 %v1974, %v1971
    %v2008 = vpack.c.b16 %v1975, %v1972
    %v2009 = vpack.c.b16 %v1976, %v1973
    %v2010 = vpack.c.b16 %v1980, %v1977
    %v2011 = vpack.c.b16 %v1981, %v1978
    %v2012 = vpack.c.b16 %v1982, %v1979
    %v2013 = vpack.c.b16 %v1986, %v1983
    %v2014 = vpack.c.b16 %v1987, %v1984
    %v2015 = vpack.c.b16 %v1988, %v1985
    %v2016 = vpack.c.b16 %v1992, %v1989
    %v2017 = vpack.c.b16 %v1993, %v1990
    %v2018 = vpack.c.b16 %v1994, %v1991
    %2043 = vmatprep.subr.bf16.mxu0 %v2017
    %2044 = vmatpush1.bf16.msra.mxu0 %v2016
    %2045 = vmatprep.subr.bf16.mxu0 %v2014
    %2046 = vmatpush1.bf16.msra.mxu0 %v2013
    %2047 = vmatprep.subr.bf16.mxu0 %v2011
    %2048 = vmatpush1.bf16.msra.mxu0 %v2010
    %2049 = vmatprep.subr.bf16.mxu0 %v2008
    %2050 = vmatpush1.bf16.msra.mxu0 %v2007
    %2051 = vmatprep.subr.bf16.mxu0 %v2005
    %2052 = vmatpush1.bf16.msra.mxu0 %v2004
    %2053 = vmatprep.subr.bf16.mxu0 %v2002
    %2054 = vmatpush1.bf16.msra.mxu0 %v2001
    %2055 = vmatprep.subr.bf16.mxu0 %v1999
    %2056 = vmatpush1.bf16.msra.mxu0 %v1998
    %2057 = vmatprep.subr.bf16.mxu0 %v1996
    %2058 = vmatpush1.bf16.msra.mxu0 %v1995
    %2059 = vmatprep.subr.bf16.mxu0 0
    %2060 = vmatpush2.bf16.msra.mxu0 0
    %2061 = vmatprep.subr.bf16.mxu0 0
    %2062 = vmatpush2.bf16.msra.mxu0 0
    %2063 = vmatprep.subr.bf16.mxu0 0
    %2064 = vmatpush2.bf16.msra.mxu0 0
    %2065 = vmatprep.subr.bf16.mxu0 0
    %2066 = vmatpush2.bf16.msra.mxu0 0
    %2067 = vmatprep.subr.bf16.mxu0 0
    %2068 = vmatpush2.bf16.msra.mxu0 0
    %2069 = vmatprep.subr.bf16.mxu0 0
    %2070 = vmatpush2.bf16.msra.mxu0 0
    %2071 = vmatprep.subr.bf16.mxu0 0
    %2072 = vmatpush2.bf16.msra.mxu0 0
    %2073 = vmatprep.subr.bf16.mxu0 0
    %2074 = vmatpush2.bf16.msra.mxu0 0
    %2075 = vmatprep.mubr.bf16.mxu0 0
    %2076 = vmatmul.mubr.bf16.gmra.mxu0 %v1898
    %v2077 = vpop.f32.mrf.mxu0
    %v2078 = vadd.f32 %v1903, %v2077
    %v2079 = vpop.f32.mrf.mxu0
    %v2080 = vadd.f32 %v1907, %v2079
    %v2081 = vpop.f32.mrf.mxu0
    %v2082 = vadd.f32 %v1903, %v2081
    %v2083 = vpop.f32.mrf.mxu0
    %v2084 = vadd.f32 %v1907, %v2083
    %2085 = vdwg.mxu0
    %2086 = vmatprep.subr.bf16.mxu0 0
    %2087 = vmatpush1.bf16.msra.mxu0 %v2018
    %2088 = vmatprep.subr.bf16.mxu0 0
    %2089 = vmatpush1.bf16.msra.mxu0 %v2015
    %2090 = vmatprep.subr.bf16.mxu0 0
    %2091 = vmatpush1.bf16.msra.mxu0 %v2012
    %2092 = vmatprep.subr.bf16.mxu0 0
    %2093 = vmatpush1.bf16.msra.mxu0 %v2009
    %2094 = vmatprep.subr.bf16.mxu0 0
    %2095 = vmatpush1.bf16.msra.mxu0 %v2006
    %2096 = vmatprep.subr.bf16.mxu0 0
    %2097 = vmatpush1.bf16.msra.mxu0 %v2003
    %2098 = vmatprep.subr.bf16.mxu0 0
    %2099 = vmatpush1.bf16.msra.mxu0 %v2000
    %2100 = vmatprep.subr.bf16.mxu0 0
    %2101 = vmatpush1.bf16.msra.mxu0 %v1997
    %2102 = vmatprep.subr.bf16.mxu0 0
    %2103 = vmatpush2.bf16.msra.mxu0 0
    %2104 = vmatprep.subr.bf16.mxu0 0
    %2105 = vmatpush2.bf16.msra.mxu0 0
    %2106 = vmatprep.subr.bf16.mxu0 0
    %2107 = vmatpush2.bf16.msra.mxu0 0
    %2108 = vmatprep.subr.bf16.mxu0 0
    %2109 = vmatpush2.bf16.msra.mxu0 0
    %2110 = vmatprep.subr.bf16.mxu0 0
    %2111 = vmatpush2.bf16.msra.mxu0 0
    %2112 = vmatprep.subr.bf16.mxu0 0
    %2113 = vmatpush2.bf16.msra.mxu0 0
    %2114 = vmatprep.subr.bf16.mxu0 0
    %2115 = vmatpush2.bf16.msra.mxu0 0
    %2116 = vmatprep.subr.bf16.mxu0 0
    %2117 = vmatpush2.bf16.msra.mxu0 0
    %2118 = vmatprep.mubr.bf16.mxu0 0
    %2119 = vmatmul.mubr.bf16.gmra.mxu0 %v1898
    %v2120 = vpop.f32.mrf.mxu0
    %v2121 = vadd.f32 %v1911, %v2120
    %v2122 = vpop.f32.mrf.mxu0
    %v2123 = vpop.f32.mrf.mxu0
    %v2124 = vadd.f32 %v1911, %v2123
    %v2125 = vpop.f32.mrf.mxu0
    %2126 = vdwg.mxu0
    %v2128 = vsel %vm567, %v2078, 0
    %v2131 = vsel %vm567, %v2082, 0
    %v2134 = vsel %vm567, %v2080, 0
    %v2137 = vsel %vm567, %v2084, 0
    %2139 = vmatprep.subr.mxu0 0.0
    %2140 = vmatpush1.xpose.msra.mxu0 0.0
    %2141 = vmatprep.subr.mxu0 0.0
    %2142 = vmatpush1.xpose.msra.mxu0 0.0
    %2143 = vmatprep.subr.mxu0 0.0
    %2144 = vmatpush1.xpose.msra.mxu0 0.0
    %2145 = vmatprep.subr.mxu0 0.0
    %2146 = vmatpush1.xpose.msra.mxu0 0.0
    %2147 = vmatprep.subr.mxu0 0.0
    %2148 = vmatpush1.xpose.msra.mxu0 0.0
    %2149 = vmatprep.subr.mxu0 0.0
    %2150 = vmatpush1.xpose.msra.mxu0 0.0
    %2151 = vmatprep.subr.mxu0 0.0
    %2152 = vmatpush1.xpose.msra.mxu0 0.0
    %2153 = vmatprep.subr.mxu0 0.0
    %2154 = vmatpush1.xpose.msra.mxu0 0.0
    %2155 = vmatprep.subr.mxu0 0.0
    %2156 = vmatpush1.xpose.msra.mxu0 0.0
    %2157 = vmatprep.subr.mxu0 0.0
    %2158 = vmatpush1.xpose.msra.mxu0 0.0
    %2159 = vmatprep.subr.mxu0 0.0
    %2160 = vmatpush1.xpose.msra.mxu0 0.0
    %2161 = vmatprep.subr.mxu0 0.0
    %2162 = vmatpush1.xpose.msra.mxu0 0.0
    %2163 = vmatprep.subr.mxu0 0.0
    %2164 = vmatpush1.xpose.msra.mxu0 0.0
    %2165 = vmatprep.subr.mxu0 0.0
    %2166 = vmatpush1.xpose.msra.mxu0 0.0
    %2167 = vmatprep.subr.mxu0 0.0
    %2168 = vmatpush1.xpose.msra.mxu0 %v2137
    %2169 = vmatprep.subr.mxu0 0.0
    %2170 = vmatpush1.xpose.msra.mxu0 %v2134
    %2171 = vmatprep.subr.mxu0 0.0
    %2172 = vmatpush2.xpose.msra.mxu0 0.0
    %2173 = vmatprep.subr.mxu0 0.0
    %2174 = vmatpush2.xpose.msra.mxu0 0.0
    %2175 = vmatprep.subr.mxu0 0.0
    %2176 = vmatpush2.xpose.msra.mxu0 0.0
    %2177 = vmatprep.subr.mxu0 0.0
    %2178 = vmatpush2.xpose.msra.mxu0 0.0
    %2179 = vmatprep.subr.mxu0 0.0
    %2180 = vmatpush2.xpose.msra.mxu0 0.0
    %2181 = vmatprep.subr.mxu0 0.0
    %2182 = vmatpush2.xpose.msra.mxu0 0.0
    %2183 = vmatprep.subr.mxu0 0.0
    %2184 = vmatpush2.xpose.msra.mxu0 0.0
    %2185 = vmatprep.subr.mxu0 0.0
    %2186 = vmatpush2.xpose.msra.mxu0 0.0
    %2187 = vmatprep.subr.mxu0 0.0
    %2188 = vmatpush2.xpose.msra.mxu0 0.0
    %2189 = vmatprep.subr.mxu0 0.0
    %2190 = vmatpush2.xpose.msra.mxu0 0.0
    %2191 = vmatprep.subr.mxu0 0.0
    %2192 = vmatpush2.xpose.msra.mxu0 0.0
    %2193 = vmatprep.subr.mxu0 0.0
    %2194 = vmatpush2.xpose.msra.mxu0 0.0
    %2195 = vmatprep.subr.mxu0 0.0
    %2196 = vmatpush2.xpose.msra.mxu0 0.0
    %2197 = vmatprep.subr.mxu0 0.0
    %2198 = vmatpush2.xpose.msra.mxu0 0.0
    %2199 = vmatprep.subr.mxu0 0.0
    %2200 = vmatpush2.xpose.msra.mxu0 0.0
    %2201 = vmatprep.subr.mxu0 0.0
    %2202 = vmatpush2.xpose.msra.mxu0 0.0
    %2203 = vmatprep.mubr.f32.mxu0 0.0
    %2204 = vmatmul.mubr.f32.gmra.mxu0 %v2128
    %v2205 = vpop.f32.mrf.mxu0
    %v2206 = vadd.f32 0.0, %v2205
    %v2207 = vpop.f32.mrf.mxu0
    %2208 = vmatprep.mubr.f32.mxu0 0.0
    %2209 = vmatmul.mubr.f32.gmra.mxu0 %v2131
    %v2210 = vpop.f32.mrf.mxu0
    %v2211 = vadd.f32 0.0, %v2210
    %v2212 = vpop.f32.mrf.mxu0
    %2213 = vdwg.mxu0
    %v2214 = vmul.f32 %v2206, 0.17677669
    %v2215 = vmul.f32 %v2211, 0.17677669
    %v2216 = vadd.f32 %v2214, %v263
    %v2217 = vadd.f32 %v2215, %v264
    %v2218 = vsel %vm659, %v2216, -inf
    %2219 = vmax.xlane.f32.xlu0 %v2218
    %v2220 = vpop.xlane.xlu0 %2219
    %v2221 = vsel %vm659, %v2217, -inf
    %2222 = vmax.xlane.f32.xlu0 %v2221
    %v2223 = vpop.xlane.xlu0 %2222
    %v2224 = vsub.f32 %v2216, %v2220
    %v2225 = vsub.f32 %v2217, %v2223
    %v2226 = vmul.f32 %v2224, 1.442695
    %v2227 = vpow.pop %v2226
    %v2228 = vmul.f32 %v2225, 1.442695
    %v2229 = vpow.pop %v2228
    %v2230 = vsel %vm659, %v2227, 0.0
    %2231 = vadd.xlane.f32.xlu0 %v2230
    %v2232 = vpop.xlane.xlu0 %2231
    %v2233 = vsel %vm659, %v2229, 0.0
    %2234 = vadd.xlane.f32.xlu0 %v2233
    %v2235 = vpop.xlane.xlu0 %2234
    %v2236 = vrcp.pop %v2232
    %v2237 = vrcp.pop %v2235
    %v2238 = vmul.f32 %v2227, %v2236
    %v2239 = vmul.f32 %v2229, %v2237
    %v2240 = vpack.c.bf16 %v2239, %v2238
    %v2241 = vpack.c.bf16 %v2124, %v2121
    %v2243 = vsel %vm659, %v2240, 0
    %2245 = vmatprep.subr.bf16.mxu0 0
    %2246 = vmatpush1.bf16.msra.mxu0 0
    %2247 = vmatprep.subr.bf16.mxu0 0
    %2248 = vmatpush1.bf16.msra.mxu0 0
    %2249 = vmatprep.subr.bf16.mxu0 0
    %2250 = vmatpush1.bf16.msra.mxu0 0
    %2251 = vmatprep.subr.bf16.mxu0 0
    %2252 = vmatpush1.bf16.msra.mxu0 0
    %2253 = vmatprep.subr.bf16.mxu0 0
    %2254 = vmatpush1.bf16.msra.mxu0 0
    %2255 = vmatprep.subr.bf16.mxu0 0
    %2256 = vmatpush1.bf16.msra.mxu0 0
    %2257 = vmatprep.subr.bf16.mxu0 0
    %2258 = vmatpush1.bf16.msra.mxu0 0
    %2259 = vmatprep.subr.bf16.mxu0 0
    %2260 = vmatpush1.bf16.msra.mxu0 %v2241
    %2261 = vmatprep.subr.bf16.mxu0 0
    %2262 = vmatpush2.bf16.msra.mxu0 0
    %2263 = vmatprep.subr.bf16.mxu0 0
    %2264 = vmatpush2.bf16.msra.mxu0 0
    %2265 = vmatprep.subr.bf16.mxu0 0
    %2266 = vmatpush2.bf16.msra.mxu0 0
    %2267 = vmatprep.subr.bf16.mxu0 0
    %2268 = vmatpush2.bf16.msra.mxu0 0
    %2269 = vmatprep.subr.bf16.mxu0 0
    %2270 = vmatpush2.bf16.msra.mxu0 0
    %2271 = vmatprep.subr.bf16.mxu0 0
    %2272 = vmatpush2.bf16.msra.mxu0 0
    %2273 = vmatprep.subr.bf16.mxu0 0
    %2274 = vmatpush2.bf16.msra.mxu0 0
    %2275 = vmatprep.subr.bf16.mxu0 0
    %2276 = vmatpush2.bf16.msra.mxu0 0
    %2277 = vmatprep.mubr.bf16.mxu0 0
    %2278 = vmatmul.mubr.bf16.gmra.mxu0 %v2243
    %v2279 = vpop.f32.mrf.mxu0
    %v2280 = vadd.f32 0.0, %v2279
    %v2281 = vpop.f32.mrf.mxu0
    %v2282 = vpop.f32.mrf.mxu0
    %v2283 = vadd.f32 0.0, %v2282
    %v2284 = vpop.f32.mrf.mxu0
    %2285 = vdwg.mxu0
    %v2286 = vpack.c.bf16 %v2283, %v2280
    %2287 = vrot.lane.b32.xlu0 %v2078, 96
    %v2288 = vpop.permute.xlu0 %2287
    %2289 = vrot.lane.b32.xlu0 %v2082, 96
    %v2290 = vpop.permute.xlu0 %2289
    %2291 = vrot.lane.b32.xlu0 %v2080, 96
    %v2292 = vpop.permute.xlu0 %2291
    %2293 = vrot.lane.b32.xlu0 %v2084, 96
    %v2294 = vpop.permute.xlu0 %2293
    %v2295 = vsel %vm567, %v2288, 0
    %v2297 = vsel %vm567, %v2290, 0
    %v2299 = vsel %vm567, %v2292, 0
    %v2301 = vsel %vm567, %v2294, 0
    %2303 = vmatprep.subr.mxu0 0.0
    %2304 = vmatpush1.xpose.msra.mxu0 0.0
    %2305 = vmatprep.subr.mxu0 0.0
    %2306 = vmatpush1.xpose.msra.mxu0 0.0
    %2307 = vmatprep.subr.mxu0 0.0
    %2308 = vmatpush1.xpose.msra.mxu0 0.0
    %2309 = vmatprep.subr.mxu0 0.0
    %2310 = vmatpush1.xpose.msra.mxu0 0.0
    %2311 = vmatprep.subr.mxu0 0.0
    %2312 = vmatpush1.xpose.msra.mxu0 0.0
    %2313 = vmatprep.subr.mxu0 0.0
    %2314 = vmatpush1.xpose.msra.mxu0 0.0
    %2315 = vmatprep.subr.mxu0 0.0
    %2316 = vmatpush1.xpose.msra.mxu0 0.0
    %2317 = vmatprep.subr.mxu0 0.0
    %2318 = vmatpush1.xpose.msra.mxu0 0.0
    %2319 = vmatprep.subr.mxu0 0.0
    %2320 = vmatpush1.xpose.msra.mxu0 0.0
    %2321 = vmatprep.subr.mxu0 0.0
    %2322 = vmatpush1.xpose.msra.mxu0 0.0
    %2323 = vmatprep.subr.mxu0 0.0
    %2324 = vmatpush1.xpose.msra.mxu0 0.0
    %2325 = vmatprep.subr.mxu0 0.0
    %2326 = vmatpush1.xpose.msra.mxu0 0.0
    %2327 = vmatprep.subr.mxu0 0.0
    %2328 = vmatpush1.xpose.msra.mxu0 0.0
    %2329 = vmatprep.subr.mxu0 0.0
    %2330 = vmatpush1.xpose.msra.mxu0 0.0
    %2331 = vmatprep.subr.mxu0 0.0
    %2332 = vmatpush1.xpose.msra.mxu0 %v2301
    %2333 = vmatprep.subr.mxu0 0.0
    %2334 = vmatpush1.xpose.msra.mxu0 %v2299
    %2335 = vmatprep.subr.mxu0 0.0
    %2336 = vmatpush2.xpose.msra.mxu0 0.0
    %2337 = vmatprep.subr.mxu0 0.0
    %2338 = vmatpush2.xpose.msra.mxu0 0.0
    %2339 = vmatprep.subr.mxu0 0.0
    %2340 = vmatpush2.xpose.msra.mxu0 0.0
    %2341 = vmatprep.subr.mxu0 0.0
    %2342 = vmatpush2.xpose.msra.mxu0 0.0
    %2343 = vmatprep.subr.mxu0 0.0
    %2344 = vmatpush2.xpose.msra.mxu0 0.0
    %2345 = vmatprep.subr.mxu0 0.0
    %2346 = vmatpush2.xpose.msra.mxu0 0.0
    %2347 = vmatprep.subr.mxu0 0.0
    %2348 = vmatpush2.xpose.msra.mxu0 0.0
    %2349 = vmatprep.subr.mxu0 0.0
    %2350 = vmatpush2.xpose.msra.mxu0 0.0
    %2351 = vmatprep.subr.mxu0 0.0
    %2352 = vmatpush2.xpose.msra.mxu0 0.0
    %2353 = vmatprep.subr.mxu0 0.0
    %2354 = vmatpush2.xpose.msra.mxu0 0.0
    %2355 = vmatprep.subr.mxu0 0.0
    %2356 = vmatpush2.xpose.msra.mxu0 0.0
    %2357 = vmatprep.subr.mxu0 0.0
    %2358 = vmatpush2.xpose.msra.mxu0 0.0
    %2359 = vmatprep.subr.mxu0 0.0
    %2360 = vmatpush2.xpose.msra.mxu0 0.0
    %2361 = vmatprep.subr.mxu0 0.0
    %2362 = vmatpush2.xpose.msra.mxu0 0.0
    %2363 = vmatprep.subr.mxu0 0.0
    %2364 = vmatpush2.xpose.msra.mxu0 0.0
    %2365 = vmatprep.subr.mxu0 0.0
    %2366 = vmatpush2.xpose.msra.mxu0 0.0
    %2367 = vmatprep.mubr.f32.mxu0 0.0
    %2368 = vmatmul.mubr.f32.gmra.mxu0 %v2295
    %v2369 = vpop.f32.mrf.mxu0
    %v2370 = vadd.f32 0.0, %v2369
    %v2371 = vpop.f32.mrf.mxu0
    %2372 = vmatprep.mubr.f32.mxu0 0.0
    %2373 = vmatmul.mubr.f32.gmra.mxu0 %v2297
    %v2374 = vpop.f32.mrf.mxu0
    %v2375 = vadd.f32 0.0, %v2374
    %v2376 = vpop.f32.mrf.mxu0
    %2377 = vdwg.mxu0
    %v2378 = vmul.f32 %v2370, 0.17677669
    %v2379 = vmul.f32 %v2375, 0.17677669
    %v2380 = vadd.f32 %v2378, %v263
    %v2381 = vadd.f32 %v2379, %v264
    %v2382 = vsel %vm659, %v2380, -inf
    %2383 = vmax.xlane.f32.xlu0 %v2382
    %v2384 = vpop.xlane.xlu0 %2383
    %v2385 = vsel %vm659, %v2381, -inf
    %2386 = vmax.xlane.f32.xlu0 %v2385
    %v2387 = vpop.xlane.xlu0 %2386
    %v2388 = vsub.f32 %v2380, %v2384
    %v2389 = vsub.f32 %v2381, %v2387
    %v2390 = vmul.f32 %v2388, 1.442695
    %v2391 = vpow.pop %v2390
    %v2392 = vmul.f32 %v2389, 1.442695
    %v2393 = vpow.pop %v2392
    %v2394 = vsel %vm659, %v2391, 0.0
    %2395 = vadd.xlane.f32.xlu0 %v2394
    %v2396 = vpop.xlane.xlu0 %2395
    %v2397 = vsel %vm659, %v2393, 0.0
    %2398 = vadd.xlane.f32.xlu0 %v2397
    %v2399 = vpop.xlane.xlu0 %2398
    %v2400 = vrcp.pop %v2396
    %v2401 = vrcp.pop %v2399
    %v2402 = vmul.f32 %v2391, %v2400
    %v2403 = vmul.f32 %v2393, %v2401
    %v2404 = vpack.c.bf16 %v2403, %v2402
    %2406 = vrot.lane.b32.xlu0 %v2241, 96
    %v2407 = vpop.permute.xlu0 %2406
    %v2410 = vsel %vm659, %v2404, 0
    %2412 = vmatprep.subr.bf16.mxu0 0
    %2413 = vmatpush1.bf16.msra.mxu0 0
    %2414 = vmatprep.subr.bf16.mxu0 0
    %2415 = vmatpush1.bf16.msra.mxu0 0
    %2416 = vmatprep.subr.bf16.mxu0 0
    %2417 = vmatpush1.bf16.msra.mxu0 0
    %2418 = vmatprep.subr.bf16.mxu0 0
    %2419 = vmatpush1.bf16.msra.mxu0 0
    %2420 = vmatprep.subr.bf16.mxu0 0
    %2421 = vmatpush1.bf16.msra.mxu0 0
    %2422 = vmatprep.subr.bf16.mxu0 0
    %2423 = vmatpush1.bf16.msra.mxu0 0
    %2424 = vmatprep.subr.bf16.mxu0 0
    %2425 = vmatpush1.bf16.msra.mxu0 0
    %2426 = vmatprep.subr.bf16.mxu0 0
    %2427 = vmatpush1.bf16.msra.mxu0 %v2407
    %2428 = vmatprep.subr.bf16.mxu0 0
    %2429 = vmatpush2.bf16.msra.mxu0 0
    %2430 = vmatprep.subr.bf16.mxu0 0
    %2431 = vmatpush2.bf16.msra.mxu0 0
    %2432 = vmatprep.subr.bf16.mxu0 0
    %2433 = vmatpush2.bf16.msra.mxu0 0
    %2434 = vmatprep.subr.bf16.mxu0 0
    %2435 = vmatpush2.bf16.msra.mxu0 0
    %2436 = vmatprep.subr.bf16.mxu0 0
    %2437 = vmatpush2.bf16.msra.mxu0 0
    %2438 = vmatprep.subr.bf16.mxu0 0
    %2439 = vmatpush2.bf16.msra.mxu0 0
    %2440 = vmatprep.subr.bf16.mxu0 0
    %2441 = vmatpush2.bf16.msra.mxu0 0
    %2442 = vmatprep.subr.bf16.mxu0 0
    %2443 = vmatpush2.bf16.msra.mxu0 0
    %2444 = vmatprep.mubr.bf16.mxu0 0
    %2445 = vmatmul.mubr.bf16.gmra.mxu0 %v2410
    %v2446 = vpop.f32.mrf.mxu0
    %v2447 = vadd.f32 0.0, %v2446
    %v2448 = vpop.f32.mrf.mxu0
    %v2449 = vpop.f32.mrf.mxu0
    %v2450 = vadd.f32 0.0, %v2449
    %v2451 = vpop.f32.mrf.mxu0
    %2452 = vdwg.mxu0
    %v2453 = vpack.c.bf16 %v2450, %v2447
    %v2458 = vunpack.c.l.b16 %v1861
    %v2459 = vunpack.c.l.b16 %v1862
    %v2460 = vunpack.c.l.b16 %v1863
    %v2461 = vunpack.c.l.b16 %v1864
    %v2462 = vpack.c.b16 %v2459, %v2458
    %v2463 = vpack.c.b16 %v2461, %v2460
    %v2467 = vsel %vm567, %v2453, 0
    %2469 = vmatprep.subr.bf16.mxu0 0
    %2470 = vmatpush1.bf16.msra.mxu0 0
    %2471 = vmatprep.subr.bf16.mxu0 0
    %2472 = vmatpush1.bf16.msra.mxu0 0
    %2473 = vmatprep.subr.bf16.mxu0 0
    %2474 = vmatpush1.bf16.msra.mxu0 0
    %2475 = vmatprep.subr.bf16.mxu0 0
    %2476 = vmatpush1.bf16.msra.mxu0 0
    %2477 = vmatprep.subr.bf16.mxu0 0
    %2478 = vmatpush1.bf16.msra.mxu0 0
    %2479 = vmatprep.subr.bf16.mxu0 0
    %2480 = vmatpush1.bf16.msra.mxu0 0
    %2481 = vmatprep.subr.bf16.mxu0 0
    %2482 = vmatpush1.bf16.msra.mxu0 %v2463
    %2483 = vmatprep.subr.bf16.mxu0 0
    %2484 = vmatpush1.bf16.msra.mxu0 %v2462
    %2485 = vmatprep.subr.bf16.mxu0 0
    %2486 = vmatpush2.bf16.msra.mxu0 0
    %2487 = vmatprep.subr.bf16.mxu0 0
    %2488 = vmatpush2.bf16.msra.mxu0 0
    %2489 = vmatprep.subr.bf16.mxu0 0
    %2490 = vmatpush2.bf16.msra.mxu0 0
    %2491 = vmatprep.subr.bf16.mxu0 0
    %2492 = vmatpush2.bf16.msra.mxu0 0
    %2493 = vmatprep.subr.bf16.mxu0 0
    %2494 = vmatpush2.bf16.msra.mxu0 0
    %2495 = vmatprep.subr.bf16.mxu0 0
    %2496 = vmatpush2.bf16.msra.mxu0 0
    %2497 = vmatprep.subr.bf16.mxu0 0
    %2498 = vmatpush2.bf16.msra.mxu0 0
    %2499 = vmatprep.subr.bf16.mxu0 0
    %2500 = vmatpush2.bf16.msra.mxu0 0
    %2501 = vmatprep.mubr.bf16.mxu0 0
    %2502 = vmatmul.mubr.bf16.gmra.mxu0 %v2467
    %v2503 = vpop.f32.mrf.mxu0
    %v2504 = vadd.f32 0.0, %v2503
    %v2505 = vpop.f32.mrf.mxu0
    %v2506 = vpop.f32.mrf.mxu0
    %v2507 = vadd.f32 0.0, %v2506
    %v2508 = vpop.f32.mrf.mxu0
    %2509 = vdwg.mxu0
    %v2514 = vunpack.c.l.b16 %v1857
    %v2515 = vunpack.c.l.b16 %v1858
    %v2516 = vunpack.c.l.b16 %v1859
    %v2517 = vunpack.c.l.b16 %v1860
    %v2518 = vpack.c.b16 %v2515, %v2514
    %v2519 = vpack.c.b16 %v2517, %v2516
    %v2523 = vsel %vm567, %v2286, 0
    %2525 = vmatprep.subr.bf16.mxu0 0
    %2526 = vmatpush1.bf16.msra.mxu0 0
    %2527 = vmatprep.subr.bf16.mxu0 0
    %2528 = vmatpush1.bf16.msra.mxu0 0
    %2529 = vmatprep.subr.bf16.mxu0 0
    %2530 = vmatpush1.bf16.msra.mxu0 0
    %2531 = vmatprep.subr.bf16.mxu0 0
    %2532 = vmatpush1.bf16.msra.mxu0 0
    %2533 = vmatprep.subr.bf16.mxu0 0
    %2534 = vmatpush1.bf16.msra.mxu0 0
    %2535 = vmatprep.subr.bf16.mxu0 0
    %2536 = vmatpush1.bf16.msra.mxu0 0
    %2537 = vmatprep.subr.bf16.mxu0 0
    %2538 = vmatpush1.bf16.msra.mxu0 %v2519
    %2539 = vmatprep.subr.bf16.mxu0 0
    %2540 = vmatpush1.bf16.msra.mxu0 %v2518
    %2541 = vmatprep.subr.bf16.mxu0 0
    %2542 = vmatpush2.bf16.msra.mxu0 0
    %2543 = vmatprep.subr.bf16.mxu0 0
    %2544 = vmatpush2.bf16.msra.mxu0 0
    %2545 = vmatprep.subr.bf16.mxu0 0
    %2546 = vmatpush2.bf16.msra.mxu0 0
    %2547 = vmatprep.subr.bf16.mxu0 0
    %2548 = vmatpush2.bf16.msra.mxu0 0
    %2549 = vmatprep.subr.bf16.mxu0 0
    %2550 = vmatpush2.bf16.msra.mxu0 0
    %2551 = vmatprep.subr.bf16.mxu0 0
    %2552 = vmatpush2.bf16.msra.mxu0 0
    %2553 = vmatprep.subr.bf16.mxu0 0
    %2554 = vmatpush2.bf16.msra.mxu0 0
    %2555 = vmatprep.subr.bf16.mxu0 0
    %2556 = vmatpush2.bf16.msra.mxu0 0
    %2557 = vmatprep.mubr.bf16.mxu0 0
    %2558 = vmatmul.mubr.bf16.gmra.mxu0 %v2523
    %v2559 = vpop.f32.mrf.mxu0
    %v2560 = vadd.f32 %v2504, %v2559
    %v2561 = vpop.f32.mrf.mxu0
    %v2562 = vpop.f32.mrf.mxu0
    %v2563 = vadd.f32 %v2507, %v2562
    %v2564 = vpop.f32.mrf.mxu0
    %2565 = vdwg.mxu0
    %2566 = vrot.lane.b32.xlu0 %v2078, 64
    %v2567 = vpop.permute.xlu0 %2566
    %2568 = vrot.lane.b32.xlu0 %v2082, 64
    %v2569 = vpop.permute.xlu0 %2568
    %2570 = vrot.lane.b32.xlu0 %v2080, 64
    %v2571 = vpop.permute.xlu0 %2570
    %2572 = vrot.lane.b32.xlu0 %v2084, 64
    %v2573 = vpop.permute.xlu0 %2572
    %v2574 = vsel %vm567, %v2567, 0
    %v2576 = vsel %vm567, %v2569, 0
    %v2578 = vsel %vm567, %v2571, 0
    %v2580 = vsel %vm567, %v2573, 0
    %2582 = vmatprep.subr.mxu0 0.0
    %2583 = vmatpush1.xpose.msra.mxu0 0.0
    %2584 = vmatprep.subr.mxu0 0.0
    %2585 = vmatpush1.xpose.msra.mxu0 0.0
    %2586 = vmatprep.subr.mxu0 0.0
    %2587 = vmatpush1.xpose.msra.mxu0 0.0
    %2588 = vmatprep.subr.mxu0 0.0
    %2589 = vmatpush1.xpose.msra.mxu0 0.0
    %2590 = vmatprep.subr.mxu0 0.0
    %2591 = vmatpush1.xpose.msra.mxu0 0.0
    %2592 = vmatprep.subr.mxu0 0.0
    %2593 = vmatpush1.xpose.msra.mxu0 0.0
    %2594 = vmatprep.subr.mxu0 0.0
    %2595 = vmatpush1.xpose.msra.mxu0 0.0
    %2596 = vmatprep.subr.mxu0 0.0
    %2597 = vmatpush1.xpose.msra.mxu0 0.0
    %2598 = vmatprep.subr.mxu0 0.0
    %2599 = vmatpush1.xpose.msra.mxu0 0.0
    %2600 = vmatprep.subr.mxu0 0.0
    %2601 = vmatpush1.xpose.msra.mxu0 0.0
    %2602 = vmatprep.subr.mxu0 0.0
    %2603 = vmatpush1.xpose.msra.mxu0 0.0
    %2604 = vmatprep.subr.mxu0 0.0
    %2605 = vmatpush1.xpose.msra.mxu0 0.0
    %2606 = vmatprep.subr.mxu0 0.0
    %2607 = vmatpush1.xpose.msra.mxu0 0.0
    %2608 = vmatprep.subr.mxu0 0.0
    %2609 = vmatpush1.xpose.msra.mxu0 0.0
    %2610 = vmatprep.subr.mxu0 0.0
    %2611 = vmatpush1.xpose.msra.mxu0 %v2580
    %2612 = vmatprep.subr.mxu0 0.0
    %2613 = vmatpush1.xpose.msra.mxu0 %v2578
    %2614 = vmatprep.subr.mxu0 0.0
    %2615 = vmatpush2.xpose.msra.mxu0 0.0
    %2616 = vmatprep.subr.mxu0 0.0
    %2617 = vmatpush2.xpose.msra.mxu0 0.0
    %2618 = vmatprep.subr.mxu0 0.0
    %2619 = vmatpush2.xpose.msra.mxu0 0.0
    %2620 = vmatprep.subr.mxu0 0.0
    %2621 = vmatpush2.xpose.msra.mxu0 0.0
    %2622 = vmatprep.subr.mxu0 0.0
    %2623 = vmatpush2.xpose.msra.mxu0 0.0
    %2624 = vmatprep.subr.mxu0 0.0
    %2625 = vmatpush2.xpose.msra.mxu0 0.0
    %2626 = vmatprep.subr.mxu0 0.0
    %2627 = vmatpush2.xpose.msra.mxu0 0.0
    %2628 = vmatprep.subr.mxu0 0.0
    %2629 = vmatpush2.xpose.msra.mxu0 0.0
    %2630 = vmatprep.subr.mxu0 0.0
    %2631 = vmatpush2.xpose.msra.mxu0 0.0
    %2632 = vmatprep.subr.mxu0 0.0
    %2633 = vmatpush2.xpose.msra.mxu0 0.0
    %2634 = vmatprep.subr.mxu0 0.0
    %2635 = vmatpush2.xpose.msra.mxu0 0.0
    %2636 = vmatprep.subr.mxu0 0.0
    %2637 = vmatpush2.xpose.msra.mxu0 0.0
    %2638 = vmatprep.subr.mxu0 0.0
    %2639 = vmatpush2.xpose.msra.mxu0 0.0
    %2640 = vmatprep.subr.mxu0 0.0
    %2641 = vmatpush2.xpose.msra.mxu0 0.0
    %2642 = vmatprep.subr.mxu0 0.0
    %2643 = vmatpush2.xpose.msra.mxu0 0.0
    %2644 = vmatprep.subr.mxu0 0.0
    %2645 = vmatpush2.xpose.msra.mxu0 0.0
    %2646 = vmatprep.mubr.f32.mxu0 0.0
    %2647 = vmatmul.mubr.f32.gmra.mxu0 %v2574
    %v2648 = vpop.f32.mrf.mxu0
    %v2649 = vadd.f32 0.0, %v2648
    %v2650 = vpop.f32.mrf.mxu0
    %2651 = vmatprep.mubr.f32.mxu0 0.0
    %2652 = vmatmul.mubr.f32.gmra.mxu0 %v2576
    %v2653 = vpop.f32.mrf.mxu0
    %v2654 = vadd.f32 0.0, %v2653
    %v2655 = vpop.f32.mrf.mxu0
    %2656 = vdwg.mxu0
    %v2657 = vmul.f32 %v2649, 0.17677669
    %v2658 = vmul.f32 %v2654, 0.17677669
    %v2659 = vadd.f32 %v2657, %v263
    %v2660 = vadd.f32 %v2658, %v264
    %v2661 = vsel %vm659, %v2659, -inf
    %2662 = vmax.xlane.f32.xlu0 %v2661
    %v2663 = vpop.xlane.xlu0 %2662
    %v2664 = vsel %vm659, %v2660, -inf
    %2665 = vmax.xlane.f32.xlu0 %v2664
    %v2666 = vpop.xlane.xlu0 %2665
    %v2667 = vsub.f32 %v2659, %v2663
    %v2668 = vsub.f32 %v2660, %v2666
    %v2669 = vmul.f32 %v2667, 1.442695
    %v2670 = vpow.pop %v2669
    %v2671 = vmul.f32 %v2668, 1.442695
    %v2672 = vpow.pop %v2671
    %v2673 = vsel %vm659, %v2670, 0.0
    %2674 = vadd.xlane.f32.xlu0 %v2673
    %v2675 = vpop.xlane.xlu0 %2674
    %v2676 = vsel %vm659, %v2672, 0.0
    %2677 = vadd.xlane.f32.xlu0 %v2676
    %v2678 = vpop.xlane.xlu0 %2677
    %v2679 = vrcp.pop %v2675
    %v2680 = vrcp.pop %v2678
    %v2681 = vmul.f32 %v2670, %v2679
    %v2682 = vmul.f32 %v2672, %v2680
    %v2683 = vpack.c.bf16 %v2682, %v2681
    %2684 = vrot.lane.b32.xlu0 %v2241, 64
    %v2685 = vpop.permute.xlu0 %2684
    %v2688 = vsel %vm659, %v2683, 0
    %2690 = vmatprep.subr.bf16.mxu0 0
    %2691 = vmatpush1.bf16.msra.mxu0 0
    %2692 = vmatprep.subr.bf16.mxu0 0
    %2693 = vmatpush1.bf16.msra.mxu0 0
    %2694 = vmatprep.subr.bf16.mxu0 0
    %2695 = vmatpush1.bf16.msra.mxu0 0
    %2696 = vmatprep.subr.bf16.mxu0 0
    %2697 = vmatpush1.bf16.msra.mxu0 0
    %2698 = vmatprep.subr.bf16.mxu0 0
    %2699 = vmatpush1.bf16.msra.mxu0 0
    %2700 = vmatprep.subr.bf16.mxu0 0
    %2701 = vmatpush1.bf16.msra.mxu0 0
    %2702 = vmatprep.subr.bf16.mxu0 0
    %2703 = vmatpush1.bf16.msra.mxu0 0
    %2704 = vmatprep.subr.bf16.mxu0 0
    %2705 = vmatpush1.bf16.msra.mxu0 %v2685
    %2706 = vmatprep.subr.bf16.mxu0 0
    %2707 = vmatpush2.bf16.msra.mxu0 0
    %2708 = vmatprep.subr.bf16.mxu0 0
    %2709 = vmatpush2.bf16.msra.mxu0 0
    %2710 = vmatprep.subr.bf16.mxu0 0
    %2711 = vmatpush2.bf16.msra.mxu0 0
    %2712 = vmatprep.subr.bf16.mxu0 0
    %2713 = vmatpush2.bf16.msra.mxu0 0
    %2714 = vmatprep.subr.bf16.mxu0 0
    %2715 = vmatpush2.bf16.msra.mxu0 0
    %2716 = vmatprep.subr.bf16.mxu0 0
    %2717 = vmatpush2.bf16.msra.mxu0 0
    %2718 = vmatprep.subr.bf16.mxu0 0
    %2719 = vmatpush2.bf16.msra.mxu0 0
    %2720 = vmatprep.subr.bf16.mxu0 0
    %2721 = vmatpush2.bf16.msra.mxu0 0
    %2722 = vmatprep.mubr.bf16.mxu0 0
    %2723 = vmatmul.mubr.bf16.gmra.mxu0 %v2688
    %v2724 = vpop.f32.mrf.mxu0
    %v2725 = vadd.f32 0.0, %v2724
    %v2726 = vpop.f32.mrf.mxu0
    %v2727 = vpop.f32.mrf.mxu0
    %v2728 = vadd.f32 0.0, %v2727
    %v2729 = vpop.f32.mrf.mxu0
    %2730 = vdwg.mxu0
    %v2731 = vpack.c.bf16 %v2728, %v2725
    %v2736 = vunpack.c.l.b16 %v1865
    %v2737 = vunpack.c.l.b16 %v1866
    %v2738 = vunpack.c.l.b16 %v1867
    %v2739 = vunpack.c.l.b16 %v1868
    %v2740 = vpack.c.b16 %v2737, %v2736
    %v2741 = vpack.c.b16 %v2739, %v2738
    %v2745 = vsel %vm567, %v2731, 0
    %2747 = vmatprep.subr.bf16.mxu0 0
    %2748 = vmatpush1.bf16.msra.mxu0 0
    %2749 = vmatprep.subr.bf16.mxu0 0
    %2750 = vmatpush1.bf16.msra.mxu0 0
    %2751 = vmatprep.subr.bf16.mxu0 0
    %2752 = vmatpush1.bf16.msra.mxu0 0
    %2753 = vmatprep.subr.bf16.mxu0 0
    %2754 = vmatpush1.bf16.msra.mxu0 0
    %2755 = vmatprep.subr.bf16.mxu0 0
    %2756 = vmatpush1.bf16.msra.mxu0 0
    %2757 = vmatprep.subr.bf16.mxu0 0
    %2758 = vmatpush1.bf16.msra.mxu0 0
    %2759 = vmatprep.subr.bf16.mxu0 0
    %2760 = vmatpush1.bf16.msra.mxu0 %v2741
    %2761 = vmatprep.subr.bf16.mxu0 0
    %2762 = vmatpush1.bf16.msra.mxu0 %v2740
    %2763 = vmatprep.subr.bf16.mxu0 0
    %2764 = vmatpush2.bf16.msra.mxu0 0
    %2765 = vmatprep.subr.bf16.mxu0 0
    %2766 = vmatpush2.bf16.msra.mxu0 0
    %2767 = vmatprep.subr.bf16.mxu0 0
    %2768 = vmatpush2.bf16.msra.mxu0 0
    %2769 = vmatprep.subr.bf16.mxu0 0
    %2770 = vmatpush2.bf16.msra.mxu0 0
    %2771 = vmatprep.subr.bf16.mxu0 0
    %2772 = vmatpush2.bf16.msra.mxu0 0
    %2773 = vmatprep.subr.bf16.mxu0 0
    %2774 = vmatpush2.bf16.msra.mxu0 0
    %2775 = vmatprep.subr.bf16.mxu0 0
    %2776 = vmatpush2.bf16.msra.mxu0 0
    %2777 = vmatprep.subr.bf16.mxu0 0
    %2778 = vmatpush2.bf16.msra.mxu0 0
    %2779 = vmatprep.mubr.bf16.mxu0 0
    %2780 = vmatmul.mubr.bf16.gmra.mxu0 %v2745
    %v2781 = vpop.f32.mrf.mxu0
    %v2782 = vadd.f32 0.0, %v2781
    %v2783 = vpop.f32.mrf.mxu0
    %v2784 = vpop.f32.mrf.mxu0
    %v2785 = vadd.f32 0.0, %v2784
    %v2786 = vpop.f32.mrf.mxu0
    %2787 = vdwg.mxu0
    %v2788 = vadd.f32 %v2560, %v2782
    %v2789 = vadd.f32 %v2563, %v2785
    %2790 = vrot.lane.b32.xlu0 %v2078, 32
    %v2791 = vpop.permute.xlu0 %2790
    %2792 = vrot.lane.b32.xlu0 %v2082, 32
    %v2793 = vpop.permute.xlu0 %2792
    %2794 = vrot.lane.b32.xlu0 %v2080, 32
    %v2795 = vpop.permute.xlu0 %2794
    %2796 = vrot.lane.b32.xlu0 %v2084, 32
    %v2797 = vpop.permute.xlu0 %2796
    %v2798 = vsel %vm567, %v2791, 0
    %v2800 = vsel %vm567, %v2793, 0
    %v2802 = vsel %vm567, %v2795, 0
    %v2804 = vsel %vm567, %v2797, 0
    %2806 = vmatprep.subr.mxu0 0.0
    %2807 = vmatpush1.xpose.msra.mxu0 0.0
    %2808 = vmatprep.subr.mxu0 0.0
    %2809 = vmatpush1.xpose.msra.mxu0 0.0
    %2810 = vmatprep.subr.mxu0 0.0
    %2811 = vmatpush1.xpose.msra.mxu0 0.0
    %2812 = vmatprep.subr.mxu0 0.0
    %2813 = vmatpush1.xpose.msra.mxu0 0.0
    %2814 = vmatprep.subr.mxu0 0.0
    %2815 = vmatpush1.xpose.msra.mxu0 0.0
    %2816 = vmatprep.subr.mxu0 0.0
    %2817 = vmatpush1.xpose.msra.mxu0 0.0
    %2818 = vmatprep.subr.mxu0 0.0
    %2819 = vmatpush1.xpose.msra.mxu0 0.0
    %2820 = vmatprep.subr.mxu0 0.0
    %2821 = vmatpush1.xpose.msra.mxu0 0.0
    %2822 = vmatprep.subr.mxu0 0.0
    %2823 = vmatpush1.xpose.msra.mxu0 0.0
    %2824 = vmatprep.subr.mxu0 0.0
    %2825 = vmatpush1.xpose.msra.mxu0 0.0
    %2826 = vmatprep.subr.mxu0 0.0
    %2827 = vmatpush1.xpose.msra.mxu0 0.0
    %2828 = vmatprep.subr.mxu0 0.0
    %2829 = vmatpush1.xpose.msra.mxu0 0.0
    %2830 = vmatprep.subr.mxu0 0.0
    %2831 = vmatpush1.xpose.msra.mxu0 0.0
    %2832 = vmatprep.subr.mxu0 0.0
    %2833 = vmatpush1.xpose.msra.mxu0 0.0
    %2834 = vmatprep.subr.mxu0 0.0
    %2835 = vmatpush1.xpose.msra.mxu0 %v2804
    %2836 = vmatprep.subr.mxu0 0.0
    %2837 = vmatpush1.xpose.msra.mxu0 %v2802
    %2838 = vmatprep.subr.mxu0 0.0
    %2839 = vmatpush2.xpose.msra.mxu0 0.0
    %2840 = vmatprep.subr.mxu0 0.0
    %2841 = vmatpush2.xpose.msra.mxu0 0.0
    %2842 = vmatprep.subr.mxu0 0.0
    %2843 = vmatpush2.xpose.msra.mxu0 0.0
    %2844 = vmatprep.subr.mxu0 0.0
    %2845 = vmatpush2.xpose.msra.mxu0 0.0
    %2846 = vmatprep.subr.mxu0 0.0
    %2847 = vmatpush2.xpose.msra.mxu0 0.0
    %2848 = vmatprep.subr.mxu0 0.0
    %2849 = vmatpush2.xpose.msra.mxu0 0.0
    %2850 = vmatprep.subr.mxu0 0.0
    %2851 = vmatpush2.xpose.msra.mxu0 0.0
    %2852 = vmatprep.subr.mxu0 0.0
    %2853 = vmatpush2.xpose.msra.mxu0 0.0
    %2854 = vmatprep.subr.mxu0 0.0
    %2855 = vmatpush2.xpose.msra.mxu0 0.0
    %2856 = vmatprep.subr.mxu0 0.0
    %2857 = vmatpush2.xpose.msra.mxu0 0.0
    %2858 = vmatprep.subr.mxu0 0.0
    %2859 = vmatpush2.xpose.msra.mxu0 0.0
    %2860 = vmatprep.subr.mxu0 0.0
    %2861 = vmatpush2.xpose.msra.mxu0 0.0
    %2862 = vmatprep.subr.mxu0 0.0
    %2863 = vmatpush2.xpose.msra.mxu0 0.0
    %2864 = vmatprep.subr.mxu0 0.0
    %2865 = vmatpush2.xpose.msra.mxu0 0.0
    %2866 = vmatprep.subr.mxu0 0.0
    %2867 = vmatpush2.xpose.msra.mxu0 0.0
    %2868 = vmatprep.subr.mxu0 0.0
    %2869 = vmatpush2.xpose.msra.mxu0 0.0
    %2870 = vmatprep.mubr.f32.mxu0 0.0
    %2871 = vmatmul.mubr.f32.gmra.mxu0 %v2798
    %v2872 = vpop.f32.mrf.mxu0
    %v2873 = vadd.f32 0.0, %v2872
    %v2874 = vpop.f32.mrf.mxu0
    %2875 = vmatprep.mubr.f32.mxu0 0.0
    %2876 = vmatmul.mubr.f32.gmra.mxu0 %v2800
    %v2877 = vpop.f32.mrf.mxu0
    %v2878 = vadd.f32 0.0, %v2877
    %v2879 = vpop.f32.mrf.mxu0
    %2880 = vdwg.mxu0
    %v2881 = vmul.f32 %v2873, 0.17677669
    %v2882 = vmul.f32 %v2878, 0.17677669
    %v2883 = vadd.f32 %v2881, %v263
    %v2884 = vadd.f32 %v2882, %v264
    %v2885 = vsel %vm659, %v2883, -inf
    %2886 = vmax.xlane.f32.xlu0 %v2885
    %v2887 = vpop.xlane.xlu0 %2886
    %v2888 = vsel %vm659, %v2884, -inf
    %2889 = vmax.xlane.f32.xlu0 %v2888
    %v2890 = vpop.xlane.xlu0 %2889
    %v2891 = vsub.f32 %v2883, %v2887
    %v2892 = vsub.f32 %v2884, %v2890
    %v2893 = vmul.f32 %v2891, 1.442695
    %v2894 = vpow.pop %v2893
    %v2895 = vmul.f32 %v2892, 1.442695
    %v2896 = vpow.pop %v2895
    %v2897 = vsel %vm659, %v2894, 0.0
    %2898 = vadd.xlane.f32.xlu0 %v2897
    %v2899 = vpop.xlane.xlu0 %2898
    %v2900 = vsel %vm659, %v2896, 0.0
    %2901 = vadd.xlane.f32.xlu0 %v2900
    %v2902 = vpop.xlane.xlu0 %2901
    %v2903 = vrcp.pop %v2899
    %v2904 = vrcp.pop %v2902
    %v2905 = vmul.f32 %v2894, %v2903
    %v2906 = vmul.f32 %v2896, %v2904
    %v2907 = vpack.c.bf16 %v2906, %v2905
    %2908 = vrot.lane.b32.xlu0 %v2241, 32
    %v2909 = vpop.permute.xlu0 %2908
    %v2912 = vsel %vm659, %v2907, 0
    %2914 = vmatprep.subr.bf16.mxu0 0
    %2915 = vmatpush1.bf16.msra.mxu0 0
    %2916 = vmatprep.subr.bf16.mxu0 0
    %2917 = vmatpush1.bf16.msra.mxu0 0
    %2918 = vmatprep.subr.bf16.mxu0 0
    %2919 = vmatpush1.bf16.msra.mxu0 0
    %2920 = vmatprep.subr.bf16.mxu0 0
    %2921 = vmatpush1.bf16.msra.mxu0 0
    %2922 = vmatprep.subr.bf16.mxu0 0
    %2923 = vmatpush1.bf16.msra.mxu0 0
    %2924 = vmatprep.subr.bf16.mxu0 0
    %2925 = vmatpush1.bf16.msra.mxu0 0
    %2926 = vmatprep.subr.bf16.mxu0 0
    %2927 = vmatpush1.bf16.msra.mxu0 0
    %2928 = vmatprep.subr.bf16.mxu0 0
    %2929 = vmatpush1.bf16.msra.mxu0 %v2909
    %2930 = vmatprep.subr.bf16.mxu0 0
    %2931 = vmatpush2.bf16.msra.mxu0 0
    %2932 = vmatprep.subr.bf16.mxu0 0
    %2933 = vmatpush2.bf16.msra.mxu0 0
    %2934 = vmatprep.subr.bf16.mxu0 0
    %2935 = vmatpush2.bf16.msra.mxu0 0
    %2936 = vmatprep.subr.bf16.mxu0 0
    %2937 = vmatpush2.bf16.msra.mxu0 0
    %2938 = vmatprep.subr.bf16.mxu0 0
    %2939 = vmatpush2.bf16.msra.mxu0 0
    %2940 = vmatprep.subr.bf16.mxu0 0
    %2941 = vmatpush2.bf16.msra.mxu0 0
    %2942 = vmatprep.subr.bf16.mxu0 0
    %2943 = vmatpush2.bf16.msra.mxu0 0
    %2944 = vmatprep.subr.bf16.mxu0 0
    %2945 = vmatpush2.bf16.msra.mxu0 0
    %2946 = vmatprep.mubr.bf16.mxu0 0
    %2947 = vmatmul.mubr.bf16.gmra.mxu0 %v2912
    %v2948 = vpop.f32.mrf.mxu0
    %v2949 = vadd.f32 0.0, %v2948
    %v2950 = vpop.f32.mrf.mxu0
    %v2951 = vpop.f32.mrf.mxu0
    %v2952 = vadd.f32 0.0, %v2951
    %v2953 = vpop.f32.mrf.mxu0
    %2954 = vdwg.mxu0
    %v2955 = vpack.c.bf16 %v2952, %v2949
    %v2960 = vunpack.c.l.b16 %v1869
    %v2961 = vunpack.c.l.b16 %v1870
    %v2962 = vunpack.c.l.b16 %v1871
    %v2963 = vunpack.c.l.b16 %v1872
    %v2964 = vpack.c.b16 %v2961, %v2960
    %v2965 = vpack.c.b16 %v2963, %v2962
    %v2969 = vsel %vm567, %v2955, 0
    %2971 = vmatprep.subr.bf16.mxu0 0
    %2972 = vmatpush1.bf16.msra.mxu0 0
    %2973 = vmatprep.subr.bf16.mxu0 0
    %2974 = vmatpush1.bf16.msra.mxu0 0
    %2975 = vmatprep.subr.bf16.mxu0 0
    %2976 = vmatpush1.bf16.msra.mxu0 0
    %2977 = vmatprep.subr.bf16.mxu0 0
    %2978 = vmatpush1.bf16.msra.mxu0 0
    %2979 = vmatprep.subr.bf16.mxu0 0
    %2980 = vmatpush1.bf16.msra.mxu0 0
    %2981 = vmatprep.subr.bf16.mxu0 0
    %2982 = vmatpush1.bf16.msra.mxu0 0
    %2983 = vmatprep.subr.bf16.mxu0 0
    %2984 = vmatpush1.bf16.msra.mxu0 %v2965
    %2985 = vmatprep.subr.bf16.mxu0 0
    %2986 = vmatpush1.bf16.msra.mxu0 %v2964
    %2987 = vmatprep.subr.bf16.mxu0 0
    %2988 = vmatpush2.bf16.msra.mxu0 0
    %2989 = vmatprep.subr.bf16.mxu0 0
    %2990 = vmatpush2.bf16.msra.mxu0 0
    %2991 = vmatprep.subr.bf16.mxu0 0
    %2992 = vmatpush2.bf16.msra.mxu0 0
    %2993 = vmatprep.subr.bf16.mxu0 0
    %2994 = vmatpush2.bf16.msra.mxu0 0
    %2995 = vmatprep.subr.bf16.mxu0 0
    %2996 = vmatpush2.bf16.msra.mxu0 0
    %2997 = vmatprep.subr.bf16.mxu0 0
    %2998 = vmatpush2.bf16.msra.mxu0 0
    %2999 = vmatprep.subr.bf16.mxu0 0
    %3000 = vmatpush2.bf16.msra.mxu0 0
    %3001 = vmatprep.subr.bf16.mxu0 0
    %3002 = vmatpush2.bf16.msra.mxu0 0
    %3003 = vmatprep.mubr.bf16.mxu0 0
    %3004 = vmatmul.mubr.bf16.gmra.mxu0 %v2969
    %v3005 = vpop.f32.mrf.mxu0
    %v3006 = vadd.f32 0.0, %v3005
    %v3007 = vpop.f32.mrf.mxu0
    %v3008 = vpop.f32.mrf.mxu0
    %v3009 = vadd.f32 0.0, %v3008
    %v3010 = vpop.f32.mrf.mxu0
    %3011 = vdwg.mxu0
    %v3012 = vadd.f32 %v2788, %v3006
    %v3013 = vadd.f32 %v2789, %v3009
    %v3014 = vadd.f32 %v1823, %v3012
    %v3015 = vadd.f32 %v1824, %v3013
    %v3016 = vadd.f32 %v3014, %v1892
    %v3017 = vadd.f32 %v3015, %v1892
    %3018 = vadd.xlane.f32.xlu0 %v3016
    %v3019 = vpop.xlane.xlu0 %3018
    %3020 = vadd.xlane.f32.xlu0 %v3017
    %v3021 = vpop.xlane.xlu0 %3020
    %v3022 = vmul.f32 %v3019, %v1464
    %v3023 = vmul.f32 %v3021, %v1464
    %v3024 = vsub.f32 %v3016, %v3022
    %v3025 = vsub.f32 %v3017, %v3023
    %v3026 = vmul.f32 %v3024, %v3024
    %v3027 = vmul.f32 %v3025, %v3025
    %3028 = vadd.xlane.f32.xlu0 %v3026
    %v3029 = vpop.xlane.xlu0 %3028
    %3030 = vadd.xlane.f32.xlu0 %v3027
    %v3031 = vpop.xlane.xlu0 %3030
    %v3032 = vmul.f32 %v3029, %v1464
    %v3033 = vmul.f32 %v3031, %v1464
    %v3034 = vadd.f32 %v3032, 1e-05
    %v3035 = vadd.f32 %v3033, 1e-05
    %v3036 = vrsqrt.pop %v3034
    %v3037 = vrsqrt.pop %v3035
    %v3038 = vmul.f32 %v3024, %v3036
    %v3039 = vmul.f32 %v3025, %v3037
    %v3040 = vmul.f32 %v3038, %v1893
    %v3041 = vmul.f32 %v3039, %v1893
    %v3042 = vadd.f32 %v3040, %v1894
    %v3043 = vadd.f32 %v3041, %v1894
    %v3044 = vpack.c.bf16 %v3043, %v3042
    %v3046 = vlaneseq
    %v3047 = vshrl.u32 %v3046, 7
    %v3048 = vsub.s32 0, %v3047
    %v3049 = vrot.slane %v1891, %v3048
    %v3050 = vlaneseq
    %v3051 = vshrl.u32 %v3050, 7
    %v3052 = vsub.s32 1, %v3051
    %v3053 = vrot.slane %v1891, %v3052
    %v3072 = vunpack.c.l.b16 %v1873
    %v3073 = vunpack.c.h.b16 %v1873
    %v3074 = vunpack.c.l.b16 %v1874
    %v3075 = vunpack.c.h.b16 %v1874
    %v3076 = vunpack.c.l.b16 %v1875
    %v3077 = vunpack.c.h.b16 %v1875
    %v3078 = vunpack.c.l.b16 %v1876
    %v3079 = vunpack.c.h.b16 %v1876
    %v3080 = vunpack.c.l.b16 %v1877
    %v3081 = vunpack.c.h.b16 %v1877
    %v3082 = vunpack.c.l.b16 %v1878
    %v3083 = vunpack.c.h.b16 %v1878
    %v3084 = vunpack.c.l.b16 %v1879
    %v3085 = vunpack.c.h.b16 %v1879
    %v3086 = vunpack.c.l.b16 %v1880
    %v3087 = vunpack.c.h.b16 %v1880
    %v3088 = vunpack.c.l.b16 %v1881
    %v3089 = vunpack.c.h.b16 %v1881
    %v3090 = vunpack.c.l.b16 %v1882
    %v3091 = vunpack.c.h.b16 %v1882
    %v3092 = vunpack.c.l.b16 %v1883
    %v3093 = vunpack.c.h.b16 %v1883
    %v3094 = vunpack.c.l.b16 %v1884
    %v3095 = vunpack.c.h.b16 %v1884
    %v3096 = vunpack.c.l.b16 %v1885
    %v3097 = vunpack.c.h.b16 %v1885
    %v3098 = vunpack.c.l.b16 %v1886
    %v3099 = vunpack.c.h.b16 %v1886
    %v3100 = vunpack.c.l.b16 %v1887
    %v3101 = vunpack.c.h.b16 %v1887
    %v3102 = vunpack.c.l.b16 %v1888
    %v3103 = vunpack.c.h.b16 %v1888
    %v3104 = vpack.c.b16 %v3074, %v3072
    %v3105 = vpack.c.b16 %v3075, %v3073
    %v3106 = vpack.c.b16 %v3078, %v3076
    %v3107 = vpack.c.b16 %v3079, %v3077
    %v3108 = vpack.c.b16 %v3082, %v3080
    %v3109 = vpack.c.b16 %v3083, %v3081
    %v3110 = vpack.c.b16 %v3086, %v3084
    %v3111 = vpack.c.b16 %v3087, %v3085
    %v3112 = vpack.c.b16 %v3090, %v3088
    %v3113 = vpack.c.b16 %v3091, %v3089
    %v3114 = vpack.c.b16 %v3094, %v3092
    %v3115 = vpack.c.b16 %v3095, %v3093
    %v3116 = vpack.c.b16 %v3098, %v3096
    %v3117 = vpack.c.b16 %v3099, %v3097
    %v3118 = vpack.c.b16 %v3102, %v3100
    %v3119 = vpack.c.b16 %v3103, %v3101
    %3136 = vmatprep.subr.bf16.mxu0 %v3119
    %3137 = vmatpush1.bf16.msra.mxu0 %v3118
    %3138 = vmatprep.subr.bf16.mxu0 %v3117
    %3139 = vmatpush1.bf16.msra.mxu0 %v3116
    %3140 = vmatprep.subr.bf16.mxu0 %v3115
    %3141 = vmatpush1.bf16.msra.mxu0 %v3114
    %3142 = vmatprep.subr.bf16.mxu0 %v3113
    %3143 = vmatpush1.bf16.msra.mxu0 %v3112
    %3144 = vmatprep.subr.bf16.mxu0 %v3111
    %3145 = vmatpush1.bf16.msra.mxu0 %v3110
    %3146 = vmatprep.subr.bf16.mxu0 %v3109
    %3147 = vmatpush1.bf16.msra.mxu0 %v3108
    %3148 = vmatprep.subr.bf16.mxu0 %v3107
    %3149 = vmatpush1.bf16.msra.mxu0 %v3106
    %3150 = vmatprep.subr.bf16.mxu0 %v3105
    %3151 = vmatpush1.bf16.msra.mxu0 %v3104
    %3152 = vmatprep.subr.bf16.mxu0 0
    %3153 = vmatpush2.bf16.msra.mxu0 0
    %3154 = vmatprep.subr.bf16.mxu0 0
    %3155 = vmatpush2.bf16.msra.mxu0 0
    %3156 = vmatprep.subr.bf16.mxu0 0
    %3157 = vmatpush2.bf16.msra.mxu0 0
    %3158 = vmatprep.subr.bf16.mxu0 0
    %3159 = vmatpush2.bf16.msra.mxu0 0
    %3160 = vmatprep.subr.bf16.mxu0 0
    %3161 = vmatpush2.bf16.msra.mxu0 0
    %3162 = vmatprep.subr.bf16.mxu0 0
    %3163 = vmatpush2.bf16.msra.mxu0 0
    %3164 = vmatprep.subr.bf16.mxu0 0
    %3165 = vmatpush2.bf16.msra.mxu0 0
    %3166 = vmatprep.subr.bf16.mxu0 0
    %3167 = vmatpush2.bf16.msra.mxu0 0
    %3168 = vmatprep.mubr.bf16.mxu0 0
    %3169 = vmatmul.mubr.bf16.gmra.mxu0 %v3044
    %v3170 = vpop.f32.mrf.mxu0
    %v3171 = vadd.f32 %v3049, %v3170
    %v3172 = vpop.f32.mrf.mxu0
    %v3173 = vadd.f32 %v3053, %v3172
    %v3174 = vpop.f32.mrf.mxu0
    %v3175 = vadd.f32 %v3049, %v3174
    %v3176 = vpop.f32.mrf.mxu0
    %v3177 = vadd.f32 %v3053, %v3176
    %3178 = vdwg.mxu0
    %v3179 = vmax.f32 %v3171, 0.0
    %v3180 = vmax.f32 %v3173, 0.0
    %v3181 = vmax.f32 %v3175, 0.0
    %v3182 = vmax.f32 %v3177, 0.0
    %v3183 = vpack.c.bf16 %v3181, %v3179
    %v3184 = vpack.c.bf16 %v3182, %v3180
    %v3185 = vld [vmem:[#allocation13] sm:$0xf]
    %v3186 = vld [vmem:[#allocation13 + $0x4] sm:$0xf]
    %v3187 = vld [vmem:[#allocation13 + $0x8] sm:$0xf]
    %v3188 = vld [vmem:[#allocation13 + $0xc] sm:$0xf]
    %v3189 = vld [vmem:[#allocation13 + $0x10] sm:$0xf]
    %v3190 = vld [vmem:[#allocation13 + $0x14] sm:$0xf]
    %v3191 = vld [vmem:[#allocation13 + $0x18] sm:$0xf]
    %v3192 = vld [vmem:[#allocation13 + $0x1c] sm:$0xf]
    %v3193 = vld [vmem:[#allocation13 + $0x20] sm:$0xf]
    %v3194 = vld [vmem:[#allocation13 + $0x24] sm:$0xf]
    %v3195 = vld [vmem:[#allocation13 + $0x28] sm:$0xf]
    %v3196 = vld [vmem:[#allocation13 + $0x2c] sm:$0xf]
    %v3197 = vld [vmem:[#allocation13 + $0x30] sm:$0xf]
    %v3198 = vld [vmem:[#allocation13 + $0x34] sm:$0xf]
    %v3199 = vld [vmem:[#allocation13 + $0x38] sm:$0xf]
    %v3200 = vld [vmem:[#allocation13 + $0x3c] sm:$0xf]
    %v3201 = vld [vmem:[#allocation13 + $0x40] sm:$0xf]
    %v3202 = vld [vmem:[#allocation13 + $0x44] sm:$0xf]
    %v3203 = vld [vmem:[#allocation13 + $0x48] sm:$0xf]
    %v3204 = vld [vmem:[#allocation13 + $0x4c] sm:$0xf]
    %v3205 = vld [vmem:[#allocation13 + $0x50] sm:$0xf]
    %v3206 = vld [vmem:[#allocation13 + $0x54] sm:$0xf]
    %v3207 = vld [vmem:[#allocation13 + $0x58] sm:$0xf]
    %v3208 = vld [vmem:[#allocation13 + $0x5c] sm:$0xf]
    %v3209 = vld [vmem:[#allocation13 + $0x60] sm:$0xf]
    %v3210 = vld [vmem:[#allocation13 + $0x64] sm:$0xf]
    %v3211 = vld [vmem:[#allocation13 + $0x68] sm:$0xf]
    %v3212 = vld [vmem:[#allocation13 + $0x6c] sm:$0xf]
    %v3213 = vld [vmem:[#allocation13 + $0x70] sm:$0xf]
    %v3214 = vld [vmem:[#allocation13 + $0x74] sm:$0xf]
    %v3215 = vld [vmem:[#allocation13 + $0x78] sm:$0xf]
    %v3216 = vld [vmem:[#allocation13 + $0x7c] sm:$0xf]
    %v3249 = vunpack.c.l.b16 %v3185
    %v3250 = vunpack.c.l.b16 %v3186
    %v3251 = vunpack.c.l.b16 %v3187
    %v3252 = vunpack.c.l.b16 %v3188
    %v3253 = vunpack.c.l.b16 %v3189
    %v3254 = vunpack.c.l.b16 %v3190
    %v3255 = vunpack.c.l.b16 %v3191
    %v3256 = vunpack.c.l.b16 %v3192
    %v3257 = vunpack.c.l.b16 %v3193
    %v3258 = vunpack.c.l.b16 %v3194
    %v3259 = vunpack.c.l.b16 %v3195
    %v3260 = vunpack.c.l.b16 %v3196
    %v3261 = vunpack.c.l.b16 %v3197
    %v3262 = vunpack.c.l.b16 %v3198
    %v3263 = vunpack.c.l.b16 %v3199
    %v3264 = vunpack.c.l.b16 %v3200
    %v3265 = vunpack.c.l.b16 %v3201
    %v3266 = vunpack.c.l.b16 %v3202
    %v3267 = vunpack.c.l.b16 %v3203
    %v3268 = vunpack.c.l.b16 %v3204
    %v3269 = vunpack.c.l.b16 %v3205
    %v3270 = vunpack.c.l.b16 %v3206
    %v3271 = vunpack.c.l.b16 %v3207
    %v3272 = vunpack.c.l.b16 %v3208
    %v3273 = vunpack.c.l.b16 %v3209
    %v3274 = vunpack.c.l.b16 %v3210
    %v3275 = vunpack.c.l.b16 %v3211
    %v3276 = vunpack.c.l.b16 %v3212
    %v3277 = vunpack.c.l.b16 %v3213
    %v3278 = vunpack.c.l.b16 %v3214
    %v3279 = vunpack.c.l.b16 %v3215
    %v3280 = vunpack.c.l.b16 %v3216
    %v3281 = vpack.c.b16 %v3250, %v3249
    %v3282 = vpack.c.b16 %v3252, %v3251
    %v3283 = vpack.c.b16 %v3254, %v3253
    %v3284 = vpack.c.b16 %v3256, %v3255
    %v3285 = vpack.c.b16 %v3258, %v3257
    %v3286 = vpack.c.b16 %v3260, %v3259
    %v3287 = vpack.c.b16 %v3262, %v3261
    %v3288 = vpack.c.b16 %v3264, %v3263
    %v3289 = vpack.c.b16 %v3266, %v3265
    %v3290 = vpack.c.b16 %v3268, %v3267
    %v3291 = vpack.c.b16 %v3270, %v3269
    %v3292 = vpack.c.b16 %v3272, %v3271
    %v3293 = vpack.c.b16 %v3274, %v3273
    %v3294 = vpack.c.b16 %v3276, %v3275
    %v3295 = vpack.c.b16 %v3278, %v3277
    %v3296 = vpack.c.b16 %v3280, %v3279
    %3313 = vmatprep.subr.bf16.mxu0 0
    %3314 = vmatpush1.bf16.msra.mxu0 %v3288
    %3315 = vmatprep.subr.bf16.mxu0 0
    %3316 = vmatpush1.bf16.msra.mxu0 %v3287
    %3317 = vmatprep.subr.bf16.mxu0 0
    %3318 = vmatpush1.bf16.msra.mxu0 %v3286
    %3319 = vmatprep.subr.bf16.mxu0 0
    %3320 = vmatpush1.bf16.msra.mxu0 %v3285
    %3321 = vmatprep.subr.bf16.mxu0 0
    %3322 = vmatpush1.bf16.msra.mxu0 %v3284
    %3323 = vmatprep.subr.bf16.mxu0 0
    %3324 = vmatpush1.bf16.msra.mxu0 %v3283
    %3325 = vmatprep.subr.bf16.mxu0 0
    %3326 = vmatpush1.bf16.msra.mxu0 %v3282
    %3327 = vmatprep.subr.bf16.mxu0 0
    %3328 = vmatpush1.bf16.msra.mxu0 %v3281
    %3329 = vmatprep.subr.bf16.mxu0 0
    %3330 = vmatpush2.bf16.msra.mxu0 %v3296
    %3331 = vmatprep.subr.bf16.mxu0 0
    %3332 = vmatpush2.bf16.msra.mxu0 %v3295
    %3333 = vmatprep.subr.bf16.mxu0 0
    %3334 = vmatpush2.bf16.msra.mxu0 %v3294
    %3335 = vmatprep.subr.bf16.mxu0 0
    %3336 = vmatpush2.bf16.msra.mxu0 %v3293
    %3337 = vmatprep.subr.bf16.mxu0 0
    %3338 = vmatpush2.bf16.msra.mxu0 %v3292
    %3339 = vmatprep.subr.bf16.mxu0 0
    %3340 = vmatpush2.bf16.msra.mxu0 %v3291
    %3341 = vmatprep.subr.bf16.mxu0 0
    %3342 = vmatpush2.bf16.msra.mxu0 %v3290
    %3343 = vmatprep.subr.bf16.mxu0 0
    %3344 = vmatpush2.bf16.msra.mxu0 %v3289
    %3345 = vmatprep.mubr.bf16.mxu0 %v3184
    %3346 = vmatmul.mubr.bf16.gmra.mxu0 %v3183
    %v3347 = vpop.f32.mrf.mxu0
    %v3348 = vadd.f32 %v1895, %v3347
    %v3349 = vpop.f32.mrf.mxu0
    %v3350 = vpop.f32.mrf.mxu0
    %v3351 = vadd.f32 %v1895, %v3350
    %v3352 = vpop.f32.mrf.mxu0
    %3353 = vdwg.mxu0
    %v3354 = vadd.f32 %v3042, %v3348
    %v3355 = vadd.f32 %v3043, %v3351
    %3356 = vadd.xlane.f32.xlu0 %v3354
    %v3357 = vpop.xlane.xlu0 %3356
    %3358 = vadd.xlane.f32.xlu0 %v3355
    %v3359 = vpop.xlane.xlu0 %3358
    %v3360 = vmul.f32 %v3357, %v1464
    %v3361 = vmul.f32 %v3359, %v1464
    %v3362 = vsub.f32 %v3354, %v3360
    %v3363 = vsub.f32 %v3355, %v3361
    %v3364 = vmul.f32 %v3362, %v3362
    %v3365 = vmul.f32 %v3363, %v3363
    %3366 = vadd.xlane.f32.xlu0 %v3364
    %v3367 = vpop.xlane.xlu0 %3366
    %3368 = vadd.xlane.f32.xlu0 %v3365
    %v3369 = vpop.xlane.xlu0 %3368
    %v3370 = vmul.f32 %v3367, %v1464
    %v3371 = vmul.f32 %v3369, %v1464
    %v3372 = vadd.f32 %v3370, 1e-05
    %v3373 = vadd.f32 %v3371, 1e-05
    %v3374 = vrsqrt.pop %v3372
    %v3375 = vrsqrt.pop %v3373
    %v3376 = vmul.f32 %v3362, %v3374
    %v3377 = vmul.f32 %v3363, %v3375
    %v3378 = vmul.f32 %v3376, %v1896
    %v3379 = vmul.f32 %v3377, %v1896
    %v3380 = vadd.f32 %v3378, %v1897
    %v3381 = vadd.f32 %v3379, %v1897
    %v3382 = vpack.c.bf16 %v3381, %v3380
    %v3383 = vld [vmem:[#allocation16] sm:$0xf]
    %v3384 = vld [vmem:[#allocation16 + $0x4] sm:$0xf]
    %v3385 = vld [vmem:[#allocation16 + $0x8] sm:$0xf]
    %v3386 = vld [vmem:[#allocation16 + $0xc] sm:$0xf]
    %v3387 = vld [vmem:[#allocation16 + $0x10] sm:$0xf]
    %v3388 = vld [vmem:[#allocation16 + $0x14] sm:$0xf]
    %v3389 = vld [vmem:[#allocation16 + $0x18] sm:$0xf]
    %v3390 = vld [vmem:[#allocation16 + $0x1c] sm:$0xf]
    %v3391 = vld [vmem:[#allocation16 + $0x20] sm:$0xf]
    %v3392 = vld [vmem:[#allocation16 + $0x24] sm:$0xf]
    %v3393 = vld [vmem:[#allocation16 + $0x28] sm:$0xf]
    %v3394 = vld [vmem:[#allocation16 + $0x2c] sm:$0xf]
    %v3395 = vld [vmem:[#allocation16 + $0x30] sm:$0xf]
    %v3396 = vld [vmem:[#allocation16 + $0x34] sm:$0xf]
    %v3397 = vld [vmem:[#allocation16 + $0x38] sm:$0xf]
    %v3398 = vld [vmem:[#allocation16 + $0x3c] sm:$0xf]
    %v3399 = vld [vmem:[%s11] sm:$0x1]
    %v3401 = vlaneseq
    %v3402 = vshrl.u32 %v3401, 7
    %v3403 = vsub.s32 0, %v3402
    %v3404 = vrot.slane %v3399, %v3403
    %v3422 = vunpack.c.l.b16 %v3383
    %v3423 = vunpack.c.l.b16 %v3384
    %v3424 = vunpack.c.l.b16 %v3385
    %v3425 = vunpack.c.l.b16 %v3386
    %v3426 = vunpack.c.l.b16 %v3387
    %v3427 = vunpack.c.l.b16 %v3388
    %v3428 = vunpack.c.l.b16 %v3389
    %v3429 = vunpack.c.l.b16 %v3390
    %v3430 = vunpack.c.l.b16 %v3391
    %v3431 = vunpack.c.l.b16 %v3392
    %v3432 = vunpack.c.l.b16 %v3393
    %v3433 = vunpack.c.l.b16 %v3394
    %v3434 = vunpack.c.l.b16 %v3395
    %v3435 = vunpack.c.l.b16 %v3396
    %v3436 = vunpack.c.l.b16 %v3397
    %v3437 = vunpack.c.l.b16 %v3398
    %v3438 = vpack.c.b16 %v3423, %v3422
    %v3439 = vpack.c.b16 %v3425, %v3424
    %v3440 = vpack.c.b16 %v3427, %v3426
    %v3441 = vpack.c.b16 %v3429, %v3428
    %v3442 = vpack.c.b16 %v3431, %v3430
    %v3443 = vpack.c.b16 %v3433, %v3432
    %v3444 = vpack.c.b16 %v3435, %v3434
    %v3445 = vpack.c.b16 %v3437, %v3436
    %3454 = vmatprep.subr.bf16.mxu0 0
    %3455 = vmatpush1.bf16.msra.mxu0 %v3445
    %3456 = vmatprep.subr.bf16.mxu0 0
    %3457 = vmatpush1.bf16.msra.mxu0 %v3444
    %3458 = vmatprep.subr.bf16.mxu0 0
    %3459 = vmatpush1.bf16.msra.mxu0 %v3443
    %3460 = vmatprep.subr.bf16.mxu0 0
    %3461 = vmatpush1.bf16.msra.mxu0 %v3442
    %3462 = vmatprep.subr.bf16.mxu0 0
    %3463 = vmatpush1.bf16.msra.mxu0 %v3441
    %3464 = vmatprep.subr.bf16.mxu0 0
    %3465 = vmatpush1.bf16.msra.mxu0 %v3440
    %3466 = vmatprep.subr.bf16.mxu0 0
    %3467 = vmatpush1.bf16.msra.mxu0 %v3439
    %3468 = vmatprep.subr.bf16.mxu0 0
    %3469 = vmatpush1.bf16.msra.mxu0 %v3438
    %3470 = vmatprep.subr.bf16.mxu0 0
    %3471 = vmatpush2.bf16.msra.mxu0 0
    %3472 = vmatprep.subr.bf16.mxu0 0
    %3473 = vmatpush2.bf16.msra.mxu0 0
    %3474 = vmatprep.subr.bf16.mxu0 0
    %3475 = vmatpush2.bf16.msra.mxu0 0
    %3476 = vmatprep.subr.bf16.mxu0 0
    %3477 = vmatpush2.bf16.msra.mxu0 0
    %3478 = vmatprep.subr.bf16.mxu0 0
    %3479 = vmatpush2.bf16.msra.mxu0 0
    %3480 = vmatprep.subr.bf16.mxu0 0
    %3481 = vmatpush2.bf16.msra.mxu0 0
    %3482 = vmatprep.subr.bf16.mxu0 0
    %3483 = vmatpush2.bf16.msra.mxu0 0
    %3484 = vmatprep.subr.bf16.mxu0 0
    %3485 = vmatpush2.bf16.msra.mxu0 0
    %3486 = vmatprep.mubr.bf16.mxu0 0
    %3487 = vmatmul.mubr.bf16.gmra.mxu0 %v3382
    %v3488 = vpop.f32.mrf.mxu0
    %v3489 = vadd.f32 %v3404, %v3488
    %v3490 = vpop.f32.mrf.mxu0
    %v3491 = vpop.f32.mrf.mxu0
    %v3492 = vadd.f32 %v3404, %v3491
    %v3493 = vpop.f32.mrf.mxu0
    %3494 = vdwg.mxu0
    %3495 = vst [vmem:[#allocation17] sm:$0xff] %v3489
    %3496 = vst [vmem:[#allocation17 + $0x8] sm:$0xff] %v3492
    // Predicated region
    $region86: #{tpu_custom_call.1} parent=1 // pred_check
      _
    $region87: #{tpu_custom_call.1} parent=1 // pred_check_branch
      %3498 = sbr.rel (0) target = $region89
    $region88: #{tpu_custom_call.1} parent=1 // pred_region
      %s3500 = ssub.s32 256, 256
      %3501 = vsyncadd [#allocation4], %s3500
      %s3502 = sshll.u32 [#allocation17], 4
      %s3503 = int_to_ptr.vmem [resolvable:$true] %s3502
      %3508 = dma.vmem_to_hbm [thread:$0]  %s3503, 256, %s12, [#allocation4], 128, 128, 8
    $region89: #{tpu_custom_call.1} parent=1 // pred_fallthru
      _
    // Predicated region
    $region90: #{tpu_custom_call.1} parent=1 // pred_check
      _
    $region91: #{tpu_custom_call.1} parent=1 // pred_check_branch
      %3510 = sbr.rel (0) target = $region93
    $region92: #{tpu_custom_call.1} parent=1 // pred_region
      %3511 = dma.done [#allocation4], 256
    $region93: #{tpu_custom_call.1} parent=1 // pred_fallthru
      _
    %3512 = vsyncpa [#allocation3], 1
    %3513 = vsyncpa [#allocation6], 1
    %3514 = vsyncpa [#allocation9], 1
    %3515 = vsyncpa [#allocation12], 1
    %3516 = vsyncpa [#allocation15], 1
    %3517 = vsyncpa [#allocation4], 1

</llo_original>
